<compile_context>
chip_gen: v7x
topology: tpu7x:2x2x1
jax: 0.10.0
libtpu: 0.0.40
codegen_flags: <defaults>
</compile_context>

<pallas_src>
import functools

import jax
import jax.numpy as jnp
from jax.experimental import pallas as pl
from jax.experimental.pallas import tpu as pltpu


def _round_up(n, m):
    return ((n + m - 1) // m) * m


# ----------------------------------------------------------------------------
# Kernel (all activations transposed: (features, batch_tile))
# ----------------------------------------------------------------------------
def _critic_kernel(x_ref, a_ref,
                   w1_ref, b1_ref,
                   w2_ref, b2_ref,
                   w3o_ref, w3a_ref, b3_ref,
                   w4_ref, b4_ref,
                   out_ref):
    # ---- net_head ----
    # Layer 1: (256, 128) @ (128, TB) -- bf16 operands, f32 accumulation.
    h1 = jnp.dot(w1_ref[...], x_ref[...], preferred_element_type=jnp.float32)
    h1 = jnp.maximum(h1 + b1_ref[...], 0.0)                       # (256, TB) f32

    # Layer 2: (512, 256) @ (256, TB); padded feature rows [400:512] come out exactly 0.
    obs = jnp.dot(w2_ref[...], h1.astype(jnp.bfloat16),
                  preferred_element_type=jnp.float32)
    obs = jnp.maximum(obs + b2_ref[...], 0.0)                     # (512, TB) f32

    # ---- net_tail on cat([obs, a]) ----
    # cat([obs, a]) @ W3  ==  W3_obs^T @ obs + W3_act^T @ a  (a operand is only 128 rows).
    h3 = (jnp.dot(w3o_ref[...], obs.astype(jnp.bfloat16),
                  preferred_element_type=jnp.float32)
          + jnp.dot(w3a_ref[...], a_ref[...],
                    preferred_element_type=jnp.float32))
    h3 = jnp.maximum(h3 + b3_ref[...], 0.0)                       # (384, TB) f32

    # Final 384 -> 1 layer in f32: w4 is row-replicated to (8, 384) so the MXU result
    # (8, TB) is already lane-dense along the batch (row 0 is the real q).
    q = jnp.dot(w4_ref[...], h3, preferred_element_type=jnp.float32) + b4_ref[...]
    out_ref[...] = q.astype(out_ref.dtype)


# ----------------------------------------------------------------------------
# Parameter packing (transpose / pad / cast once, outside the hot path; arrays only)
# ----------------------------------------------------------------------------
def pack_params(params, obs_dim, action_dim):
    (w1, b1, w2, b2, w3, b3, w4, b4) = params
    head_hid = w1.shape[1]          # 256
    head_out = w2.shape[1]          # 400
    tail_hid = w3.shape[1]          # 300

    obs_p = _round_up(obs_dim, 128)          # 32  -> 128
    act_p = _round_up(action_dim, 128)       # 8   -> 128
    head_out_p = _round_up(head_out, 128)    # 400 -> 512
    tail_hid_p = _round_up(tail_hid, 128)    # 300 -> 384

    def pad_t(w, rows_p, cols_p):
        """(fan_in, fan_out) weight -> transposed, zero-padded (rows_p, cols_p) bf16."""
        fan_in, fan_out = w.shape
        wp = jnp.zeros((rows_p, cols_p), jnp.float32).at[:fan_out, :fan_in].set(w.T)
        return wp.astype(jnp.bfloat16)

    def pad_col(b, rows_p):
        return jnp.zeros((rows_p, 1), jnp.float32).at[:b.shape[0], 0].set(b)

    w1t = pad_t(w1, head_hid, obs_p)                       # (256, 128)
    w2t = pad_t(w2, head_out_p, head_hid)                  # (512, 256)
    w3ot = pad_t(w3[:head_out], tail_hid_p, head_out_p)    # (384, 512)
    w3at = pad_t(w3[head_out:], tail_hid_p, act_p)         # (384, 128)

    # Final layer kept f32; replicate across 8 sublanes for a clean (8,128)-tiled operand.
    w4r = jnp.zeros((8, tail_hid_p), jnp.float32).at[:, :tail_hid].set(
        jnp.broadcast_to(w4.reshape(1, tail_hid), (8, tail_hid)))
    b4r = jnp.broadcast_to(b4.reshape(1, 1), (8, 1)).astype(jnp.float32)

    return dict(
        w1t=w1t, b1=pad_col(b1, head_hid),
        w2t=w2t, b2=pad_col(b2, head_out_p),
        w3ot=w3ot, w3at=w3at, b3=pad_col(b3, tail_hid_p),
        w4r=w4r, b4=b4r,
    )


# ----------------------------------------------------------------------------
# Forward wrapper
# ----------------------------------------------------------------------------
def _choose_tb(batch, tb):
    b128 = _round_up(batch, 128)
    tb = max(128, min(_round_up(tb, 128), b128))
    # v7x has 2 TensorCores: when the padded batch splits evenly, keep >= 2 grid steps so
    # dimension_semantics=("parallel",) can shard the batch across both cores.
    if b128 // tb < 2 and b128 >= 256 and b128 % 256 == 0:
        tb = b128 // 2
    return tb


def ddpg_critic_forward(x, a, weights, *, tb=512):
    """x: (B, obs_dim) f32, a: (B, action_dim) f32 -> (B, 1) f32."""
    B, obs_dim = x.shape
    act_dim = a.shape[1]

    w1t, b1 = weights["w1t"], weights["b1"]
    w2t, b2 = weights["w2t"], weights["b2"]
    w3ot, w3at, b3 = weights["w3ot"], weights["w3at"], weights["b3"]
    w4r, b4 = weights["w4r"], weights["b4"]

    obs_p = w1t.shape[1]          # 128
    act_p = w3at.shape[1]         # 128
    head_hid = w1t.shape[0]       # 256
    head_out_p = w2t.shape[0]     # 512
    tail_hid_p = w3ot.shape[0]    # 384

    tb = _choose_tb(B, tb)
    b_pad = _round_up(B, tb)
    grid = (b_pad // tb,)

    # Transposed, zero-padded, bf16 activations (cheap pads: only 128 feature rows each).
    xT = jnp.pad(x.astype(jnp.bfloat16).T, ((0, obs_p - obs_dim), (0, b_pad - B)))
    aT = jnp.pad(a.astype(jnp.bfloat16).T, ((0, act_p - act_dim), (0, b_pad - B)))

    ws = (w1t, b1, w2t, b2, w3ot, w3at, b3, w4r, b4)

    def act_spec(rows):  # batch-tiled along the lane axis
        return pl.BlockSpec((rows, tb), lambda i: (0, i))

    def resident(arr):   # constant index_map -> weight block stays in VMEM across the grid
        return pl.BlockSpec(arr.shape, lambda i: (0, 0))

    flops = 2 * b_pad * (obs_p * head_hid + head_hid * head_out_p
                         + head_out_p * tail_hid_p + act_p * tail_hid_p
                         + tail_hid_p * 8)
    bytes_accessed = (int(xT.size) * 2 + int(aT.size) * 2
                      + sum(int(t.size) * t.dtype.itemsize for t in ws)
                      + 8 * b_pad * 4)

    out = pl.pallas_call(
        _critic_kernel,
        grid=grid,
        in_specs=[act_spec(obs_p), act_spec(act_p)] + [resident(w) for w in ws],
        out_specs=pl.BlockSpec((8, tb), lambda i: (0, i)),
        out_shape=jax.ShapeDtypeStruct((8, b_pad), jnp.float32),
        compiler_params=pltpu.CompilerParams(
            dimension_semantics=("parallel",)),
        cost_estimate=pl.CostEstimate(flops=flops, transcendentals=0,
                                      bytes_accessed=bytes_accessed),
    )(xT, aT, *ws)

    # Row 0 carries q for every batch column; padded batch columns are sliced off.
    return out[0, :B].reshape(B, 1)


# ----------------------------------------------------------------------------
# Init + pure-JAX reference
# ----------------------------------------------------------------------------
def init_params(key, obs_dim, action_dim,
                head_hidden=256, head_out=400, tail_hidden=300):
    """PyTorch-style uniform(+/- 1/sqrt(fan_in)) init, unpadded f32."""
    def linear(key, fan_in, fan_out):
        kw, kb = jax.random.split(key)
        bound = 1.0 / jnp.sqrt(jnp.float32(fan_in))
        w = jax.random.uniform(kw, (fan_in, fan_out), jnp.float32, -bound, bound)
        b = jax.random.uniform(kb, (fan_out,), jnp.float32, -bound, bound)
        return w, b

    k1, k2, k3, k4 = jax.random.split(key, 4)
    w1, b1 = linear(k1, obs_dim, head_hidden)
    w2, b2 = linear(k2, head_hidden, head_out)
    w3, b3 = linear(k3, head_out + action_dim, tail_hidden)
    w4, b4 = linear(k4, tail_hidden, 1)
    return (w1, b1, w2, b2, w3, b3, w4, b4)


def _reference_forward(x, a, params):
    """Pure-JAX reference of the PyTorch forward (bf16 matmul operands,
    f32 accumulation, matching the kernel's numerics)."""
    (w1, b1, w2, b2, w3, b3, w4, b4) = params
    bf = jnp.bfloat16

    def mm(lhs, rhs):
        return jnp.dot(lhs.astype(bf), rhs.astype(bf),
                       preferred_element_type=jnp.float32)

    h1 = jnp.maximum(mm(x, w1) + b1, 0.0)
    obs = jnp.maximum(mm(h1, w2) + b2, 0.0)
    cat = jnp.concatenate([obs, a.astype(jnp.float32)], axis=1)
    h3 = jnp.maximum(mm(cat, w3) + b3, 0.0)
    return h3 @ w4 + b4


if __name__ == "__main__":
    B, OBS_DIM, ACT_DIM = 256, 32, 8

    key = jax.random.PRNGKey(0)
    k_params, k_x, k_a = jax.random.split(key, 3)

    params = init_params(k_params, OBS_DIM, ACT_DIM)
    weights = pack_params(params, OBS_DIM, ACT_DIM)   # arrays only (jit-safe pytree)

    x = jax.random.normal(k_x, (B, OBS_DIM), jnp.float32)
    a = jax.random.normal(k_a, (B, ACT_DIM), jnp.float32)

    fwd = jax.jit(functools.partial(ddpg_critic_forward, tb=512))
    q = jax.block_until_ready(fwd(x, a, weights))
    q_ref = _reference_forward(x, a, params)

    assert q.shape == (B, 1), q.shape
    assert jnp.allclose(q, q_ref, atol=5e-3, rtol=5e-3), (
        float(jnp.max(jnp.abs(q - q_ref))))
    print("KERNEL_OK")
</pallas_src>

<mosaic_0001>
module attributes {stable_mosaic.version = 11 : i64} {
  func.func @_critic_kernel(%arg0: i32, %arg1: memref<128x128xbf16, #tpu.memory_space<vmem>>, %arg2: memref<128x128xbf16, #tpu.memory_space<vmem>>, %arg3: memref<256x128xbf16, #tpu.memory_space<vmem>>, %arg4: memref<256x1xf32, #tpu.memory_space<vmem>>, %arg5: memref<512x256xbf16, #tpu.memory_space<vmem>>, %arg6: memref<512x1xf32, #tpu.memory_space<vmem>>, %arg7: memref<384x512xbf16, #tpu.memory_space<vmem>>, %arg8: memref<384x128xbf16, #tpu.memory_space<vmem>>, %arg9: memref<384x1xf32, #tpu.memory_space<vmem>>, %arg10: memref<8x384xf32, #tpu.memory_space<vmem>>, %arg11: memref<8x1xf32, #tpu.memory_space<vmem>>, %arg12: memref<8x128xf32, #tpu.memory_space<vmem>>) attributes {dimension_semantics = [#tpu.dimension_semantics<parallel>], iteration_bounds = array<i64: 2>, scalar_prefetch = 0 : i64, scratch_operands = 0 : i64, tpu.core_type = #tpu.core_type<tc>, window_params = [{transform_indices = @transform_0, window_bounds = array<i64: 128, 128>}, {transform_indices = @transform_1, window_bounds = array<i64: 128, 128>}, {pipeline_mode = #tpu.pipeline_mode<synchronous>, transform_indices = @transform_2, window_bounds = array<i64: 256, 128>}, {pipeline_mode = #tpu.pipeline_mode<synchronous>, transform_indices = @transform_3, window_bounds = array<i64: 256, 1>}, {pipeline_mode = #tpu.pipeline_mode<synchronous>, transform_indices = @transform_4, window_bounds = array<i64: 512, 256>}, {pipeline_mode = #tpu.pipeline_mode<synchronous>, transform_indices = @transform_5, window_bounds = array<i64: 512, 1>}, {pipeline_mode = #tpu.pipeline_mode<synchronous>, transform_indices = @transform_6, window_bounds = array<i64: 384, 512>}, {pipeline_mode = #tpu.pipeline_mode<synchronous>, transform_indices = @transform_7, window_bounds = array<i64: 384, 128>}, {pipeline_mode = #tpu.pipeline_mode<synchronous>, transform_indices = @transform_8, window_bounds = array<i64: 384, 1>}, {pipeline_mode = #tpu.pipeline_mode<synchronous>, transform_indices = @transform_9, window_bounds = array<i64: 8, 384>}, {pipeline_mode = #tpu.pipeline_mode<synchronous>, transform_indices = @transform_10, window_bounds = array<i64: 8, 1>}, {transform_indices = @transform_11, window_bounds = array<i64: 8, 128>}]} {
    %c0 = arith.constant 0 : index
    %c0_0 = arith.constant 0 : index
    %0 = vector.load %arg3[%c0, %c0_0] : memref<256x128xbf16, #tpu.memory_space<vmem>>, vector<256x128xbf16>
    %c0_1 = arith.constant 0 : index
    %c0_2 = arith.constant 0 : index
    %1 = vector.load %arg1[%c0_1, %c0_2] : memref<128x128xbf16, #tpu.memory_space<vmem>>, vector<128x128xbf16>
    %cst = arith.constant dense<0.000000e+00> : vector<256x128xf32>
    %2 = tpu.matmul %0, %1, %cst {dimension_numbers = #tpu.dot_dimension_numbers<[1], [0], [0], [1], [0, 0, 1, 1], [], []>} : vector<256x128xbf16>, vector<128x128xbf16>, vector<256x128xf32> -> vector<256x128xf32>
    %c0_3 = arith.constant 0 : index
    %c0_4 = arith.constant 0 : index
    %3 = vector.load %arg4[%c0_3, %c0_4] : memref<256x1xf32, #tpu.memory_space<vmem>>, vector<256x1xf32>
    %4 = vector.broadcast %3 : vector<256x1xf32> to vector<256x128xf32>
    %5 = arith.addf %2, %4 : vector<256x128xf32>
    %cst_5 = arith.constant 0.000000e+00 : f32
    %6 = vector.broadcast %cst_5 : f32 to vector<256x128xf32>
    %7 = arith.maximumf %5, %6 : vector<256x128xf32>
    %c0_6 = arith.constant 0 : index
    %c0_7 = arith.constant 0 : index
    %8 = vector.load %arg5[%c0_6, %c0_7] : memref<512x256xbf16, #tpu.memory_space<vmem>>, vector<512x256xbf16>
    %9 = arith.truncf %7 : vector<256x128xf32> to vector<256x128xbf16>
    %cst_8 = arith.constant dense<0.000000e+00> : vector<512x128xf32>
    %10 = tpu.matmul %8, %9, %cst_8 {dimension_numbers = #tpu.dot_dimension_numbers<[1], [0], [0], [1], [0, 0, 1, 1], [], []>} : vector<512x256xbf16>, vector<256x128xbf16>, vector<512x128xf32> -> vector<512x128xf32>
    %c0_9 = arith.constant 0 : index
    %c0_10 = arith.constant 0 : index
    %11 = vector.load %arg6[%c0_9, %c0_10] : memref<512x1xf32, #tpu.memory_space<vmem>>, vector<512x1xf32>
    %12 = vector.broadcast %11 : vector<512x1xf32> to vector<512x128xf32>
    %13 = arith.addf %10, %12 : vector<512x128xf32>
    %cst_11 = arith.constant 0.000000e+00 : f32
    %14 = vector.broadcast %cst_11 : f32 to vector<512x128xf32>
    %15 = arith.maximumf %13, %14 : vector<512x128xf32>
    %c0_12 = arith.constant 0 : index
    %c0_13 = arith.constant 0 : index
    %16 = vector.load %arg7[%c0_12, %c0_13] : memref<384x512xbf16, #tpu.memory_space<vmem>>, vector<384x512xbf16>
    %17 = arith.truncf %15 : vector<512x128xf32> to vector<512x128xbf16>
    %cst_14 = arith.constant dense<0.000000e+00> : vector<384x128xf32>
    %18 = tpu.matmul %16, %17, %cst_14 {dimension_numbers = #tpu.dot_dimension_numbers<[1], [0], [0], [1], [0, 0, 1, 1], [], []>} : vector<384x512xbf16>, vector<512x128xbf16>, vector<384x128xf32> -> vector<384x128xf32>
    %c0_15 = arith.constant 0 : index
    %c0_16 = arith.constant 0 : index
    %19 = vector.load %arg8[%c0_15, %c0_16] : memref<384x128xbf16, #tpu.memory_space<vmem>>, vector<384x128xbf16>
    %c0_17 = arith.constant 0 : index
    %c0_18 = arith.constant 0 : index
    %20 = vector.load %arg2[%c0_17, %c0_18] : memref<128x128xbf16, #tpu.memory_space<vmem>>, vector<128x128xbf16>
    %cst_19 = arith.constant dense<0.000000e+00> : vector<384x128xf32>
    %21 = tpu.matmul %19, %20, %cst_19 {dimension_numbers = #tpu.dot_dimension_numbers<[1], [0], [0], [1], [0, 0, 1, 1], [], []>} : vector<384x128xbf16>, vector<128x128xbf16>, vector<384x128xf32> -> vector<384x128xf32>
    %22 = arith.addf %18, %21 : vector<384x128xf32>
    %c0_20 = arith.constant 0 : index
    %c0_21 = arith.constant 0 : index
    %23 = vector.load %arg9[%c0_20, %c0_21] : memref<384x1xf32, #tpu.memory_space<vmem>>, vector<384x1xf32>
    %24 = vector.broadcast %23 : vector<384x1xf32> to vector<384x128xf32>
    %25 = arith.addf %22, %24 : vector<384x128xf32>
    %cst_22 = arith.constant 0.000000e+00 : f32
    %26 = vector.broadcast %cst_22 : f32 to vector<384x128xf32>
    %27 = arith.maximumf %25, %26 : vector<384x128xf32>
    %c0_23 = arith.constant 0 : index
    %c0_24 = arith.constant 0 : index
    %28 = vector.load %arg10[%c0_23, %c0_24] : memref<8x384xf32, #tpu.memory_space<vmem>>, vector<8x384xf32>
    %cst_25 = arith.constant dense<0.000000e+00> : vector<8x128xf32>
    %29 = tpu.matmul %28, %27, %cst_25 {dimension_numbers = #tpu.dot_dimension_numbers<[1], [0], [0], [1], [0, 0, 1, 1], [], []>} : vector<8x384xf32>, vector<384x128xf32>, vector<8x128xf32> -> vector<8x128xf32>
    %c0_26 = arith.constant 0 : index
    %c0_27 = arith.constant 0 : index
    %30 = vector.load %arg11[%c0_26, %c0_27] : memref<8x1xf32, #tpu.memory_space<vmem>>, vector<8x1xf32>
    %31 = vector.broadcast %30 : vector<8x1xf32> to vector<8x128xf32>
    %32 = arith.addf %29, %31 : vector<8x128xf32>
    %c0_28 = arith.constant 0 : index
    %c0_29 = arith.constant 0 : index
    %33 = vector.load %arg12[%c0_28, %c0_29] : memref<8x128xf32, #tpu.memory_space<vmem>>, vector<8x128xf32>
    tpu.vector_store %arg12[%c0_28, %c0_29], %32 {strides = array<i32>} : memref<8x128xf32, #tpu.memory_space<vmem>>, vector<8x128xf32>,
    return
  }
  func.func @transform_0(%arg0: i32) -> (i32, i32) {
    %c0_i32 = arith.constant 0 : i32
    %c0_i32_0 = arith.constant 0 : i32
    return %c0_i32, %arg0 : i32, i32
  }
  func.func @transform_1(%arg0: i32) -> (i32, i32) {
    %c0_i32 = arith.constant 0 : i32
    %c0_i32_0 = arith.constant 0 : i32
    return %c0_i32, %arg0 : i32, i32
  }
  func.func @transform_2(%arg0: i32) -> (i32, i32) {
    %c0_i32 = arith.constant 0 : i32
    %c0_i32_0 = arith.constant 0 : i32
    %c0_i32_1 = arith.constant 0 : i32
    return %c0_i32, %c0_i32_0 : i32, i32
  }
  func.func @transform_3(%arg0: i32) -> (i32, i32) {
    %c0_i32 = arith.constant 0 : i32
    %c0_i32_0 = arith.constant 0 : i32
    %c0_i32_1 = arith.constant 0 : i32
    return %c0_i32, %c0_i32_0 : i32, i32
  }
  func.func @transform_4(%arg0: i32) -> (i32, i32) {
    %c0_i32 = arith.constant 0 : i32
    %c0_i32_0 = arith.constant 0 : i32
    %c0_i32_1 = arith.constant 0 : i32
    return %c0_i32, %c0_i32_0 : i32, i32
  }
  func.func @transform_5(%arg0: i32) -> (i32, i32) {
    %c0_i32 = arith.constant 0 : i32
    %c0_i32_0 = arith.constant 0 : i32
    %c0_i32_1 = arith.constant 0 : i32
    return %c0_i32, %c0_i32_0 : i32, i32
  }
  func.func @transform_6(%arg0: i32) -> (i32, i32) {
    %c0_i32 = arith.constant 0 : i32
    %c0_i32_0 = arith.constant 0 : i32
    %c0_i32_1 = arith.constant 0 : i32
    return %c0_i32, %c0_i32_0 : i32, i32
  }
  func.func @transform_7(%arg0: i32) -> (i32, i32) {
    %c0_i32 = arith.constant 0 : i32
    %c0_i32_0 = arith.constant 0 : i32
    %c0_i32_1 = arith.constant 0 : i32
    return %c0_i32, %c0_i32_0 : i32, i32
  }
  func.func @transform_8(%arg0: i32) -> (i32, i32) {
    %c0_i32 = arith.constant 0 : i32
    %c0_i32_0 = arith.constant 0 : i32
    %c0_i32_1 = arith.constant 0 : i32
    return %c0_i32, %c0_i32_0 : i32, i32
  }
  func.func @transform_9(%arg0: i32) -> (i32, i32) {
    %c0_i32 = arith.constant 0 : i32
    %c0_i32_0 = arith.constant 0 : i32
    %c0_i32_1 = arith.constant 0 : i32
    return %c0_i32, %c0_i32_0 : i32, i32
  }
  func.func @transform_10(%arg0: i32) -> (i32, i32) {
    %c0_i32 = arith.constant 0 : i32
    %c0_i32_0 = arith.constant 0 : i32
    %c0_i32_1 = arith.constant 0 : i32
    return %c0_i32, %c0_i32_0 : i32, i32
  }
  func.func @transform_11(%arg0: i32) -> (i32, i32) {
    %c0_i32 = arith.constant 0 : i32
    %c0_i32_0 = arith.constant 0 : i32
    return %c0_i32, %arg0 : i32, i32
  }
}

</mosaic_0001>

<llo_original>
// kernel: ddpg_critic_forward.1
$region0: #{ddpg_critic_forward.1}
  #allocation0 [shape = 'u32[]', space=smem, size = 0x4, offset = 0x4, fixed_abs, tag = 'smem constant byte address 0x4 - core index']
  #allocation1 [shape = 'u32[144,128]{1,0:T(1,128)}', space=vmem, size = 0x12000, scoped, tag = 'internal scratch']
  %s0 = inlined_call_operand.vmem [shape: bf16[128,256], index: 0, kind: input, shape index: {}]
  %s1 = inlined_call_operand.vmem [shape: bf16[128,256], index: 1, kind: input, shape index: {}]
  %s2 = inlined_call_operand.vmem [shape: bf16[256,128], index: 2, kind: input, shape index: {}]
  %s3 = inlined_call_operand.vmem [shape: f32[256,1], index: 3, kind: input, shape index: {}]
  %s4 = inlined_call_operand.vmem [shape: bf16[512,256], index: 4, kind: input, shape index: {}]
  %s5 = inlined_call_operand.vmem [shape: f32[512,1], index: 5, kind: input, shape index: {}]
  %s6 = inlined_call_operand.vmem [shape: bf16[384,512], index: 6, kind: input, shape index: {}]
  %s7 = inlined_call_operand.vmem [shape: bf16[384,128], index: 7, kind: input, shape index: {}]
  %s8 = inlined_call_operand.vmem [shape: f32[384,1], index: 8, kind: input, shape index: {}]
  %s9 = inlined_call_operand.vmem [shape: f32[8,384], index: 9, kind: input, shape index: {}]
  %s10 = inlined_call_operand.vmem [shape: f32[8,1], index: 10, kind: input, shape index: {}]
  %s11 = inlined_call_operand.vmem [shape: f32[8,256], index: 11, kind: output, shape index: {}]
  %s12 = sld [smem:[#allocation0]]
  $region159: #{ddpg_critic_forward.1} parent=0
    _
  %s14 = ssub.s32 1, %s12
  %s15 = scalar_select 0, %s14, %s12
  $region1: #{ddpg_critic_forward.1} parent=0
    #allocation2 [shape = 'u8[65536]{0}', space=vmem, size = 0x10000, scoped, tag = 'input window, operand 0']
    #allocation3 [shape = 'u8[65536]{0}', space=vmem, size = 0x10000, scoped, tag = 'input window, operand 1']
    loop: start=0, step=1, limit=4
    $region2: #{ddpg_critic_forward.1} parent=1 // loop_pre_header
      _
    $region3: #{ddpg_critic_forward.1} parent=1 // loop_header
      %s17 = sphi 0, %s21
      %p18 = scmp.ge.s32.totalorder %s17, 4
      %s27 = sphi 0, %s29
      %s30 = sphi 0, %s27
      %s31 = sphi 0, %s30
      %s47 = sphi 0, %s31
      %s53 = sphi 0, %s55
      %s56 = sphi 0, %s53
      %s57 = sphi 0, %s56
      %s73 = sphi 0, %s57
      %s77 = sphi 0, %s77
      %s79 = sphi 0, %s77
      %s80 = sphi 0, %s79
      %s94 = sphi 0, %s80
      %s98 = sphi 0, %s98
      %s100 = sphi 0, %s98
      %s101 = sphi 0, %s100
      %s115 = sphi 0, %s101
      %s119 = sphi 0, %s119
      %s121 = sphi 0, %s119
      %s122 = sphi 0, %s121
      %s136 = sphi 0, %s122
      %s140 = sphi 0, %s140
      %s142 = sphi 0, %s140
      %s143 = sphi 0, %s142
      %s157 = sphi 0, %s143
      %s161 = sphi 0, %s161
      %s163 = sphi 0, %s161
      %s164 = sphi 0, %s163
      %s178 = sphi 0, %s164
      %s182 = sphi 0, %s182
      %s184 = sphi 0, %s182
      %s185 = sphi 0, %s184
      %s199 = sphi 0, %s185
      %s203 = sphi 0, %s203
      %s205 = sphi 0, %s203
      %s206 = sphi 0, %s205
      %s220 = sphi 0, %s206
      %s224 = sphi 0, %s224
      %s226 = sphi 0, %s224
      %s227 = sphi 0, %s226
      %s241 = sphi 0, %s227
      %s245 = sphi 0, %s245
      %s247 = sphi 0, %s245
      %s248 = sphi 0, %s247
      %s262 = sphi 0, %s248
      %s268 = sphi 0, %s270
      %s271 = sphi 0, %s268
      %s272 = sphi 0, %s271
      %s288 = sphi 0, %s272
    $region4: #{ddpg_critic_forward.1} parent=1 // loop_header_branch
      %20 = sbr.rel (%p18) target = $region8
    $region5: #{ddpg_critic_forward.1} parent=1 // loop_body
      %s22 = ssub.s32 %s17, 1
      %s23 = ssub.s32 %s17, 2
      %s24 = sadd.s32 %s17, 1
      %s25 = ssub.s32 %s17, %s24
      %p26 = scmp.eq.s32.totalorder %s25, 0
      %s28 = sadd.s32 %s27, 1
      %s29 = scalar_select %p26, %s27, %s28
      %p32 = pneg %p26
      %p33 = scmp.eq.s32.totalorder %s17, 1
      %p34 = por %p32, %p33
      %p35 = scmp.ne.s32.totalorder %s27, %s30
      %p36 = scmp.eq.s32.totalorder %s17, 0
      %p37 = por %p35, %p36
      %p38 = scmp.ne.s32.totalorder %s27, %s30
      %p39 = scmp.eq.s32.totalorder %s22, 1
      %p40 = por %p38, %p39
      %p41 = scmp.ne.s32.totalorder %s30, %s31
      %p42 = scmp.eq.s32.totalorder %s22, 0
      %p43 = por %p41, %p42
      %p44 = scmp.ne.s32.totalorder %s30, %s31
      %p45 = scmp.eq.s32.totalorder %s23, 1
      %p46 = por %p44, %p45
      %p48 = scmp.ne.s32.totalorder %s31, %s47
      %p49 = scmp.eq.s32.totalorder %s23, 0
      %p50 = por %p48, %p49
      %s51 = ssub.s32 %s17, %s24
      %p52 = scmp.eq.s32.totalorder %s51, 0
      %s54 = sadd.s32 %s53, 1
      %s55 = scalar_select %p52, %s53, %s54
      %p58 = pneg %p52
      %p59 = scmp.eq.s32.totalorder %s17, 1
      %p60 = por %p58, %p59
      %p61 = scmp.ne.s32.totalorder %s53, %s56
      %p62 = scmp.eq.s32.totalorder %s17, 0
      %p63 = por %p61, %p62
      %p64 = scmp.ne.s32.totalorder %s53, %s56
      %p65 = scmp.eq.s32.totalorder %s22, 1
      %p66 = por %p64, %p65
      %p67 = scmp.ne.s32.totalorder %s56, %s57
      %p68 = scmp.eq.s32.totalorder %s22, 0
      %p69 = por %p67, %p68
      %p70 = scmp.ne.s32.totalorder %s56, %s57
      %p71 = scmp.eq.s32.totalorder %s23, 1
      %p72 = por %p70, %p71
      %p74 = scmp.ne.s32.totalorder %s57, %s73
      %p75 = scmp.eq.s32.totalorder %s23, 0
      %p76 = por %p74, %p75
      %s78 = sadd.s32 %s77, 1
      %p81 = scmp.eq.s32.totalorder %s17, 1
      %p82 = scmp.ne.s32.totalorder %s77, %s79
      %p83 = scmp.eq.s32.totalorder %s17, 0
      %p84 = por %p82, %p83
      %p85 = scmp.ne.s32.totalorder %s77, %s79
      %p86 = scmp.eq.s32.totalorder %s22, 1
      %p87 = por %p85, %p86
      %p88 = scmp.ne.s32.totalorder %s79, %s80
      %p89 = scmp.eq.s32.totalorder %s22, 0
      %p90 = por %p88, %p89
      %p91 = scmp.ne.s32.totalorder %s79, %s80
      %p92 = scmp.eq.s32.totalorder %s23, 1
      %p93 = por %p91, %p92
      %p95 = scmp.ne.s32.totalorder %s80, %s94
      %p96 = scmp.eq.s32.totalorder %s23, 0
      %p97 = por %p95, %p96
      %s99 = sadd.s32 %s98, 1
      %p102 = scmp.eq.s32.totalorder %s17, 1
      %p103 = scmp.ne.s32.totalorder %s98, %s100
      %p104 = scmp.eq.s32.totalorder %s17, 0
      %p105 = por %p103, %p104
      %p106 = scmp.ne.s32.totalorder %s98, %s100
      %p107 = scmp.eq.s32.totalorder %s22, 1
      %p108 = por %p106, %p107
      %p109 = scmp.ne.s32.totalorder %s100, %s101
      %p110 = scmp.eq.s32.totalorder %s22, 0
      %p111 = por %p109, %p110
      %p112 = scmp.ne.s32.totalorder %s100, %s101
      %p113 = scmp.eq.s32.totalorder %s23, 1
      %p114 = por %p112, %p113
      %p116 = scmp.ne.s32.totalorder %s101, %s115
      %p117 = scmp.eq.s32.totalorder %s23, 0
      %p118 = por %p116, %p117
      %s120 = sadd.s32 %s119, 1
      %p123 = scmp.eq.s32.totalorder %s17, 1
      %p124 = scmp.ne.s32.totalorder %s119, %s121
      %p125 = scmp.eq.s32.totalorder %s17, 0
      %p126 = por %p124, %p125
      %p127 = scmp.ne.s32.totalorder %s119, %s121
      %p128 = scmp.eq.s32.totalorder %s22, 1
      %p129 = por %p127, %p128
      %p130 = scmp.ne.s32.totalorder %s121, %s122
      %p131 = scmp.eq.s32.totalorder %s22, 0
      %p132 = por %p130, %p131
      %p133 = scmp.ne.s32.totalorder %s121, %s122
      %p134 = scmp.eq.s32.totalorder %s23, 1
      %p135 = por %p133, %p134
      %p137 = scmp.ne.s32.totalorder %s122, %s136
      %p138 = scmp.eq.s32.totalorder %s23, 0
      %p139 = por %p137, %p138
      %s141 = sadd.s32 %s140, 1
      %p144 = scmp.eq.s32.totalorder %s17, 1
      %p145 = scmp.ne.s32.totalorder %s140, %s142
      %p146 = scmp.eq.s32.totalorder %s17, 0
      %p147 = por %p145, %p146
      %p148 = scmp.ne.s32.totalorder %s140, %s142
      %p149 = scmp.eq.s32.totalorder %s22, 1
      %p150 = por %p148, %p149
      %p151 = scmp.ne.s32.totalorder %s142, %s143
      %p152 = scmp.eq.s32.totalorder %s22, 0
      %p153 = por %p151, %p152
      %p154 = scmp.ne.s32.totalorder %s142, %s143
      %p155 = scmp.eq.s32.totalorder %s23, 1
      %p156 = por %p154, %p155
      %p158 = scmp.ne.s32.totalorder %s143, %s157
      %p159 = scmp.eq.s32.totalorder %s23, 0
      %p160 = por %p158, %p159
      %s162 = sadd.s32 %s161, 1
      %p165 = scmp.eq.s32.totalorder %s17, 1
      %p166 = scmp.ne.s32.totalorder %s161, %s163
      %p167 = scmp.eq.s32.totalorder %s17, 0
      %p168 = por %p166, %p167
      %p169 = scmp.ne.s32.totalorder %s161, %s163
      %p170 = scmp.eq.s32.totalorder %s22, 1
      %p171 = por %p169, %p170
      %p172 = scmp.ne.s32.totalorder %s163, %s164
      %p173 = scmp.eq.s32.totalorder %s22, 0
      %p174 = por %p172, %p173
      %p175 = scmp.ne.s32.totalorder %s163, %s164
      %p176 = scmp.eq.s32.totalorder %s23, 1
      %p177 = por %p175, %p176
      %p179 = scmp.ne.s32.totalorder %s164, %s178
      %p180 = scmp.eq.s32.totalorder %s23, 0
      %p181 = por %p179, %p180
      %s183 = sadd.s32 %s182, 1
      %p186 = scmp.eq.s32.totalorder %s17, 1
      %p187 = scmp.ne.s32.totalorder %s182, %s184
      %p188 = scmp.eq.s32.totalorder %s17, 0
      %p189 = por %p187, %p188
      %p190 = scmp.ne.s32.totalorder %s182, %s184
      %p191 = scmp.eq.s32.totalorder %s22, 1
      %p192 = por %p190, %p191
      %p193 = scmp.ne.s32.totalorder %s184, %s185
      %p194 = scmp.eq.s32.totalorder %s22, 0
      %p195 = por %p193, %p194
      %p196 = scmp.ne.s32.totalorder %s184, %s185
      %p197 = scmp.eq.s32.totalorder %s23, 1
      %p198 = por %p196, %p197
      %p200 = scmp.ne.s32.totalorder %s185, %s199
      %p201 = scmp.eq.s32.totalorder %s23, 0
      %p202 = por %p200, %p201
      %s204 = sadd.s32 %s203, 1
      %p207 = scmp.eq.s32.totalorder %s17, 1
      %p208 = scmp.ne.s32.totalorder %s203, %s205
      %p209 = scmp.eq.s32.totalorder %s17, 0
      %p210 = por %p208, %p209
      %p211 = scmp.ne.s32.totalorder %s203, %s205
      %p212 = scmp.eq.s32.totalorder %s22, 1
      %p213 = por %p211, %p212
      %p214 = scmp.ne.s32.totalorder %s205, %s206
      %p215 = scmp.eq.s32.totalorder %s22, 0
      %p216 = por %p214, %p215
      %p217 = scmp.ne.s32.totalorder %s205, %s206
      %p218 = scmp.eq.s32.totalorder %s23, 1
      %p219 = por %p217, %p218
      %p221 = scmp.ne.s32.totalorder %s206, %s220
      %p222 = scmp.eq.s32.totalorder %s23, 0
      %p223 = por %p221, %p222
      %s225 = sadd.s32 %s224, 1
      %p228 = scmp.eq.s32.totalorder %s17, 1
      %p229 = scmp.ne.s32.totalorder %s224, %s226
      %p230 = scmp.eq.s32.totalorder %s17, 0
      %p231 = por %p229, %p230
      %p232 = scmp.ne.s32.totalorder %s224, %s226
      %p233 = scmp.eq.s32.totalorder %s22, 1
      %p234 = por %p232, %p233
      %p235 = scmp.ne.s32.totalorder %s226, %s227
      %p236 = scmp.eq.s32.totalorder %s22, 0
      %p237 = por %p235, %p236
      %p238 = scmp.ne.s32.totalorder %s226, %s227
      %p239 = scmp.eq.s32.totalorder %s23, 1
      %p240 = por %p238, %p239
      %p242 = scmp.ne.s32.totalorder %s227, %s241
      %p243 = scmp.eq.s32.totalorder %s23, 0
      %p244 = por %p242, %p243
      %s246 = sadd.s32 %s245, 1
      %p249 = scmp.eq.s32.totalorder %s17, 1
      %p250 = scmp.ne.s32.totalorder %s245, %s247
      %p251 = scmp.eq.s32.totalorder %s17, 0
      %p252 = por %p250, %p251
      %p253 = scmp.ne.s32.totalorder %s245, %s247
      %p254 = scmp.eq.s32.totalorder %s22, 1
      %p255 = por %p253, %p254
      %p256 = scmp.ne.s32.totalorder %s247, %s248
      %p257 = scmp.eq.s32.totalorder %s22, 0
      %p258 = por %p256, %p257
      %p259 = scmp.ne.s32.totalorder %s247, %s248
      %p260 = scmp.eq.s32.totalorder %s23, 1
      %p261 = por %p259, %p260
      %p263 = scmp.ne.s32.totalorder %s248, %s262
      %p264 = scmp.eq.s32.totalorder %s23, 0
      %p265 = por %p263, %p264
      %s266 = ssub.s32 %s17, %s24
      %p267 = scmp.eq.s32.totalorder %s266, 0
      %s269 = sadd.s32 %s268, 1
      %s270 = scalar_select %p267, %s268, %s269
      %p273 = pneg %p267
      %p274 = scmp.eq.s32.totalorder %s17, 1
      %p275 = por %p273, %p274
      %p276 = scmp.ne.s32.totalorder %s268, %s271
      %p277 = scmp.eq.s32.totalorder %s17, 0
      %p278 = por %p276, %p277
      %p279 = scmp.ne.s32.totalorder %s268, %s271
      %p280 = scmp.eq.s32.totalorder %s22, 1
      %p281 = por %p279, %p280
      %p282 = scmp.ne.s32.totalorder %s271, %s272
      %p283 = scmp.eq.s32.totalorder %s22, 0
      %p284 = por %p282, %p283
      %p285 = scmp.ne.s32.totalorder %s271, %s272
      %p286 = scmp.eq.s32.totalorder %s23, 1
      %p287 = por %p285, %p286
      %p289 = scmp.ne.s32.totalorder %s272, %s288
      %p290 = scmp.eq.s32.totalorder %s23, 0
      %p291 = por %p289, %p290
      %p292 = scmp.le.s32.totalorder 1, %s17
      %p293 = scmp.lt.s32.totalorder %s17, 3
      %p294 = pnand %p292, %p293
      %p295 = pneg %p294
      // Predicated region
      $region9: #{ddpg_critic_forward.1} parent=5 // pred_check
        _
      $region10: #{ddpg_critic_forward.1} parent=5 // pred_check_branch
        %297 = sbr.rel (%p294) target = $region12
      $region11: #{ddpg_critic_forward.1} parent=5 // pred_region
        %s298 = ssub.s32 %s17, 1
        // Predicated region
        $region13: #{ddpg_critic_forward.1} parent=11 // pred_check
          %p299 = pneg %p90
        $region14: #{ddpg_critic_forward.1} parent=11 // pred_check_branch
          %301 = sbr.rel (%p299) target = $region16
        $region15: #{ddpg_critic_forward.1} parent=11 // pred_region
          _
        $region16: #{ddpg_critic_forward.1} parent=11 // pred_fallthru
          _
        // Predicated region
        $region17: #{ddpg_critic_forward.1} parent=11 // pred_check
          %p302 = pneg %p111
        $region18: #{ddpg_critic_forward.1} parent=11 // pred_check_branch
          %304 = sbr.rel (%p302) target = $region20
        $region19: #{ddpg_critic_forward.1} parent=11 // pred_region
          _
        $region20: #{ddpg_critic_forward.1} parent=11 // pred_fallthru
          _
        // Predicated region
        $region21: #{ddpg_critic_forward.1} parent=11 // pred_check
          %p305 = pneg %p132
        $region22: #{ddpg_critic_forward.1} parent=11 // pred_check_branch
          %307 = sbr.rel (%p305) target = $region24
        $region23: #{ddpg_critic_forward.1} parent=11 // pred_region
          _
        $region24: #{ddpg_critic_forward.1} parent=11 // pred_fallthru
          _
        // Predicated region
        $region25: #{ddpg_critic_forward.1} parent=11 // pred_check
          %p308 = pneg %p153
        $region26: #{ddpg_critic_forward.1} parent=11 // pred_check_branch
          %310 = sbr.rel (%p308) target = $region28
        $region27: #{ddpg_critic_forward.1} parent=11 // pred_region
          _
        $region28: #{ddpg_critic_forward.1} parent=11 // pred_fallthru
          _
        // Predicated region
        $region29: #{ddpg_critic_forward.1} parent=11 // pred_check
          %p311 = pneg %p174
        $region30: #{ddpg_critic_forward.1} parent=11 // pred_check_branch
          %313 = sbr.rel (%p311) target = $region32
        $region31: #{ddpg_critic_forward.1} parent=11 // pred_region
          _
        $region32: #{ddpg_critic_forward.1} parent=11 // pred_fallthru
          _
        // Predicated region
        $region33: #{ddpg_critic_forward.1} parent=11 // pred_check
          %p314 = pneg %p195
        $region34: #{ddpg_critic_forward.1} parent=11 // pred_check_branch
          %316 = sbr.rel (%p314) target = $region36
        $region35: #{ddpg_critic_forward.1} parent=11 // pred_region
          _
        $region36: #{ddpg_critic_forward.1} parent=11 // pred_fallthru
          _
        // Predicated region
        $region37: #{ddpg_critic_forward.1} parent=11 // pred_check
          %p317 = pneg %p216
        $region38: #{ddpg_critic_forward.1} parent=11 // pred_check_branch
          %319 = sbr.rel (%p317) target = $region40
        $region39: #{ddpg_critic_forward.1} parent=11 // pred_region
          _
        $region40: #{ddpg_critic_forward.1} parent=11 // pred_fallthru
          _
        // Predicated region
        $region41: #{ddpg_critic_forward.1} parent=11 // pred_check
          %p320 = pneg %p237
        $region42: #{ddpg_critic_forward.1} parent=11 // pred_check_branch
          %322 = sbr.rel (%p320) target = $region44
        $region43: #{ddpg_critic_forward.1} parent=11 // pred_region
          _
        $region44: #{ddpg_critic_forward.1} parent=11 // pred_fallthru
          _
        // Predicated region
        $region45: #{ddpg_critic_forward.1} parent=11 // pred_check
          %p323 = pneg %p258
        $region46: #{ddpg_critic_forward.1} parent=11 // pred_check_branch
          %325 = sbr.rel (%p323) target = $region48
        $region47: #{ddpg_critic_forward.1} parent=11 // pred_region
          _
        $region48: #{ddpg_critic_forward.1} parent=11 // pred_fallthru
          _
      $region12: #{ddpg_critic_forward.1} parent=5 // pred_fallthru
        _
      %p326 = scmp.lt.s32.totalorder %s17, 2
      // Predicated region
      $region49: #{ddpg_critic_forward.1} parent=5 // pred_check
        %p327 = pneg %p326
      $region50: #{ddpg_critic_forward.1} parent=5 // pred_check_branch
        %329 = sbr.rel (%p327) target = $region52
      $region51: #{ddpg_critic_forward.1} parent=5 // pred_region
        // Predicated region
        $region53: #{ddpg_critic_forward.1} parent=51 // pred_check
          %p330 = pneg %p37
        $region54: #{ddpg_critic_forward.1} parent=51 // pred_check_branch
          %332 = sbr.rel (%p330) target = $region56
        $region55: #{ddpg_critic_forward.1} parent=51 // pred_region
          %s333 = sand.u32 %s27, 1
          %s334 = sand.u32 %s27, 1
          %s335 = smul.addr %s334, 64
          %s336 = scalar_lea.vmem [#allocation2], %s335
          %s337 = smul.addr %s17, 4
          %s338 = scalar_lea.vmem %s0, %s337
          // Predicated region
          $region57: #{ddpg_critic_forward.1} parent=55 // pred_check
            _
          $region58: #{ddpg_critic_forward.1} parent=55 // pred_check_branch
            %340 = sbr.rel (0) target = $region60
          $region59: #{ddpg_critic_forward.1} parent=55 // pred_region
            // Predicated region
            $region61: #{ddpg_critic_forward.1} parent=59 // pred_check
              _
            $region62: #{ddpg_critic_forward.1} parent=59 // pred_check_branch
              %342 = sbr.rel target = $region64
            $region63: #{ddpg_critic_forward.1} parent=59 // pred_region
              // Predicated region
              $region76: #{ddpg_critic_forward.1} parent=63 // pred_check
                _
              $region77: #{ddpg_critic_forward.1} parent=63 // pred_check_branch
                %387 = sbr.rel (0) target = $region79
              $region78: #{ddpg_critic_forward.1} parent=63 // pred_region
                loop: start=0, step=1, limit=1
                $region80: #{ddpg_critic_forward.1} parent=78 // loop_pre_header
                  _
                $region81: #{ddpg_critic_forward.1} parent=78 // loop_header
                  %s389 = sphi 0, %s393
                  %p390 = scmp.ge.s32.totalorder %s389, 1
                  %s394 = sphi %s338, %s338
                  %s395 = sphi %s336, %s336
                $region82: #{ddpg_critic_forward.1} parent=78 // loop_header_branch
                  %392 = sbr.rel (%p390) target = $region86
                $region83: #{ddpg_critic_forward.1} parent=78 // loop_body
                  _
                $region84: #{ddpg_critic_forward.1} parent=78 // loop_footer
                  %s393 = sadd.s32 1, %s389
                $region85: #{ddpg_critic_forward.1} parent=78 // loop_footer_branch
                  %388 = sbr.rel target = $region81
                $region86: #{ddpg_critic_forward.1} parent=78 // loop_exit
                  _
                loop: start=0, step=1, limit=1
                $region87: #{ddpg_critic_forward.1} parent=78 // loop_pre_header
                  _
                $region88: #{ddpg_critic_forward.1} parent=78 // loop_header
                  %s398 = sphi 0, %s402
                  %p399 = scmp.ge.s32.totalorder %s398, 1
                  %s403 = sphi %s338, %s338
                  %s404 = sphi %s336, %s336
                $region89: #{ddpg_critic_forward.1} parent=78 // loop_header_branch
                  %401 = sbr.rel (%p399) target = $region93
                $region90: #{ddpg_critic_forward.1} parent=78 // loop_body
                  %v405 = vld [vmem:[%s403] sm:$0xf]
                  %406 = vst [vmem:[%s404] sm:$0xf] %v405
                  %v407 = vld [vmem:[%s403 + $0x8] sm:$0xf]
                  %408 = vst [vmem:[%s404 + $0x4] sm:$0xf] %v407
                  %v409 = vld [vmem:[%s403 + $0x10] sm:$0xf]
                  %410 = vst [vmem:[%s404 + $0x8] sm:$0xf] %v409
                  %v411 = vld [vmem:[%s403 + $0x18] sm:$0xf]
                  %412 = vst [vmem:[%s404 + $0xc] sm:$0xf] %v411
                  %v413 = vld [vmem:[%s403 + $0x20] sm:$0xf]
                  %414 = vst [vmem:[%s404 + $0x10] sm:$0xf] %v413
                  %v415 = vld [vmem:[%s403 + $0x28] sm:$0xf]
                  %416 = vst [vmem:[%s404 + $0x14] sm:$0xf] %v415
                  %v417 = vld [vmem:[%s403 + $0x30] sm:$0xf]
                  %418 = vst [vmem:[%s404 + $0x18] sm:$0xf] %v417
                  %v419 = vld [vmem:[%s403 + $0x38] sm:$0xf]
                  %420 = vst [vmem:[%s404 + $0x1c] sm:$0xf] %v419
                  %v421 = vld [vmem:[%s403 + $0x40] sm:$0xf]
                  %422 = vst [vmem:[%s404 + $0x20] sm:$0xf] %v421
                  %v423 = vld [vmem:[%s403 + $0x48] sm:$0xf]
                  %424 = vst [vmem:[%s404 + $0x24] sm:$0xf] %v423
                  %v425 = vld [vmem:[%s403 + $0x50] sm:$0xf]
                  %426 = vst [vmem:[%s404 + $0x28] sm:$0xf] %v425
                  %v427 = vld [vmem:[%s403 + $0x58] sm:$0xf]
                  %428 = vst [vmem:[%s404 + $0x2c] sm:$0xf] %v427
                  %v429 = vld [vmem:[%s403 + $0x60] sm:$0xf]
                  %430 = vst [vmem:[%s404 + $0x30] sm:$0xf] %v429
                  %v431 = vld [vmem:[%s403 + $0x68] sm:$0xf]
                  %432 = vst [vmem:[%s404 + $0x34] sm:$0xf] %v431
                  %v433 = vld [vmem:[%s403 + $0x70] sm:$0xf]
                  %434 = vst [vmem:[%s404 + $0x38] sm:$0xf] %v433
                  %v435 = vld [vmem:[%s403 + $0x78] sm:$0xf]
                  %436 = vst [vmem:[%s404 + $0x3c] sm:$0xf] %v435
                $region91: #{ddpg_critic_forward.1} parent=78 // loop_footer
                  %s402 = sadd.s32 1, %s398
                $region92: #{ddpg_critic_forward.1} parent=78 // loop_footer_branch
                  %397 = sbr.rel target = $region88
                $region93: #{ddpg_critic_forward.1} parent=78 // loop_exit
                  _
              $region79: #{ddpg_critic_forward.1} parent=63 // pred_fallthru
                _
            $region64: #{ddpg_critic_forward.1} parent=59 // pred_fallthru
              _
            // Predicated region
            $region65: #{ddpg_critic_forward.1} parent=59 // pred_check
              _
            $region66: #{ddpg_critic_forward.1} parent=59 // pred_check_branch
              %344 = sbr.rel (0) target = $region68
            $region67: #{ddpg_critic_forward.1} parent=59 // pred_region
              loop: start=0, step=1, limit=1
              $region69: #{ddpg_critic_forward.1} parent=67 // loop_pre_header
                _
              $region70: #{ddpg_critic_forward.1} parent=67 // loop_header
                %s347 = sphi 0, %s351
                %p348 = scmp.ge.s32.totalorder %s347, 1
                %s352 = sphi %s338, %s338
                %s353 = sphi %s336, %s336
              $region71: #{ddpg_critic_forward.1} parent=67 // loop_header_branch
                %350 = sbr.rel (%p348) target = $region75
              $region72: #{ddpg_critic_forward.1} parent=67 // loop_body
                %v354 = vld [vmem:[%s352] sm:$0xf]
                %355 = vst [vmem:[%s353] sm:$0xf] %v354
                %v356 = vld [vmem:[%s352 + $0x8] sm:$0xf]
                %357 = vst [vmem:[%s353 + $0x4] sm:$0xf] %v356
                %v358 = vld [vmem:[%s352 + $0x10] sm:$0xf]
                %359 = vst [vmem:[%s353 + $0x8] sm:$0xf] %v358
                %v360 = vld [vmem:[%s352 + $0x18] sm:$0xf]
                %361 = vst [vmem:[%s353 + $0xc] sm:$0xf] %v360
                %v362 = vld [vmem:[%s352 + $0x20] sm:$0xf]
                %363 = vst [vmem:[%s353 + $0x10] sm:$0xf] %v362
                %v364 = vld [vmem:[%s352 + $0x28] sm:$0xf]
                %365 = vst [vmem:[%s353 + $0x14] sm:$0xf] %v364
                %v366 = vld [vmem:[%s352 + $0x30] sm:$0xf]
                %367 = vst [vmem:[%s353 + $0x18] sm:$0xf] %v366
                %v368 = vld [vmem:[%s352 + $0x38] sm:$0xf]
                %369 = vst [vmem:[%s353 + $0x1c] sm:$0xf] %v368
                %v370 = vld [vmem:[%s352 + $0x40] sm:$0xf]
                %371 = vst [vmem:[%s353 + $0x20] sm:$0xf] %v370
                %v372 = vld [vmem:[%s352 + $0x48] sm:$0xf]
                %373 = vst [vmem:[%s353 + $0x24] sm:$0xf] %v372
                %v374 = vld [vmem:[%s352 + $0x50] sm:$0xf]
                %375 = vst [vmem:[%s353 + $0x28] sm:$0xf] %v374
                %v376 = vld [vmem:[%s352 + $0x58] sm:$0xf]
                %377 = vst [vmem:[%s353 + $0x2c] sm:$0xf] %v376
                %v378 = vld [vmem:[%s352 + $0x60] sm:$0xf]
                %379 = vst [vmem:[%s353 + $0x30] sm:$0xf] %v378
                %v380 = vld [vmem:[%s352 + $0x68] sm:$0xf]
                %381 = vst [vmem:[%s353 + $0x34] sm:$0xf] %v380
                %v382 = vld [vmem:[%s352 + $0x70] sm:$0xf]
                %383 = vst [vmem:[%s353 + $0x38] sm:$0xf] %v382
                %v384 = vld [vmem:[%s352 + $0x78] sm:$0xf]
                %385 = vst [vmem:[%s353 + $0x3c] sm:$0xf] %v384
              $region73: #{ddpg_critic_forward.1} parent=67 // loop_footer
                %s351 = sadd.s32 1, %s347
              $region74: #{ddpg_critic_forward.1} parent=67 // loop_footer_branch
                %346 = sbr.rel target = $region70
              $region75: #{ddpg_critic_forward.1} parent=67 // loop_exit
                _
            $region68: #{ddpg_critic_forward.1} parent=59 // pred_fallthru
              _
          $region60: #{ddpg_critic_forward.1} parent=55 // pred_fallthru
            _
          %437 = vnop
        $region56: #{ddpg_critic_forward.1} parent=51 // pred_fallthru
          _
        // Predicated region
        $region94: #{ddpg_critic_forward.1} parent=51 // pred_check
          %p438 = pneg %p63
        $region95: #{ddpg_critic_forward.1} parent=51 // pred_check_branch
          %440 = sbr.rel (%p438) target = $region97
        $region96: #{ddpg_critic_forward.1} parent=51 // pred_region
          %s441 = sand.u32 %s53, 1
          %s442 = sand.u32 %s53, 1
          %s443 = smul.addr %s442, 64
          %s444 = scalar_lea.vmem [#allocation3], %s443
          %s445 = smul.addr %s17, 4
          %s446 = scalar_lea.vmem %s1, %s445
          // Predicated region
          $region98: #{ddpg_critic_forward.1} parent=96 // pred_check
            _
          $region99: #{ddpg_critic_forward.1} parent=96 // pred_check_branch
            %448 = sbr.rel (0) target = $region101
          $region100: #{ddpg_critic_forward.1} parent=96 // pred_region
            // Predicated region
            $region102: #{ddpg_critic_forward.1} parent=100 // pred_check
              _
            $region103: #{ddpg_critic_forward.1} parent=100 // pred_check_branch
              %450 = sbr.rel target = $region105
            $region104: #{ddpg_critic_forward.1} parent=100 // pred_region
              // Predicated region
              $region117: #{ddpg_critic_forward.1} parent=104 // pred_check
                _
              $region118: #{ddpg_critic_forward.1} parent=104 // pred_check_branch
                %495 = sbr.rel (0) target = $region120
              $region119: #{ddpg_critic_forward.1} parent=104 // pred_region
                loop: start=0, step=1, limit=1
                $region121: #{ddpg_critic_forward.1} parent=119 // loop_pre_header
                  _
                $region122: #{ddpg_critic_forward.1} parent=119 // loop_header
                  %s497 = sphi 0, %s501
                  %p498 = scmp.ge.s32.totalorder %s497, 1
                  %s502 = sphi %s446, %s446
                  %s503 = sphi %s444, %s444
                $region123: #{ddpg_critic_forward.1} parent=119 // loop_header_branch
                  %500 = sbr.rel (%p498) target = $region127
                $region124: #{ddpg_critic_forward.1} parent=119 // loop_body
                  _
                $region125: #{ddpg_critic_forward.1} parent=119 // loop_footer
                  %s501 = sadd.s32 1, %s497
                $region126: #{ddpg_critic_forward.1} parent=119 // loop_footer_branch
                  %496 = sbr.rel target = $region122
                $region127: #{ddpg_critic_forward.1} parent=119 // loop_exit
                  _
                loop: start=0, step=1, limit=1
                $region128: #{ddpg_critic_forward.1} parent=119 // loop_pre_header
                  _
                $region129: #{ddpg_critic_forward.1} parent=119 // loop_header
                  %s506 = sphi 0, %s510
                  %p507 = scmp.ge.s32.totalorder %s506, 1
                  %s511 = sphi %s446, %s446
                  %s512 = sphi %s444, %s444
                $region130: #{ddpg_critic_forward.1} parent=119 // loop_header_branch
                  %509 = sbr.rel (%p507) target = $region134
                $region131: #{ddpg_critic_forward.1} parent=119 // loop_body
                  %v513 = vld [vmem:[%s511] sm:$0xf]
                  %514 = vst [vmem:[%s512] sm:$0xf] %v513
                  %v515 = vld [vmem:[%s511 + $0x8] sm:$0xf]
                  %516 = vst [vmem:[%s512 + $0x4] sm:$0xf] %v515
                  %v517 = vld [vmem:[%s511 + $0x10] sm:$0xf]
                  %518 = vst [vmem:[%s512 + $0x8] sm:$0xf] %v517
                  %v519 = vld [vmem:[%s511 + $0x18] sm:$0xf]
                  %520 = vst [vmem:[%s512 + $0xc] sm:$0xf] %v519
                  %v521 = vld [vmem:[%s511 + $0x20] sm:$0xf]
                  %522 = vst [vmem:[%s512 + $0x10] sm:$0xf] %v521
                  %v523 = vld [vmem:[%s511 + $0x28] sm:$0xf]
                  %524 = vst [vmem:[%s512 + $0x14] sm:$0xf] %v523
                  %v525 = vld [vmem:[%s511 + $0x30] sm:$0xf]
                  %526 = vst [vmem:[%s512 + $0x18] sm:$0xf] %v525
                  %v527 = vld [vmem:[%s511 + $0x38] sm:$0xf]
                  %528 = vst [vmem:[%s512 + $0x1c] sm:$0xf] %v527
                  %v529 = vld [vmem:[%s511 + $0x40] sm:$0xf]
                  %530 = vst [vmem:[%s512 + $0x20] sm:$0xf] %v529
                  %v531 = vld [vmem:[%s511 + $0x48] sm:$0xf]
                  %532 = vst [vmem:[%s512 + $0x24] sm:$0xf] %v531
                  %v533 = vld [vmem:[%s511 + $0x50] sm:$0xf]
                  %534 = vst [vmem:[%s512 + $0x28] sm:$0xf] %v533
                  %v535 = vld [vmem:[%s511 + $0x58] sm:$0xf]
                  %536 = vst [vmem:[%s512 + $0x2c] sm:$0xf] %v535
                  %v537 = vld [vmem:[%s511 + $0x60] sm:$0xf]
                  %538 = vst [vmem:[%s512 + $0x30] sm:$0xf] %v537
                  %v539 = vld [vmem:[%s511 + $0x68] sm:$0xf]
                  %540 = vst [vmem:[%s512 + $0x34] sm:$0xf] %v539
                  %v541 = vld [vmem:[%s511 + $0x70] sm:$0xf]
                  %542 = vst [vmem:[%s512 + $0x38] sm:$0xf] %v541
                  %v543 = vld [vmem:[%s511 + $0x78] sm:$0xf]
                  %544 = vst [vmem:[%s512 + $0x3c] sm:$0xf] %v543
                $region132: #{ddpg_critic_forward.1} parent=119 // loop_footer
                  %s510 = sadd.s32 1, %s506
                $region133: #{ddpg_critic_forward.1} parent=119 // loop_footer_branch
                  %505 = sbr.rel target = $region129
                $region134: #{ddpg_critic_forward.1} parent=119 // loop_exit
                  _
              $region120: #{ddpg_critic_forward.1} parent=104 // pred_fallthru
                _
            $region105: #{ddpg_critic_forward.1} parent=100 // pred_fallthru
              _
            // Predicated region
            $region106: #{ddpg_critic_forward.1} parent=100 // pred_check
              _
            $region107: #{ddpg_critic_forward.1} parent=100 // pred_check_branch
              %452 = sbr.rel (0) target = $region109
            $region108: #{ddpg_critic_forward.1} parent=100 // pred_region
              loop: start=0, step=1, limit=1
              $region110: #{ddpg_critic_forward.1} parent=108 // loop_pre_header
                _
              $region111: #{ddpg_critic_forward.1} parent=108 // loop_header
                %s455 = sphi 0, %s459
                %p456 = scmp.ge.s32.totalorder %s455, 1
                %s460 = sphi %s446, %s446
                %s461 = sphi %s444, %s444
              $region112: #{ddpg_critic_forward.1} parent=108 // loop_header_branch
                %458 = sbr.rel (%p456) target = $region116
              $region113: #{ddpg_critic_forward.1} parent=108 // loop_body
                %v462 = vld [vmem:[%s460] sm:$0xf]
                %463 = vst [vmem:[%s461] sm:$0xf] %v462
                %v464 = vld [vmem:[%s460 + $0x8] sm:$0xf]
                %465 = vst [vmem:[%s461 + $0x4] sm:$0xf] %v464
                %v466 = vld [vmem:[%s460 + $0x10] sm:$0xf]
                %467 = vst [vmem:[%s461 + $0x8] sm:$0xf] %v466
                %v468 = vld [vmem:[%s460 + $0x18] sm:$0xf]
                %469 = vst [vmem:[%s461 + $0xc] sm:$0xf] %v468
                %v470 = vld [vmem:[%s460 + $0x20] sm:$0xf]
                %471 = vst [vmem:[%s461 + $0x10] sm:$0xf] %v470
                %v472 = vld [vmem:[%s460 + $0x28] sm:$0xf]
                %473 = vst [vmem:[%s461 + $0x14] sm:$0xf] %v472
                %v474 = vld [vmem:[%s460 + $0x30] sm:$0xf]
                %475 = vst [vmem:[%s461 + $0x18] sm:$0xf] %v474
                %v476 = vld [vmem:[%s460 + $0x38] sm:$0xf]
                %477 = vst [vmem:[%s461 + $0x1c] sm:$0xf] %v476
                %v478 = vld [vmem:[%s460 + $0x40] sm:$0xf]
                %479 = vst [vmem:[%s461 + $0x20] sm:$0xf] %v478
                %v480 = vld [vmem:[%s460 + $0x48] sm:$0xf]
                %481 = vst [vmem:[%s461 + $0x24] sm:$0xf] %v480
                %v482 = vld [vmem:[%s460 + $0x50] sm:$0xf]
                %483 = vst [vmem:[%s461 + $0x28] sm:$0xf] %v482
                %v484 = vld [vmem:[%s460 + $0x58] sm:$0xf]
                %485 = vst [vmem:[%s461 + $0x2c] sm:$0xf] %v484
                %v486 = vld [vmem:[%s460 + $0x60] sm:$0xf]
                %487 = vst [vmem:[%s461 + $0x30] sm:$0xf] %v486
                %v488 = vld [vmem:[%s460 + $0x68] sm:$0xf]
                %489 = vst [vmem:[%s461 + $0x34] sm:$0xf] %v488
                %v490 = vld [vmem:[%s460 + $0x70] sm:$0xf]
                %491 = vst [vmem:[%s461 + $0x38] sm:$0xf] %v490
                %v492 = vld [vmem:[%s460 + $0x78] sm:$0xf]
                %493 = vst [vmem:[%s461 + $0x3c] sm:$0xf] %v492
              $region114: #{ddpg_critic_forward.1} parent=108 // loop_footer
                %s459 = sadd.s32 1, %s455
              $region115: #{ddpg_critic_forward.1} parent=108 // loop_footer_branch
                %454 = sbr.rel target = $region111
              $region116: #{ddpg_critic_forward.1} parent=108 // loop_exit
                _
            $region109: #{ddpg_critic_forward.1} parent=100 // pred_fallthru
              _
          $region101: #{ddpg_critic_forward.1} parent=96 // pred_fallthru
            _
          %545 = vnop
        $region97: #{ddpg_critic_forward.1} parent=51 // pred_fallthru
          _
      $region52: #{ddpg_critic_forward.1} parent=5 // pred_fallthru
        _
      %p546 = scmp.le.s32.totalorder 1, %s17
      %p547 = scmp.lt.s32.totalorder %s17, 3
      %p548 = pnand %p546, %p547
      %p549 = pneg %p548
      // Predicated region
      $region135: #{ddpg_critic_forward.1} parent=5 // pred_check
        _
      $region136: #{ddpg_critic_forward.1} parent=5 // pred_check_branch
        %551 = sbr.rel (%p548) target = $region138
      $region137: #{ddpg_critic_forward.1} parent=5 // pred_region
        %s552 = ssub.s32 %s17, 1
        %s553 = sand.u32 %s30, 1
        %s554 = sand.u32 %s30, 1
        %s555 = smul.addr %s554, 64
        %s556 = scalar_lea.vmem [#allocation2], %s555
        // Predicated region
        $region139: #{ddpg_critic_forward.1} parent=137 // pred_check
          %p557 = pneg %p43
        $region140: #{ddpg_critic_forward.1} parent=137 // pred_check_branch
          %559 = sbr.rel (%p557) target = $region142
        $region141: #{ddpg_critic_forward.1} parent=137 // pred_region
          _
        $region142: #{ddpg_critic_forward.1} parent=137 // pred_fallthru
          _
        %s560 = sand.u32 %s56, 1
        %s561 = sand.u32 %s56, 1
        %s562 = smul.addr %s561, 64
        %s563 = scalar_lea.vmem [#allocation3], %s562
        // Predicated region
        $region143: #{ddpg_critic_forward.1} parent=137 // pred_check
          %p564 = pneg %p69
        $region144: #{ddpg_critic_forward.1} parent=137 // pred_check_branch
          %566 = sbr.rel (%p564) target = $region146
        $region145: #{ddpg_critic_forward.1} parent=137 // pred_region
          _
        $region146: #{ddpg_critic_forward.1} parent=137 // pred_fallthru
          _
        %s567 = sand.u32 %s30, 1
        %s568 = sand.u32 %s30, 1
        %s569 = smul.addr %s568, 64
        %s570 = scalar_lea.vmem [#allocation2], %s569
        %p571 = pneg %p43
        %p572 = pneg %p40
        %s573 = sand.u32 %s56, 1
        %s574 = sand.u32 %s56, 1
        %s575 = smul.addr %s574, 64
        %s576 = scalar_lea.vmem [#allocation3], %s575
        %p577 = pneg %p69
        %p578 = pneg %p66
        %p579 = pneg %p90
        %p580 = pneg %p87
        %p581 = pneg %p111
        %p582 = pneg %p108
        %p583 = pneg %p132
        %p584 = pneg %p129
        %p585 = pneg %p153
        %p586 = pneg %p150
        %p587 = pneg %p174
        %p588 = pneg %p171
        %p589 = pneg %p195
        %p590 = pneg %p192
        %p591 = pneg %p216
        %p592 = pneg %p213
        %p593 = pneg %p237
        %p594 = pneg %p234
        %p595 = pneg %p258
        %p596 = pneg %p255
        %p597 = pneg %p284
        %p598 = pneg %p281
        %p599 = scmp.lt.s32.totalorder %s22, 1
        %s600 = scalar_select %p599, %s22, 1
        %s601 = smul.addr %s600, 8
        %s602 = scalar_lea.vmem %s11, %s601
        %p603 = scmp.lt.s32.totalorder %s22, 1
        %s604 = scalar_select %p603, %s22, 1
        %s605 = smul.addr %s604, 8
        %s606 = scalar_lea.vmem %s11, %s605
        %v608 = vld [vmem:[%s2] sm:$0xf]
        %v609 = vld [vmem:[%s2 + $0x4] sm:$0xf]
        %v610 = vld [vmem:[%s2 + $0x8] sm:$0xf]
        %v611 = vld [vmem:[%s2 + $0xc] sm:$0xf]
        %v612 = vld [vmem:[%s2 + $0x10] sm:$0xf]
        %v613 = vld [vmem:[%s2 + $0x14] sm:$0xf]
        %v614 = vld [vmem:[%s2 + $0x18] sm:$0xf]
        %v615 = vld [vmem:[%s2 + $0x1c] sm:$0xf]
        %v616 = vld [vmem:[%s2 + $0x20] sm:$0xf]
        %v617 = vld [vmem:[%s2 + $0x24] sm:$0xf]
        %v618 = vld [vmem:[%s2 + $0x28] sm:$0xf]
        %v619 = vld [vmem:[%s2 + $0x2c] sm:$0xf]
        %v620 = vld [vmem:[%s2 + $0x30] sm:$0xf]
        %v621 = vld [vmem:[%s2 + $0x34] sm:$0xf]
        %v622 = vld [vmem:[%s2 + $0x38] sm:$0xf]
        %v623 = vld [vmem:[%s2 + $0x3c] sm:$0xf]
        %v624 = vld [vmem:[%s2 + $0x40] sm:$0xf]
        %v625 = vld [vmem:[%s2 + $0x44] sm:$0xf]
        %v626 = vld [vmem:[%s2 + $0x48] sm:$0xf]
        %v627 = vld [vmem:[%s2 + $0x4c] sm:$0xf]
        %v628 = vld [vmem:[%s2 + $0x50] sm:$0xf]
        %v629 = vld [vmem:[%s2 + $0x54] sm:$0xf]
        %v630 = vld [vmem:[%s2 + $0x58] sm:$0xf]
        %v631 = vld [vmem:[%s2 + $0x5c] sm:$0xf]
        %v632 = vld [vmem:[%s2 + $0x60] sm:$0xf]
        %v633 = vld [vmem:[%s2 + $0x64] sm:$0xf]
        %v634 = vld [vmem:[%s2 + $0x68] sm:$0xf]
        %v635 = vld [vmem:[%s2 + $0x6c] sm:$0xf]
        %v636 = vld [vmem:[%s2 + $0x70] sm:$0xf]
        %v637 = vld [vmem:[%s2 + $0x74] sm:$0xf]
        %v638 = vld [vmem:[%s2 + $0x78] sm:$0xf]
        %v639 = vld [vmem:[%s2 + $0x7c] sm:$0xf]
        %v640 = vld [vmem:[%s556] sm:$0xf]
        %v641 = vld [vmem:[%s556 + $0x4] sm:$0xf]
        %v642 = vld [vmem:[%s556 + $0x8] sm:$0xf]
        %v643 = vld [vmem:[%s556 + $0xc] sm:$0xf]
        %v644 = vld [vmem:[%s556 + $0x10] sm:$0xf]
        %v645 = vld [vmem:[%s556 + $0x14] sm:$0xf]
        %v646 = vld [vmem:[%s556 + $0x18] sm:$0xf]
        %v647 = vld [vmem:[%s556 + $0x1c] sm:$0xf]
        %v648 = vld [vmem:[%s556 + $0x20] sm:$0xf]
        %v649 = vld [vmem:[%s556 + $0x24] sm:$0xf]
        %v650 = vld [vmem:[%s556 + $0x28] sm:$0xf]
        %v651 = vld [vmem:[%s556 + $0x2c] sm:$0xf]
        %v652 = vld [vmem:[%s556 + $0x30] sm:$0xf]
        %v653 = vld [vmem:[%s556 + $0x34] sm:$0xf]
        %v654 = vld [vmem:[%s556 + $0x38] sm:$0xf]
        %v655 = vld [vmem:[%s556 + $0x3c] sm:$0xf]
        %v656 = vld [vmem:[%s3] sm:$0xff]
        %v657 = vld [vmem:[%s3 + $0x8] sm:$0xff]
        %v658 = vld [vmem:[%s3 + $0x10] sm:$0xff]
        %v659 = vld [vmem:[%s3 + $0x18] sm:$0xff]
        %v660 = vld [vmem:[%s3 + $0x20] sm:$0xff]
        %v661 = vld [vmem:[%s3 + $0x28] sm:$0xff]
        %v662 = vld [vmem:[%s3 + $0x30] sm:$0xff]
        %v663 = vld [vmem:[%s3 + $0x38] sm:$0xff]
        %v664 = vld [vmem:[%s3 + $0x40] sm:$0xff]
        %v665 = vld [vmem:[%s3 + $0x48] sm:$0xff]
        %v666 = vld [vmem:[%s3 + $0x50] sm:$0xff]
        %v667 = vld [vmem:[%s3 + $0x58] sm:$0xff]
        %v668 = vld [vmem:[%s3 + $0x60] sm:$0xff]
        %v669 = vld [vmem:[%s3 + $0x68] sm:$0xff]
        %v670 = vld [vmem:[%s3 + $0x70] sm:$0xff]
        %v671 = vld [vmem:[%s3 + $0x78] sm:$0xff]
        %v672 = vld [vmem:[%s3 + $0x80] sm:$0xff]
        %v673 = vld [vmem:[%s3 + $0x88] sm:$0xff]
        %v674 = vld [vmem:[%s3 + $0x90] sm:$0xff]
        %v675 = vld [vmem:[%s3 + $0x98] sm:$0xff]
        %v676 = vld [vmem:[%s3 + $0xa0] sm:$0xff]
        %v677 = vld [vmem:[%s3 + $0xa8] sm:$0xff]
        %v678 = vld [vmem:[%s3 + $0xb0] sm:$0xff]
        %v679 = vld [vmem:[%s3 + $0xb8] sm:$0xff]
        %v680 = vld [vmem:[%s3 + $0xc0] sm:$0xff]
        %v681 = vld [vmem:[%s3 + $0xc8] sm:$0xff]
        %v682 = vld [vmem:[%s3 + $0xd0] sm:$0xff]
        %v683 = vld [vmem:[%s3 + $0xd8] sm:$0xff]
        %v684 = vld [vmem:[%s3 + $0xe0] sm:$0xff]
        %v685 = vld [vmem:[%s3 + $0xe8] sm:$0xff]
        %v686 = vld [vmem:[%s3 + $0xf0] sm:$0xff]
        %v687 = vld [vmem:[%s3 + $0xf8] sm:$0xff]
        %689 = vset.pattern.permute.xlu0 0
        %690 = vperm.xlu0 %689, %v656
        %v691 = vpop.permute.xlu0 %690
        %694 = vset.pattern.permute.xlu0 0
        %695 = vperm.xlu0 %694, %v657
        %v696 = vpop.permute.xlu0 %695
        %699 = vset.pattern.permute.xlu0 0
        %700 = vperm.xlu0 %699, %v658
        %v701 = vpop.permute.xlu0 %700
        %704 = vset.pattern.permute.xlu0 0
        %705 = vperm.xlu0 %704, %v659
        %v706 = vpop.permute.xlu0 %705
        %709 = vset.pattern.permute.xlu0 0
        %710 = vperm.xlu0 %709, %v660
        %v711 = vpop.permute.xlu0 %710
        %714 = vset.pattern.permute.xlu0 0
        %715 = vperm.xlu0 %714, %v661
        %v716 = vpop.permute.xlu0 %715
        %719 = vset.pattern.permute.xlu0 0
        %720 = vperm.xlu0 %719, %v662
        %v721 = vpop.permute.xlu0 %720
        %724 = vset.pattern.permute.xlu0 0
        %725 = vperm.xlu0 %724, %v663
        %v726 = vpop.permute.xlu0 %725
        %729 = vset.pattern.permute.xlu0 0
        %730 = vperm.xlu0 %729, %v664
        %v731 = vpop.permute.xlu0 %730
        %734 = vset.pattern.permute.xlu0 0
        %735 = vperm.xlu0 %734, %v665
        %v736 = vpop.permute.xlu0 %735
        %739 = vset.pattern.permute.xlu0 0
        %740 = vperm.xlu0 %739, %v666
        %v741 = vpop.permute.xlu0 %740
        %744 = vset.pattern.permute.xlu0 0
        %745 = vperm.xlu0 %744, %v667
        %v746 = vpop.permute.xlu0 %745
        %749 = vset.pattern.permute.xlu0 0
        %750 = vperm.xlu0 %749, %v668
        %v751 = vpop.permute.xlu0 %750
        %754 = vset.pattern.permute.xlu0 0
        %755 = vperm.xlu0 %754, %v669
        %v756 = vpop.permute.xlu0 %755
        %759 = vset.pattern.permute.xlu0 0
        %760 = vperm.xlu0 %759, %v670
        %v761 = vpop.permute.xlu0 %760
        %764 = vset.pattern.permute.xlu0 0
        %765 = vperm.xlu0 %764, %v671
        %v766 = vpop.permute.xlu0 %765
        %769 = vset.pattern.permute.xlu0 0
        %770 = vperm.xlu0 %769, %v672
        %v771 = vpop.permute.xlu0 %770
        %774 = vset.pattern.permute.xlu0 0
        %775 = vperm.xlu0 %774, %v673
        %v776 = vpop.permute.xlu0 %775
        %779 = vset.pattern.permute.xlu0 0
        %780 = vperm.xlu0 %779, %v674
        %v781 = vpop.permute.xlu0 %780
        %784 = vset.pattern.permute.xlu0 0
        %785 = vperm.xlu0 %784, %v675
        %v786 = vpop.permute.xlu0 %785
        %789 = vset.pattern.permute.xlu0 0
        %790 = vperm.xlu0 %789, %v676
        %v791 = vpop.permute.xlu0 %790
        %794 = vset.pattern.permute.xlu0 0
        %795 = vperm.xlu0 %794, %v677
        %v796 = vpop.permute.xlu0 %795
        %799 = vset.pattern.permute.xlu0 0
        %800 = vperm.xlu0 %799, %v678
        %v801 = vpop.permute.xlu0 %800
        %804 = vset.pattern.permute.xlu0 0
        %805 = vperm.xlu0 %804, %v679
        %v806 = vpop.permute.xlu0 %805
        %809 = vset.pattern.permute.xlu0 0
        %810 = vperm.xlu0 %809, %v680
        %v811 = vpop.permute.xlu0 %810
        %814 = vset.pattern.permute.xlu0 0
        %815 = vperm.xlu0 %814, %v681
        %v816 = vpop.permute.xlu0 %815
        %819 = vset.pattern.permute.xlu0 0
        %820 = vperm.xlu0 %819, %v682
        %v821 = vpop.permute.xlu0 %820
        %824 = vset.pattern.permute.xlu0 0
        %825 = vperm.xlu0 %824, %v683
        %v826 = vpop.permute.xlu0 %825
        %829 = vset.pattern.permute.xlu0 0
        %830 = vperm.xlu0 %829, %v684
        %v831 = vpop.permute.xlu0 %830
        %834 = vset.pattern.permute.xlu0 0
        %835 = vperm.xlu0 %834, %v685
        %v836 = vpop.permute.xlu0 %835
        %839 = vset.pattern.permute.xlu0 0
        %840 = vperm.xlu0 %839, %v686
        %v841 = vpop.permute.xlu0 %840
        %844 = vset.pattern.permute.xlu0 0
        %845 = vperm.xlu0 %844, %v687
        %v846 = vpop.permute.xlu0 %845
        %v880 = vunpack.c.l.b16 %v608
        %v881 = vunpack.c.l.b16 %v609
        %v882 = vunpack.c.l.b16 %v610
        %v883 = vunpack.c.l.b16 %v611
        %v884 = vunpack.c.l.b16 %v612
        %v885 = vunpack.c.l.b16 %v613
        %v886 = vunpack.c.l.b16 %v614
        %v887 = vunpack.c.l.b16 %v615
        %v888 = vunpack.c.l.b16 %v616
        %v889 = vunpack.c.l.b16 %v617
        %v890 = vunpack.c.l.b16 %v618
        %v891 = vunpack.c.l.b16 %v619
        %v892 = vunpack.c.l.b16 %v620
        %v893 = vunpack.c.l.b16 %v621
        %v894 = vunpack.c.l.b16 %v622
        %v895 = vunpack.c.l.b16 %v623
        %v896 = vunpack.c.l.b16 %v624
        %v897 = vunpack.c.l.b16 %v625
        %v898 = vunpack.c.l.b16 %v626
        %v899 = vunpack.c.l.b16 %v627
        %v900 = vunpack.c.l.b16 %v628
        %v901 = vunpack.c.l.b16 %v629
        %v902 = vunpack.c.l.b16 %v630
        %v903 = vunpack.c.l.b16 %v631
        %v904 = vunpack.c.l.b16 %v632
        %v905 = vunpack.c.l.b16 %v633
        %v906 = vunpack.c.l.b16 %v634
        %v907 = vunpack.c.l.b16 %v635
        %v908 = vunpack.c.l.b16 %v636
        %v909 = vunpack.c.l.b16 %v637
        %v910 = vunpack.c.l.b16 %v638
        %v911 = vunpack.c.l.b16 %v639
        %v912 = vpack.c.b16 %v881, %v880
        %v913 = vpack.c.b16 %v883, %v882
        %v914 = vpack.c.b16 %v885, %v884
        %v915 = vpack.c.b16 %v887, %v886
        %v916 = vpack.c.b16 %v889, %v888
        %v917 = vpack.c.b16 %v891, %v890
        %v918 = vpack.c.b16 %v893, %v892
        %v919 = vpack.c.b16 %v895, %v894
        %v920 = vpack.c.b16 %v897, %v896
        %v921 = vpack.c.b16 %v899, %v898
        %v922 = vpack.c.b16 %v901, %v900
        %v923 = vpack.c.b16 %v903, %v902
        %v924 = vpack.c.b16 %v905, %v904
        %v925 = vpack.c.b16 %v907, %v906
        %v926 = vpack.c.b16 %v909, %v908
        %v927 = vpack.c.b16 %v911, %v910
        %v960 = vunpack.c.l.b16 %v640
        %v961 = vunpack.c.l.b16 %v641
        %v962 = vunpack.c.l.b16 %v642
        %v963 = vunpack.c.l.b16 %v643
        %v964 = vunpack.c.l.b16 %v644
        %v965 = vunpack.c.l.b16 %v645
        %v966 = vunpack.c.l.b16 %v646
        %v967 = vunpack.c.l.b16 %v647
        %v968 = vunpack.c.l.b16 %v648
        %v969 = vunpack.c.l.b16 %v649
        %v970 = vunpack.c.l.b16 %v650
        %v971 = vunpack.c.l.b16 %v651
        %v972 = vunpack.c.l.b16 %v652
        %v973 = vunpack.c.l.b16 %v653
        %v974 = vunpack.c.l.b16 %v654
        %v975 = vunpack.c.l.b16 %v655
        %v976 = vpack.c.b16 %v961, %v960
        %v977 = vpack.c.b16 %v963, %v962
        %v978 = vpack.c.b16 %v965, %v964
        %v979 = vpack.c.b16 %v967, %v966
        %v980 = vpack.c.b16 %v969, %v968
        %v981 = vpack.c.b16 %v971, %v970
        %v982 = vpack.c.b16 %v973, %v972
        %v983 = vpack.c.b16 %v975, %v974
        %992 = vmatprep.subr.bf16.mxu0 0
        %993 = vmatpush1.bf16.msra.mxu0 %v976
        %994 = vmatprep.subr.bf16.mxu0 0
        %995 = vmatpush1.bf16.msra.mxu0 %v977
        %996 = vmatprep.subr.bf16.mxu0 0
        %997 = vmatpush1.bf16.msra.mxu0 %v978
        %998 = vmatprep.subr.bf16.mxu0 0
        %999 = vmatpush1.bf16.msra.mxu0 %v979
        %1000 = vmatprep.subr.bf16.mxu0 0
        %1001 = vmatpush1.bf16.msra.mxu0 %v980
        %1002 = vmatprep.subr.bf16.mxu0 0
        %1003 = vmatpush1.bf16.msra.mxu0 %v981
        %1004 = vmatprep.subr.bf16.mxu0 0
        %1005 = vmatpush1.bf16.msra.mxu0 %v982
        %1006 = vmatprep.subr.bf16.mxu0 0
        %1007 = vmatpush1.bf16.msra.mxu0 %v983
        %1008 = vmatprep.subr.bf16.mxu0 0
        %1009 = vmatpush1.bf16.msra.mxu0 0
        %1010 = vmatprep.subr.bf16.mxu0 0
        %1011 = vmatpush1.bf16.msra.mxu0 0
        %1012 = vmatprep.subr.bf16.mxu0 0
        %1013 = vmatpush1.bf16.msra.mxu0 0
        %1014 = vmatprep.subr.bf16.mxu0 0
        %1015 = vmatpush1.bf16.msra.mxu0 0
        %1016 = vmatprep.subr.bf16.mxu0 0
        %1017 = vmatpush1.bf16.msra.mxu0 0
        %1018 = vmatprep.subr.bf16.mxu0 0
        %1019 = vmatpush1.bf16.msra.mxu0 0
        %1020 = vmatprep.subr.bf16.mxu0 0
        %1021 = vmatpush1.bf16.msra.mxu0 0
        %1022 = vmatprep.subr.bf16.mxu0 0
        %1023 = vmatpush1.bf16.msra.mxu0 0
        %1024 = vmatprep.mubr.bf16.mxu0 0
        %1025 = vmatmul.mubr.bf16.gmra.mrb[0].mxu0 %v912
        %v1026 = vpop.f32.mrb[0].mxu0
        %v1027 = vadd.f32 %v691, %v1026
        %v1028 = vpop.f32.mrb[0].mxu0
        %v1029 = vpop.f32.mrb[0].mxu0
        %v1030 = vadd.f32 %v696, %v1029
        %v1031 = vpop.f32.mrb[0].mxu0
        %1032 = vmatprep.mubr.bf16.mxu0 0
        %1033 = vmatmul.mubr.bf16.gmra.mrb[0].mxu0 %v913
        %v1034 = vpop.f32.mrb[0].mxu0
        %v1035 = vadd.f32 %v701, %v1034
        %v1036 = vpop.f32.mrb[0].mxu0
        %v1037 = vpop.f32.mrb[0].mxu0
        %v1038 = vadd.f32 %v706, %v1037
        %v1039 = vpop.f32.mrb[0].mxu0
        %1040 = vmatprep.mubr.bf16.mxu0 0
        %1041 = vmatmul.mubr.bf16.gmra.mrb[0].mxu0 %v914
        %v1042 = vpop.f32.mrb[0].mxu0
        %v1043 = vadd.f32 %v711, %v1042
        %v1044 = vpop.f32.mrb[0].mxu0
        %v1045 = vpop.f32.mrb[0].mxu0
        %v1046 = vadd.f32 %v716, %v1045
        %v1047 = vpop.f32.mrb[0].mxu0
        %1048 = vmatprep.mubr.bf16.mxu0 0
        %1049 = vmatmul.mubr.bf16.gmra.mrb[0].mxu0 %v915
        %v1050 = vpop.f32.mrb[0].mxu0
        %v1051 = vadd.f32 %v721, %v1050
        %v1052 = vpop.f32.mrb[0].mxu0
        %v1053 = vpop.f32.mrb[0].mxu0
        %v1054 = vadd.f32 %v726, %v1053
        %v1055 = vpop.f32.mrb[0].mxu0
        %1056 = vmatprep.mubr.bf16.mxu0 0
        %1057 = vmatmul.mubr.bf16.gmra.mrb[0].mxu0 %v916
        %v1058 = vpop.f32.mrb[0].mxu0
        %v1059 = vadd.f32 %v731, %v1058
        %v1060 = vpop.f32.mrb[0].mxu0
        %v1061 = vpop.f32.mrb[0].mxu0
        %v1062 = vadd.f32 %v736, %v1061
        %v1063 = vpop.f32.mrb[0].mxu0
        %1064 = vmatprep.mubr.bf16.mxu0 0
        %1065 = vmatmul.mubr.bf16.gmra.mrb[0].mxu0 %v917
        %v1066 = vpop.f32.mrb[0].mxu0
        %v1067 = vadd.f32 %v741, %v1066
        %v1068 = vpop.f32.mrb[0].mxu0
        %v1069 = vpop.f32.mrb[0].mxu0
        %v1070 = vadd.f32 %v746, %v1069
        %v1071 = vpop.f32.mrb[0].mxu0
        %1072 = vmatprep.mubr.bf16.mxu0 0
        %1073 = vmatmul.mubr.bf16.gmra.mrb[0].mxu0 %v918
        %v1074 = vpop.f32.mrb[0].mxu0
        %v1075 = vadd.f32 %v751, %v1074
        %v1076 = vpop.f32.mrb[0].mxu0
        %v1077 = vpop.f32.mrb[0].mxu0
        %v1078 = vadd.f32 %v756, %v1077
        %v1079 = vpop.f32.mrb[0].mxu0
        %1080 = vmatprep.mubr.bf16.mxu0 0
        %1081 = vmatmul.mubr.bf16.gmra.mrb[0].mxu0 %v919
        %v1082 = vpop.f32.mrb[0].mxu0
        %v1083 = vadd.f32 %v761, %v1082
        %v1084 = vpop.f32.mrb[0].mxu0
        %v1085 = vpop.f32.mrb[0].mxu0
        %v1086 = vadd.f32 %v766, %v1085
        %v1087 = vpop.f32.mrb[0].mxu0
        %1088 = vmatprep.mubr.bf16.mxu0 0
        %1089 = vmatmul.mubr.bf16.gmra.mrb[0].mxu0 %v920
        %v1090 = vpop.f32.mrb[0].mxu0
        %v1091 = vadd.f32 %v771, %v1090
        %v1092 = vpop.f32.mrb[0].mxu0
        %v1093 = vpop.f32.mrb[0].mxu0
        %v1094 = vadd.f32 %v776, %v1093
        %v1095 = vpop.f32.mrb[0].mxu0
        %1096 = vmatprep.mubr.bf16.mxu0 0
        %1097 = vmatmul.mubr.bf16.gmra.mrb[0].mxu0 %v921
        %v1098 = vpop.f32.mrb[0].mxu0
        %v1099 = vadd.f32 %v781, %v1098
        %v1100 = vpop.f32.mrb[0].mxu0
        %v1101 = vpop.f32.mrb[0].mxu0
        %v1102 = vadd.f32 %v786, %v1101
        %v1103 = vpop.f32.mrb[0].mxu0
        %1104 = vmatprep.mubr.bf16.mxu0 0
        %1105 = vmatmul.mubr.bf16.gmra.mrb[0].mxu0 %v922
        %v1106 = vpop.f32.mrb[0].mxu0
        %v1107 = vadd.f32 %v791, %v1106
        %v1108 = vpop.f32.mrb[0].mxu0
        %v1109 = vpop.f32.mrb[0].mxu0
        %v1110 = vadd.f32 %v796, %v1109
        %v1111 = vpop.f32.mrb[0].mxu0
        %1112 = vmatprep.mubr.bf16.mxu0 0
        %1113 = vmatmul.mubr.bf16.gmra.mrb[0].mxu0 %v923
        %v1114 = vpop.f32.mrb[0].mxu0
        %v1115 = vadd.f32 %v801, %v1114
        %v1116 = vpop.f32.mrb[0].mxu0
        %v1117 = vpop.f32.mrb[0].mxu0
        %v1118 = vadd.f32 %v806, %v1117
        %v1119 = vpop.f32.mrb[0].mxu0
        %1120 = vmatprep.mubr.bf16.mxu0 0
        %1121 = vmatmul.mubr.bf16.gmra.mrb[0].mxu0 %v924
        %v1122 = vpop.f32.mrb[0].mxu0
        %v1123 = vadd.f32 %v811, %v1122
        %v1124 = vpop.f32.mrb[0].mxu0
        %v1125 = vpop.f32.mrb[0].mxu0
        %v1126 = vadd.f32 %v816, %v1125
        %v1127 = vpop.f32.mrb[0].mxu0
        %1128 = vmatprep.mubr.bf16.mxu0 0
        %1129 = vmatmul.mubr.bf16.gmra.mrb[0].mxu0 %v925
        %v1130 = vpop.f32.mrb[0].mxu0
        %v1131 = vadd.f32 %v821, %v1130
        %v1132 = vpop.f32.mrb[0].mxu0
        %v1133 = vpop.f32.mrb[0].mxu0
        %v1134 = vadd.f32 %v826, %v1133
        %v1135 = vpop.f32.mrb[0].mxu0
        %1136 = vmatprep.mubr.bf16.mxu0 0
        %1137 = vmatmul.mubr.bf16.gmra.mrb[0].mxu0 %v926
        %v1138 = vpop.f32.mrb[0].mxu0
        %v1139 = vadd.f32 %v831, %v1138
        %v1140 = vpop.f32.mrb[0].mxu0
        %v1141 = vpop.f32.mrb[0].mxu0
        %v1142 = vadd.f32 %v836, %v1141
        %v1143 = vpop.f32.mrb[0].mxu0
        %1144 = vmatprep.mubr.bf16.mxu0 0
        %1145 = vmatmul.mubr.bf16.gmra.mrb[0].mxu0 %v927
        %v1146 = vpop.f32.mrb[0].mxu0
        %v1147 = vadd.f32 %v841, %v1146
        %v1148 = vpop.f32.mrb[0].mxu0
        %v1149 = vpop.f32.mrb[0].mxu0
        %v1150 = vadd.f32 %v846, %v1149
        %v1151 = vpop.f32.mrb[0].mxu0
        %1152 = vdwg.mxu0
        %v1153 = vmax.f32 %v1027, 0.0
        %v1154 = vmax.f32 %v1030, 0.0
        %v1155 = vmax.f32 %v1035, 0.0
        %v1156 = vmax.f32 %v1038, 0.0
        %v1157 = vmax.f32 %v1043, 0.0
        %v1158 = vmax.f32 %v1046, 0.0
        %v1159 = vmax.f32 %v1051, 0.0
        %v1160 = vmax.f32 %v1054, 0.0
        %v1161 = vmax.f32 %v1059, 0.0
        %v1162 = vmax.f32 %v1062, 0.0
        %v1163 = vmax.f32 %v1067, 0.0
        %v1164 = vmax.f32 %v1070, 0.0
        %v1165 = vmax.f32 %v1075, 0.0
        %v1166 = vmax.f32 %v1078, 0.0
        %v1167 = vmax.f32 %v1083, 0.0
        %v1168 = vmax.f32 %v1086, 0.0
        %v1169 = vmax.f32 %v1091, 0.0
        %v1170 = vmax.f32 %v1094, 0.0
        %v1171 = vmax.f32 %v1099, 0.0
        %v1172 = vmax.f32 %v1102, 0.0
        %v1173 = vmax.f32 %v1107, 0.0
        %v1174 = vmax.f32 %v1110, 0.0
        %v1175 = vmax.f32 %v1115, 0.0
        %v1176 = vmax.f32 %v1118, 0.0
        %v1177 = vmax.f32 %v1123, 0.0
        %v1178 = vmax.f32 %v1126, 0.0
        %v1179 = vmax.f32 %v1131, 0.0
        %v1180 = vmax.f32 %v1134, 0.0
        %v1181 = vmax.f32 %v1139, 0.0
        %v1182 = vmax.f32 %v1142, 0.0
        %v1183 = vmax.f32 %v1147, 0.0
        %v1184 = vmax.f32 %v1150, 0.0
        %v1185 = vld [vmem:[%s4] sm:$0xff]
        %v1186 = vld [vmem:[%s4 + $0x8] sm:$0xff]
        %v1187 = vld [vmem:[%s4 + $0x10] sm:$0xff]
        %v1188 = vld [vmem:[%s4 + $0x18] sm:$0xff]
        %v1189 = vld [vmem:[%s4 + $0x20] sm:$0xff]
        %v1190 = vld [vmem:[%s4 + $0x28] sm:$0xff]
        %v1191 = vld [vmem:[%s4 + $0x30] sm:$0xff]
        %v1192 = vld [vmem:[%s4 + $0x38] sm:$0xff]
        %v1193 = vld [vmem:[%s4 + $0x40] sm:$0xff]
        %v1194 = vld [vmem:[%s4 + $0x48] sm:$0xff]
        %v1195 = vld [vmem:[%s4 + $0x50] sm:$0xff]
        %v1196 = vld [vmem:[%s4 + $0x58] sm:$0xff]
        %v1197 = vld [vmem:[%s4 + $0x60] sm:$0xff]
        %v1198 = vld [vmem:[%s4 + $0x68] sm:$0xff]
        %v1199 = vld [vmem:[%s4 + $0x70] sm:$0xff]
        %v1200 = vld [vmem:[%s4 + $0x78] sm:$0xff]
        %v1201 = vld [vmem:[%s4 + $0x80] sm:$0xff]
        %v1202 = vld [vmem:[%s4 + $0x88] sm:$0xff]
        %v1203 = vld [vmem:[%s4 + $0x90] sm:$0xff]
        %v1204 = vld [vmem:[%s4 + $0x98] sm:$0xff]
        %v1205 = vld [vmem:[%s4 + $0xa0] sm:$0xff]
        %v1206 = vld [vmem:[%s4 + $0xa8] sm:$0xff]
        %v1207 = vld [vmem:[%s4 + $0xb0] sm:$0xff]
        %v1208 = vld [vmem:[%s4 + $0xb8] sm:$0xff]
        %v1209 = vld [vmem:[%s4 + $0xc0] sm:$0xff]
        %v1210 = vld [vmem:[%s4 + $0xc8] sm:$0xff]
        %v1211 = vld [vmem:[%s4 + $0xd0] sm:$0xff]
        %v1212 = vld [vmem:[%s4 + $0xd8] sm:$0xff]
        %v1213 = vld [vmem:[%s4 + $0xe0] sm:$0xff]
        %v1214 = vld [vmem:[%s4 + $0xe8] sm:$0xff]
        %v1215 = vld [vmem:[%s4 + $0xf0] sm:$0xff]
        %v1216 = vld [vmem:[%s4 + $0xf8] sm:$0xff]
        %v1217 = vld [vmem:[%s4 + $0x100] sm:$0xff]
        %v1218 = vld [vmem:[%s4 + $0x108] sm:$0xff]
        %v1219 = vld [vmem:[%s4 + $0x110] sm:$0xff]
        %v1220 = vld [vmem:[%s4 + $0x118] sm:$0xff]
        %v1221 = vld [vmem:[%s4 + $0x120] sm:$0xff]
        %v1222 = vld [vmem:[%s4 + $0x128] sm:$0xff]
        %v1223 = vld [vmem:[%s4 + $0x130] sm:$0xff]
        %v1224 = vld [vmem:[%s4 + $0x138] sm:$0xff]
        %v1225 = vld [vmem:[%s4 + $0x140] sm:$0xff]
        %v1226 = vld [vmem:[%s4 + $0x148] sm:$0xff]
        %v1227 = vld [vmem:[%s4 + $0x150] sm:$0xff]
        %v1228 = vld [vmem:[%s4 + $0x158] sm:$0xff]
        %v1229 = vld [vmem:[%s4 + $0x160] sm:$0xff]
        %v1230 = vld [vmem:[%s4 + $0x168] sm:$0xff]
        %v1231 = vld [vmem:[%s4 + $0x170] sm:$0xff]
        %v1232 = vld [vmem:[%s4 + $0x178] sm:$0xff]
        %v1233 = vld [vmem:[%s4 + $0x180] sm:$0xff]
        %v1234 = vld [vmem:[%s4 + $0x188] sm:$0xff]
        %v1235 = vld [vmem:[%s4 + $0x190] sm:$0xff]
        %v1236 = vld [vmem:[%s4 + $0x198] sm:$0xff]
        %v1237 = vld [vmem:[%s4 + $0x1a0] sm:$0xff]
        %v1238 = vld [vmem:[%s4 + $0x1a8] sm:$0xff]
        %v1239 = vld [vmem:[%s4 + $0x1b0] sm:$0xff]
        %v1240 = vld [vmem:[%s4 + $0x1b8] sm:$0xff]
        %v1241 = vld [vmem:[%s4 + $0x1c0] sm:$0xff]
        %v1242 = vld [vmem:[%s4 + $0x1c8] sm:$0xff]
        %v1243 = vld [vmem:[%s4 + $0x1d0] sm:$0xff]
        %v1244 = vld [vmem:[%s4 + $0x1d8] sm:$0xff]
        %v1245 = vld [vmem:[%s4 + $0x1e0] sm:$0xff]
        %v1246 = vld [vmem:[%s4 + $0x1e8] sm:$0xff]
        %v1247 = vld [vmem:[%s4 + $0x1f0] sm:$0xff]
        %v1248 = vld [vmem:[%s4 + $0x1f8] sm:$0xff]
        %v1249 = vpack.c.bf16 %v1154, %v1153
        %v1250 = vpack.c.bf16 %v1156, %v1155
        %v1251 = vpack.c.bf16 %v1158, %v1157
        %v1252 = vpack.c.bf16 %v1160, %v1159
        %v1253 = vpack.c.bf16 %v1162, %v1161
        %v1254 = vpack.c.bf16 %v1164, %v1163
        %v1255 = vpack.c.bf16 %v1166, %v1165
        %v1256 = vpack.c.bf16 %v1168, %v1167
        %v1257 = vpack.c.bf16 %v1170, %v1169
        %v1258 = vpack.c.bf16 %v1172, %v1171
        %v1259 = vpack.c.bf16 %v1174, %v1173
        %v1260 = vpack.c.bf16 %v1176, %v1175
        %v1261 = vpack.c.bf16 %v1178, %v1177
        %v1262 = vpack.c.bf16 %v1180, %v1179
        %v1263 = vpack.c.bf16 %v1182, %v1181
        %v1264 = vpack.c.bf16 %v1184, %v1183
        %v1265 = vld [vmem:[%s5] sm:$0xff]
        %v1266 = vld [vmem:[%s5 + $0x8] sm:$0xff]
        %v1267 = vld [vmem:[%s5 + $0x10] sm:$0xff]
        %v1268 = vld [vmem:[%s5 + $0x18] sm:$0xff]
        %v1269 = vld [vmem:[%s5 + $0x20] sm:$0xff]
        %v1270 = vld [vmem:[%s5 + $0x28] sm:$0xff]
        %v1271 = vld [vmem:[%s5 + $0x30] sm:$0xff]
        %v1272 = vld [vmem:[%s5 + $0x38] sm:$0xff]
        %v1273 = vld [vmem:[%s5 + $0x40] sm:$0xff]
        %v1274 = vld [vmem:[%s5 + $0x48] sm:$0xff]
        %v1275 = vld [vmem:[%s5 + $0x50] sm:$0xff]
        %v1276 = vld [vmem:[%s5 + $0x58] sm:$0xff]
        %v1277 = vld [vmem:[%s5 + $0x60] sm:$0xff]
        %v1278 = vld [vmem:[%s5 + $0x68] sm:$0xff]
        %v1279 = vld [vmem:[%s5 + $0x70] sm:$0xff]
        %v1280 = vld [vmem:[%s5 + $0x78] sm:$0xff]
        %v1281 = vld [vmem:[%s5 + $0x80] sm:$0xff]
        %v1282 = vld [vmem:[%s5 + $0x88] sm:$0xff]
        %v1283 = vld [vmem:[%s5 + $0x90] sm:$0xff]
        %v1284 = vld [vmem:[%s5 + $0x98] sm:$0xff]
        %v1285 = vld [vmem:[%s5 + $0xa0] sm:$0xff]
        %v1286 = vld [vmem:[%s5 + $0xa8] sm:$0xff]
        %v1287 = vld [vmem:[%s5 + $0xb0] sm:$0xff]
        %v1288 = vld [vmem:[%s5 + $0xb8] sm:$0xff]
        %v1289 = vld [vmem:[%s5 + $0xc0] sm:$0xff]
        %v1290 = vld [vmem:[%s5 + $0xc8] sm:$0xff]
        %v1291 = vld [vmem:[%s5 + $0xd0] sm:$0xff]
        %v1292 = vld [vmem:[%s5 + $0xd8] sm:$0xff]
        %v1293 = vld [vmem:[%s5 + $0xe0] sm:$0xff]
        %v1294 = vld [vmem:[%s5 + $0xe8] sm:$0xff]
        %v1295 = vld [vmem:[%s5 + $0xf0] sm:$0xff]
        %v1296 = vld [vmem:[%s5 + $0xf8] sm:$0xff]
        %v1297 = vld [vmem:[%s5 + $0x100] sm:$0xff]
        %v1298 = vld [vmem:[%s5 + $0x108] sm:$0xff]
        %v1299 = vld [vmem:[%s5 + $0x110] sm:$0xff]
        %v1300 = vld [vmem:[%s5 + $0x118] sm:$0xff]
        %v1301 = vld [vmem:[%s5 + $0x120] sm:$0xff]
        %v1302 = vld [vmem:[%s5 + $0x128] sm:$0xff]
        %v1303 = vld [vmem:[%s5 + $0x130] sm:$0xff]
        %v1304 = vld [vmem:[%s5 + $0x138] sm:$0xff]
        %v1305 = vld [vmem:[%s5 + $0x140] sm:$0xff]
        %v1306 = vld [vmem:[%s5 + $0x148] sm:$0xff]
        %v1307 = vld [vmem:[%s5 + $0x150] sm:$0xff]
        %v1308 = vld [vmem:[%s5 + $0x158] sm:$0xff]
        %v1309 = vld [vmem:[%s5 + $0x160] sm:$0xff]
        %v1310 = vld [vmem:[%s5 + $0x168] sm:$0xff]
        %v1311 = vld [vmem:[%s5 + $0x170] sm:$0xff]
        %v1312 = vld [vmem:[%s5 + $0x178] sm:$0xff]
        %v1313 = vld [vmem:[%s5 + $0x180] sm:$0xff]
        %v1314 = vld [vmem:[%s5 + $0x188] sm:$0xff]
        %v1315 = vld [vmem:[%s5 + $0x190] sm:$0xff]
        %v1316 = vld [vmem:[%s5 + $0x198] sm:$0xff]
        %v1317 = vld [vmem:[%s5 + $0x1a0] sm:$0xff]
        %v1318 = vld [vmem:[%s5 + $0x1a8] sm:$0xff]
        %v1319 = vld [vmem:[%s5 + $0x1b0] sm:$0xff]
        %v1320 = vld [vmem:[%s5 + $0x1b8] sm:$0xff]
        %v1321 = vld [vmem:[%s5 + $0x1c0] sm:$0xff]
        %v1322 = vld [vmem:[%s5 + $0x1c8] sm:$0xff]
        %v1323 = vld [vmem:[%s5 + $0x1d0] sm:$0xff]
        %v1324 = vld [vmem:[%s5 + $0x1d8] sm:$0xff]
        %v1325 = vld [vmem:[%s5 + $0x1e0] sm:$0xff]
        %v1326 = vld [vmem:[%s5 + $0x1e8] sm:$0xff]
        %v1327 = vld [vmem:[%s5 + $0x1f0] sm:$0xff]
        %v1328 = vld [vmem:[%s5 + $0x1f8] sm:$0xff]
        %1330 = vset.pattern.permute.xlu0 0
        %1331 = vperm.xlu0 %1330, %v1265
        %v1332 = vpop.permute.xlu0 %1331
        %1335 = vset.pattern.permute.xlu0 0
        %1336 = vperm.xlu0 %1335, %v1266
        %v1337 = vpop.permute.xlu0 %1336
        %1340 = vset.pattern.permute.xlu0 0
        %1341 = vperm.xlu0 %1340, %v1267
        %v1342 = vpop.permute.xlu0 %1341
        %1345 = vset.pattern.permute.xlu0 0
        %1346 = vperm.xlu0 %1345, %v1268
        %v1347 = vpop.permute.xlu0 %1346
        %1350 = vset.pattern.permute.xlu0 0
        %1351 = vperm.xlu0 %1350, %v1269
        %v1352 = vpop.permute.xlu0 %1351
        %1355 = vset.pattern.permute.xlu0 0
        %1356 = vperm.xlu0 %1355, %v1270
        %v1357 = vpop.permute.xlu0 %1356
        %1360 = vset.pattern.permute.xlu0 0
        %1361 = vperm.xlu0 %1360, %v1271
        %v1362 = vpop.permute.xlu0 %1361
        %1365 = vset.pattern.permute.xlu0 0
        %1366 = vperm.xlu0 %1365, %v1272
        %v1367 = vpop.permute.xlu0 %1366
        %1370 = vset.pattern.permute.xlu0 0
        %1371 = vperm.xlu0 %1370, %v1273
        %v1372 = vpop.permute.xlu0 %1371
        %1375 = vset.pattern.permute.xlu0 0
        %1376 = vperm.xlu0 %1375, %v1274
        %v1377 = vpop.permute.xlu0 %1376
        %1380 = vset.pattern.permute.xlu0 0
        %1381 = vperm.xlu0 %1380, %v1275
        %v1382 = vpop.permute.xlu0 %1381
        %1385 = vset.pattern.permute.xlu0 0
        %1386 = vperm.xlu0 %1385, %v1276
        %v1387 = vpop.permute.xlu0 %1386
        %1390 = vset.pattern.permute.xlu0 0
        %1391 = vperm.xlu0 %1390, %v1277
        %v1392 = vpop.permute.xlu0 %1391
        %1395 = vset.pattern.permute.xlu0 0
        %1396 = vperm.xlu0 %1395, %v1278
        %v1397 = vpop.permute.xlu0 %1396
        %1400 = vset.pattern.permute.xlu0 0
        %1401 = vperm.xlu0 %1400, %v1279
        %v1402 = vpop.permute.xlu0 %1401
        %1405 = vset.pattern.permute.xlu0 0
        %1406 = vperm.xlu0 %1405, %v1280
        %v1407 = vpop.permute.xlu0 %1406
        %1410 = vset.pattern.permute.xlu0 0
        %1411 = vperm.xlu0 %1410, %v1281
        %v1412 = vpop.permute.xlu0 %1411
        %1415 = vset.pattern.permute.xlu0 0
        %1416 = vperm.xlu0 %1415, %v1282
        %v1417 = vpop.permute.xlu0 %1416
        %1420 = vset.pattern.permute.xlu0 0
        %1421 = vperm.xlu0 %1420, %v1283
        %v1422 = vpop.permute.xlu0 %1421
        %1425 = vset.pattern.permute.xlu0 0
        %1426 = vperm.xlu0 %1425, %v1284
        %v1427 = vpop.permute.xlu0 %1426
        %1430 = vset.pattern.permute.xlu0 0
        %1431 = vperm.xlu0 %1430, %v1285
        %v1432 = vpop.permute.xlu0 %1431
        %1435 = vset.pattern.permute.xlu0 0
        %1436 = vperm.xlu0 %1435, %v1286
        %v1437 = vpop.permute.xlu0 %1436
        %1440 = vset.pattern.permute.xlu0 0
        %1441 = vperm.xlu0 %1440, %v1287
        %v1442 = vpop.permute.xlu0 %1441
        %1445 = vset.pattern.permute.xlu0 0
        %1446 = vperm.xlu0 %1445, %v1288
        %v1447 = vpop.permute.xlu0 %1446
        %1450 = vset.pattern.permute.xlu0 0
        %1451 = vperm.xlu0 %1450, %v1289
        %v1452 = vpop.permute.xlu0 %1451
        %1455 = vset.pattern.permute.xlu0 0
        %1456 = vperm.xlu0 %1455, %v1290
        %v1457 = vpop.permute.xlu0 %1456
        %1460 = vset.pattern.permute.xlu0 0
        %1461 = vperm.xlu0 %1460, %v1291
        %v1462 = vpop.permute.xlu0 %1461
        %1465 = vset.pattern.permute.xlu0 0
        %1466 = vperm.xlu0 %1465, %v1292
        %v1467 = vpop.permute.xlu0 %1466
        %1470 = vset.pattern.permute.xlu0 0
        %1471 = vperm.xlu0 %1470, %v1293
        %v1472 = vpop.permute.xlu0 %1471
        %1475 = vset.pattern.permute.xlu0 0
        %1476 = vperm.xlu0 %1475, %v1294
        %v1477 = vpop.permute.xlu0 %1476
        %1480 = vset.pattern.permute.xlu0 0
        %1481 = vperm.xlu0 %1480, %v1295
        %v1482 = vpop.permute.xlu0 %1481
        %1485 = vset.pattern.permute.xlu0 0
        %1486 = vperm.xlu0 %1485, %v1296
        %v1487 = vpop.permute.xlu0 %1486
        %1490 = vset.pattern.permute.xlu0 0
        %1491 = vperm.xlu0 %1490, %v1297
        %v1492 = vpop.permute.xlu0 %1491
        %1495 = vset.pattern.permute.xlu0 0
        %1496 = vperm.xlu0 %1495, %v1298
        %v1497 = vpop.permute.xlu0 %1496
        %1500 = vset.pattern.permute.xlu0 0
        %1501 = vperm.xlu0 %1500, %v1299
        %v1502 = vpop.permute.xlu0 %1501
        %1505 = vset.pattern.permute.xlu0 0
        %1506 = vperm.xlu0 %1505, %v1300
        %v1507 = vpop.permute.xlu0 %1506
        %1510 = vset.pattern.permute.xlu0 0
        %1511 = vperm.xlu0 %1510, %v1301
        %v1512 = vpop.permute.xlu0 %1511
        %1515 = vset.pattern.permute.xlu0 0
        %1516 = vperm.xlu0 %1515, %v1302
        %v1517 = vpop.permute.xlu0 %1516
        %1520 = vset.pattern.permute.xlu0 0
        %1521 = vperm.xlu0 %1520, %v1303
        %v1522 = vpop.permute.xlu0 %1521
        %1525 = vset.pattern.permute.xlu0 0
        %1526 = vperm.xlu0 %1525, %v1304
        %v1527 = vpop.permute.xlu0 %1526
        %1530 = vset.pattern.permute.xlu0 0
        %1531 = vperm.xlu0 %1530, %v1305
        %v1532 = vpop.permute.xlu0 %1531
        %1535 = vset.pattern.permute.xlu0 0
        %1536 = vperm.xlu0 %1535, %v1306
        %v1537 = vpop.permute.xlu0 %1536
        %1540 = vset.pattern.permute.xlu0 0
        %1541 = vperm.xlu0 %1540, %v1307
        %v1542 = vpop.permute.xlu0 %1541
        %1545 = vset.pattern.permute.xlu0 0
        %1546 = vperm.xlu0 %1545, %v1308
        %v1547 = vpop.permute.xlu0 %1546
        %1550 = vset.pattern.permute.xlu0 0
        %1551 = vperm.xlu0 %1550, %v1309
        %v1552 = vpop.permute.xlu0 %1551
        %1555 = vset.pattern.permute.xlu0 0
        %1556 = vperm.xlu0 %1555, %v1310
        %v1557 = vpop.permute.xlu0 %1556
        %1560 = vset.pattern.permute.xlu0 0
        %1561 = vperm.xlu0 %1560, %v1311
        %v1562 = vpop.permute.xlu0 %1561
        %1565 = vset.pattern.permute.xlu0 0
        %1566 = vperm.xlu0 %1565, %v1312
        %v1567 = vpop.permute.xlu0 %1566
        %1570 = vset.pattern.permute.xlu0 0
        %1571 = vperm.xlu0 %1570, %v1313
        %v1572 = vpop.permute.xlu0 %1571
        %1575 = vset.pattern.permute.xlu0 0
        %1576 = vperm.xlu0 %1575, %v1314
        %v1577 = vpop.permute.xlu0 %1576
        %1580 = vset.pattern.permute.xlu0 0
        %1581 = vperm.xlu0 %1580, %v1315
        %v1582 = vpop.permute.xlu0 %1581
        %1585 = vset.pattern.permute.xlu0 0
        %1586 = vperm.xlu0 %1585, %v1316
        %v1587 = vpop.permute.xlu0 %1586
        %1590 = vset.pattern.permute.xlu0 0
        %1591 = vperm.xlu0 %1590, %v1317
        %v1592 = vpop.permute.xlu0 %1591
        %1595 = vset.pattern.permute.xlu0 0
        %1596 = vperm.xlu0 %1595, %v1318
        %v1597 = vpop.permute.xlu0 %1596
        %1600 = vset.pattern.permute.xlu0 0
        %1601 = vperm.xlu0 %1600, %v1319
        %v1602 = vpop.permute.xlu0 %1601
        %1605 = vset.pattern.permute.xlu0 0
        %1606 = vperm.xlu0 %1605, %v1320
        %v1607 = vpop.permute.xlu0 %1606
        %1610 = vset.pattern.permute.xlu0 0
        %1611 = vperm.xlu0 %1610, %v1321
        %v1612 = vpop.permute.xlu0 %1611
        %1615 = vset.pattern.permute.xlu0 0
        %1616 = vperm.xlu0 %1615, %v1322
        %v1617 = vpop.permute.xlu0 %1616
        %1620 = vset.pattern.permute.xlu0 0
        %1621 = vperm.xlu0 %1620, %v1323
        %v1622 = vpop.permute.xlu0 %1621
        %1625 = vset.pattern.permute.xlu0 0
        %1626 = vperm.xlu0 %1625, %v1324
        %v1627 = vpop.permute.xlu0 %1626
        %1630 = vset.pattern.permute.xlu0 0
        %1631 = vperm.xlu0 %1630, %v1325
        %v1632 = vpop.permute.xlu0 %1631
        %1635 = vset.pattern.permute.xlu0 0
        %1636 = vperm.xlu0 %1635, %v1326
        %v1637 = vpop.permute.xlu0 %1636
        %1640 = vset.pattern.permute.xlu0 0
        %1641 = vperm.xlu0 %1640, %v1327
        %v1642 = vpop.permute.xlu0 %1641
        %1645 = vset.pattern.permute.xlu0 0
        %1646 = vperm.xlu0 %1645, %v1328
        %v1647 = vpop.permute.xlu0 %1646
        %v1713 = vunpack.c.l.b16 %v1185
        %v1714 = vunpack.c.h.b16 %v1185
        %v1715 = vunpack.c.l.b16 %v1186
        %v1716 = vunpack.c.h.b16 %v1186
        %v1717 = vunpack.c.l.b16 %v1187
        %v1718 = vunpack.c.h.b16 %v1187
        %v1719 = vunpack.c.l.b16 %v1188
        %v1720 = vunpack.c.h.b16 %v1188
        %v1721 = vunpack.c.l.b16 %v1189
        %v1722 = vunpack.c.h.b16 %v1189
        %v1723 = vunpack.c.l.b16 %v1190
        %v1724 = vunpack.c.h.b16 %v1190
        %v1725 = vunpack.c.l.b16 %v1191
        %v1726 = vunpack.c.h.b16 %v1191
        %v1727 = vunpack.c.l.b16 %v1192
        %v1728 = vunpack.c.h.b16 %v1192
        %v1729 = vunpack.c.l.b16 %v1193
        %v1730 = vunpack.c.h.b16 %v1193
        %v1731 = vunpack.c.l.b16 %v1194
        %v1732 = vunpack.c.h.b16 %v1194
        %v1733 = vunpack.c.l.b16 %v1195
        %v1734 = vunpack.c.h.b16 %v1195
        %v1735 = vunpack.c.l.b16 %v1196
        %v1736 = vunpack.c.h.b16 %v1196
        %v1737 = vunpack.c.l.b16 %v1197
        %v1738 = vunpack.c.h.b16 %v1197
        %v1739 = vunpack.c.l.b16 %v1198
        %v1740 = vunpack.c.h.b16 %v1198
        %v1741 = vunpack.c.l.b16 %v1199
        %v1742 = vunpack.c.h.b16 %v1199
        %v1743 = vunpack.c.l.b16 %v1200
        %v1744 = vunpack.c.h.b16 %v1200
        %v1745 = vunpack.c.l.b16 %v1201
        %v1746 = vunpack.c.h.b16 %v1201
        %v1747 = vunpack.c.l.b16 %v1202
        %v1748 = vunpack.c.h.b16 %v1202
        %v1749 = vunpack.c.l.b16 %v1203
        %v1750 = vunpack.c.h.b16 %v1203
        %v1751 = vunpack.c.l.b16 %v1204
        %v1752 = vunpack.c.h.b16 %v1204
        %v1753 = vunpack.c.l.b16 %v1205
        %v1754 = vunpack.c.h.b16 %v1205
        %v1755 = vunpack.c.l.b16 %v1206
        %v1756 = vunpack.c.h.b16 %v1206
        %v1757 = vunpack.c.l.b16 %v1207
        %v1758 = vunpack.c.h.b16 %v1207
        %v1759 = vunpack.c.l.b16 %v1208
        %v1760 = vunpack.c.h.b16 %v1208
        %v1761 = vunpack.c.l.b16 %v1209
        %v1762 = vunpack.c.h.b16 %v1209
        %v1763 = vunpack.c.l.b16 %v1210
        %v1764 = vunpack.c.h.b16 %v1210
        %v1765 = vunpack.c.l.b16 %v1211
        %v1766 = vunpack.c.h.b16 %v1211
        %v1767 = vunpack.c.l.b16 %v1212
        %v1768 = vunpack.c.h.b16 %v1212
        %v1769 = vunpack.c.l.b16 %v1213
        %v1770 = vunpack.c.h.b16 %v1213
        %v1771 = vunpack.c.l.b16 %v1214
        %v1772 = vunpack.c.h.b16 %v1214
        %v1773 = vunpack.c.l.b16 %v1215
        %v1774 = vunpack.c.h.b16 %v1215
        %v1775 = vunpack.c.l.b16 %v1216
        %v1776 = vunpack.c.h.b16 %v1216
        %v1777 = vunpack.c.l.b16 %v1217
        %v1778 = vunpack.c.h.b16 %v1217
        %v1779 = vunpack.c.l.b16 %v1218
        %v1780 = vunpack.c.h.b16 %v1218
        %v1781 = vunpack.c.l.b16 %v1219
        %v1782 = vunpack.c.h.b16 %v1219
        %v1783 = vunpack.c.l.b16 %v1220
        %v1784 = vunpack.c.h.b16 %v1220
        %v1785 = vunpack.c.l.b16 %v1221
        %v1786 = vunpack.c.h.b16 %v1221
        %v1787 = vunpack.c.l.b16 %v1222
        %v1788 = vunpack.c.h.b16 %v1222
        %v1789 = vunpack.c.l.b16 %v1223
        %v1790 = vunpack.c.h.b16 %v1223
        %v1791 = vunpack.c.l.b16 %v1224
        %v1792 = vunpack.c.h.b16 %v1224
        %v1793 = vunpack.c.l.b16 %v1225
        %v1794 = vunpack.c.h.b16 %v1225
        %v1795 = vunpack.c.l.b16 %v1226
        %v1796 = vunpack.c.h.b16 %v1226
        %v1797 = vunpack.c.l.b16 %v1227
        %v1798 = vunpack.c.h.b16 %v1227
        %v1799 = vunpack.c.l.b16 %v1228
        %v1800 = vunpack.c.h.b16 %v1228
        %v1801 = vunpack.c.l.b16 %v1229
        %v1802 = vunpack.c.h.b16 %v1229
        %v1803 = vunpack.c.l.b16 %v1230
        %v1804 = vunpack.c.h.b16 %v1230
        %v1805 = vunpack.c.l.b16 %v1231
        %v1806 = vunpack.c.h.b16 %v1231
        %v1807 = vunpack.c.l.b16 %v1232
        %v1808 = vunpack.c.h.b16 %v1232
        %v1809 = vunpack.c.l.b16 %v1233
        %v1810 = vunpack.c.h.b16 %v1233
        %v1811 = vunpack.c.l.b16 %v1234
        %v1812 = vunpack.c.h.b16 %v1234
        %v1813 = vunpack.c.l.b16 %v1235
        %v1814 = vunpack.c.h.b16 %v1235
        %v1815 = vunpack.c.l.b16 %v1236
        %v1816 = vunpack.c.h.b16 %v1236
        %v1817 = vunpack.c.l.b16 %v1237
        %v1818 = vunpack.c.h.b16 %v1237
        %v1819 = vunpack.c.l.b16 %v1238
        %v1820 = vunpack.c.h.b16 %v1238
        %v1821 = vunpack.c.l.b16 %v1239
        %v1822 = vunpack.c.h.b16 %v1239
        %v1823 = vunpack.c.l.b16 %v1240
        %v1824 = vunpack.c.h.b16 %v1240
        %v1825 = vunpack.c.l.b16 %v1241
        %v1826 = vunpack.c.h.b16 %v1241
        %v1827 = vunpack.c.l.b16 %v1242
        %v1828 = vunpack.c.h.b16 %v1242
        %v1829 = vunpack.c.l.b16 %v1243
        %v1830 = vunpack.c.h.b16 %v1243
        %v1831 = vunpack.c.l.b16 %v1244
        %v1832 = vunpack.c.h.b16 %v1244
        %v1833 = vunpack.c.l.b16 %v1245
        %v1834 = vunpack.c.h.b16 %v1245
        %v1835 = vunpack.c.l.b16 %v1246
        %v1836 = vunpack.c.h.b16 %v1246
        %v1837 = vunpack.c.l.b16 %v1247
        %v1838 = vunpack.c.h.b16 %v1247
        %v1839 = vunpack.c.l.b16 %v1248
        %v1840 = vunpack.c.h.b16 %v1248
        %v1841 = vpack.c.b16 %v1715, %v1713
        %v1842 = vpack.c.b16 %v1716, %v1714
        %v1843 = vpack.c.b16 %v1719, %v1717
        %v1844 = vpack.c.b16 %v1720, %v1718
        %v1845 = vpack.c.b16 %v1723, %v1721
        %v1846 = vpack.c.b16 %v1724, %v1722
        %v1847 = vpack.c.b16 %v1727, %v1725
        %v1848 = vpack.c.b16 %v1728, %v1726
        %v1849 = vpack.c.b16 %v1731, %v1729
        %v1850 = vpack.c.b16 %v1732, %v1730
        %v1851 = vpack.c.b16 %v1735, %v1733
        %v1852 = vpack.c.b16 %v1736, %v1734
        %v1853 = vpack.c.b16 %v1739, %v1737
        %v1854 = vpack.c.b16 %v1740, %v1738
        %v1855 = vpack.c.b16 %v1743, %v1741
        %v1856 = vpack.c.b16 %v1744, %v1742
        %v1857 = vpack.c.b16 %v1747, %v1745
        %v1858 = vpack.c.b16 %v1748, %v1746
        %v1859 = vpack.c.b16 %v1751, %v1749
        %v1860 = vpack.c.b16 %v1752, %v1750
        %v1861 = vpack.c.b16 %v1755, %v1753
        %v1862 = vpack.c.b16 %v1756, %v1754
        %v1863 = vpack.c.b16 %v1759, %v1757
        %v1864 = vpack.c.b16 %v1760, %v1758
        %v1865 = vpack.c.b16 %v1763, %v1761
        %v1866 = vpack.c.b16 %v1764, %v1762
        %v1867 = vpack.c.b16 %v1767, %v1765
        %v1868 = vpack.c.b16 %v1768, %v1766
        %v1869 = vpack.c.b16 %v1771, %v1769
        %v1870 = vpack.c.b16 %v1772, %v1770
        %v1871 = vpack.c.b16 %v1775, %v1773
        %v1872 = vpack.c.b16 %v1776, %v1774
        %v1873 = vpack.c.b16 %v1779, %v1777
        %v1874 = vpack.c.b16 %v1780, %v1778
        %v1875 = vpack.c.b16 %v1783, %v1781
        %v1876 = vpack.c.b16 %v1784, %v1782
        %v1877 = vpack.c.b16 %v1787, %v1785
        %v1878 = vpack.c.b16 %v1788, %v1786
        %v1879 = vpack.c.b16 %v1791, %v1789
        %v1880 = vpack.c.b16 %v1792, %v1790
        %v1881 = vpack.c.b16 %v1795, %v1793
        %v1882 = vpack.c.b16 %v1796, %v1794
        %v1883 = vpack.c.b16 %v1799, %v1797
        %v1884 = vpack.c.b16 %v1800, %v1798
        %v1885 = vpack.c.b16 %v1803, %v1801
        %v1886 = vpack.c.b16 %v1804, %v1802
        %v1887 = vpack.c.b16 %v1807, %v1805
        %v1888 = vpack.c.b16 %v1808, %v1806
        %v1889 = vpack.c.b16 %v1811, %v1809
        %v1890 = vpack.c.b16 %v1812, %v1810
        %v1891 = vpack.c.b16 %v1815, %v1813
        %v1892 = vpack.c.b16 %v1816, %v1814
        %v1893 = vpack.c.b16 %v1819, %v1817
        %v1894 = vpack.c.b16 %v1820, %v1818
        %v1895 = vpack.c.b16 %v1823, %v1821
        %v1896 = vpack.c.b16 %v1824, %v1822
        %v1897 = vpack.c.b16 %v1827, %v1825
        %v1898 = vpack.c.b16 %v1828, %v1826
        %v1899 = vpack.c.b16 %v1831, %v1829
        %v1900 = vpack.c.b16 %v1832, %v1830
        %v1901 = vpack.c.b16 %v1835, %v1833
        %v1902 = vpack.c.b16 %v1836, %v1834
        %v1903 = vpack.c.b16 %v1839, %v1837
        %v1904 = vpack.c.b16 %v1840, %v1838
        %1969 = vmatprep.subr.bf16.mxu0 0
        %1970 = vmatpush1.bf16.msra.mxu0 %v1249
        %1971 = vmatprep.subr.bf16.mxu0 0
        %1972 = vmatpush1.bf16.msra.mxu0 %v1250
        %1973 = vmatprep.subr.bf16.mxu0 0
        %1974 = vmatpush1.bf16.msra.mxu0 %v1251
        %1975 = vmatprep.subr.bf16.mxu0 0
        %1976 = vmatpush1.bf16.msra.mxu0 %v1252
        %1977 = vmatprep.subr.bf16.mxu0 0
        %1978 = vmatpush1.bf16.msra.mxu0 %v1253
        %1979 = vmatprep.subr.bf16.mxu0 0
        %1980 = vmatpush1.bf16.msra.mxu0 %v1254
        %1981 = vmatprep.subr.bf16.mxu0 0
        %1982 = vmatpush1.bf16.msra.mxu0 %v1255
        %1983 = vmatprep.subr.bf16.mxu0 0
        %1984 = vmatpush1.bf16.msra.mxu0 %v1256
        %1985 = vmatprep.subr.bf16.mxu0 0
        %1986 = vmatpush1.bf16.msra.mxu0 %v1257
        %1987 = vmatprep.subr.bf16.mxu0 0
        %1988 = vmatpush1.bf16.msra.mxu0 %v1258
        %1989 = vmatprep.subr.bf16.mxu0 0
        %1990 = vmatpush1.bf16.msra.mxu0 %v1259
        %1991 = vmatprep.subr.bf16.mxu0 0
        %1992 = vmatpush1.bf16.msra.mxu0 %v1260
        %1993 = vmatprep.subr.bf16.mxu0 0
        %1994 = vmatpush1.bf16.msra.mxu0 %v1261
        %1995 = vmatprep.subr.bf16.mxu0 0
        %1996 = vmatpush1.bf16.msra.mxu0 %v1262
        %1997 = vmatprep.subr.bf16.mxu0 0
        %1998 = vmatpush1.bf16.msra.mxu0 %v1263
        %1999 = vmatprep.subr.bf16.mxu0 0
        %2000 = vmatpush1.bf16.msra.mxu0 %v1264
        %2001 = vmatprep.mubr.bf16.mxu0 %v1842
        %2002 = vmatmul.mubr.bf16.gmra.mrb[0].mxu0 %v1841
        %v2003 = vpop.f32.mrb[0].mxu0
        %v2004 = vadd.f32 %v1332, %v2003
        %v2005 = vpop.f32.mrb[0].mxu0
        %v2006 = vpop.f32.mrb[0].mxu0
        %v2007 = vadd.f32 %v1337, %v2006
        %v2008 = vpop.f32.mrb[0].mxu0
        %2009 = vmatprep.mubr.bf16.mxu0 %v1844
        %2010 = vmatmul.mubr.bf16.gmra.mrb[0].mxu0 %v1843
        %v2011 = vpop.f32.mrb[0].mxu0
        %v2012 = vadd.f32 %v1342, %v2011
        %v2013 = vpop.f32.mrb[0].mxu0
        %v2014 = vpop.f32.mrb[0].mxu0
        %v2015 = vadd.f32 %v1347, %v2014
        %v2016 = vpop.f32.mrb[0].mxu0
        %2017 = vmatprep.mubr.bf16.mxu0 %v1846
        %2018 = vmatmul.mubr.bf16.gmra.mrb[0].mxu0 %v1845
        %v2019 = vpop.f32.mrb[0].mxu0
        %v2020 = vadd.f32 %v1352, %v2019
        %v2021 = vpop.f32.mrb[0].mxu0
        %v2022 = vpop.f32.mrb[0].mxu0
        %v2023 = vadd.f32 %v1357, %v2022
        %v2024 = vpop.f32.mrb[0].mxu0
        %2025 = vmatprep.mubr.bf16.mxu0 %v1848
        %2026 = vmatmul.mubr.bf16.gmra.mrb[0].mxu0 %v1847
        %v2027 = vpop.f32.mrb[0].mxu0
        %v2028 = vadd.f32 %v1362, %v2027
        %v2029 = vpop.f32.mrb[0].mxu0
        %v2030 = vpop.f32.mrb[0].mxu0
        %v2031 = vadd.f32 %v1367, %v2030
        %v2032 = vpop.f32.mrb[0].mxu0
        %2033 = vmatprep.mubr.bf16.mxu0 %v1850
        %2034 = vmatmul.mubr.bf16.gmra.mrb[0].mxu0 %v1849
        %v2035 = vpop.f32.mrb[0].mxu0
        %v2036 = vadd.f32 %v1372, %v2035
        %v2037 = vpop.f32.mrb[0].mxu0
        %v2038 = vpop.f32.mrb[0].mxu0
        %v2039 = vadd.f32 %v1377, %v2038
        %v2040 = vpop.f32.mrb[0].mxu0
        %2041 = vmatprep.mubr.bf16.mxu0 %v1852
        %2042 = vmatmul.mubr.bf16.gmra.mrb[0].mxu0 %v1851
        %v2043 = vpop.f32.mrb[0].mxu0
        %v2044 = vadd.f32 %v1382, %v2043
        %v2045 = vpop.f32.mrb[0].mxu0
        %v2046 = vpop.f32.mrb[0].mxu0
        %v2047 = vadd.f32 %v1387, %v2046
        %v2048 = vpop.f32.mrb[0].mxu0
        %2049 = vmatprep.mubr.bf16.mxu0 %v1854
        %2050 = vmatmul.mubr.bf16.gmra.mrb[0].mxu0 %v1853
        %v2051 = vpop.f32.mrb[0].mxu0
        %v2052 = vadd.f32 %v1392, %v2051
        %v2053 = vpop.f32.mrb[0].mxu0
        %v2054 = vpop.f32.mrb[0].mxu0
        %v2055 = vadd.f32 %v1397, %v2054
        %v2056 = vpop.f32.mrb[0].mxu0
        %2057 = vmatprep.mubr.bf16.mxu0 %v1856
        %2058 = vmatmul.mubr.bf16.gmra.mrb[0].mxu0 %v1855
        %v2059 = vpop.f32.mrb[0].mxu0
        %v2060 = vadd.f32 %v1402, %v2059
        %v2061 = vpop.f32.mrb[0].mxu0
        %v2062 = vpop.f32.mrb[0].mxu0
        %v2063 = vadd.f32 %v1407, %v2062
        %v2064 = vpop.f32.mrb[0].mxu0
        %2065 = vmatprep.mubr.bf16.mxu0 %v1858
        %2066 = vmatmul.mubr.bf16.gmra.mrb[0].mxu0 %v1857
        %v2067 = vpop.f32.mrb[0].mxu0
        %v2068 = vadd.f32 %v1412, %v2067
        %v2069 = vpop.f32.mrb[0].mxu0
        %v2070 = vpop.f32.mrb[0].mxu0
        %v2071 = vadd.f32 %v1417, %v2070
        %v2072 = vpop.f32.mrb[0].mxu0
        %2073 = vmatprep.mubr.bf16.mxu0 %v1860
        %2074 = vmatmul.mubr.bf16.gmra.mrb[0].mxu0 %v1859
        %v2075 = vpop.f32.mrb[0].mxu0
        %v2076 = vadd.f32 %v1422, %v2075
        %v2077 = vpop.f32.mrb[0].mxu0
        %v2078 = vpop.f32.mrb[0].mxu0
        %v2079 = vadd.f32 %v1427, %v2078
        %v2080 = vpop.f32.mrb[0].mxu0
        %2081 = vmatprep.mubr.bf16.mxu0 %v1862
        %2082 = vmatmul.mubr.bf16.gmra.mrb[0].mxu0 %v1861
        %v2083 = vpop.f32.mrb[0].mxu0
        %v2084 = vadd.f32 %v1432, %v2083
        %v2085 = vpop.f32.mrb[0].mxu0
        %v2086 = vpop.f32.mrb[0].mxu0
        %v2087 = vadd.f32 %v1437, %v2086
        %v2088 = vpop.f32.mrb[0].mxu0
        %2089 = vmatprep.mubr.bf16.mxu0 %v1864
        %2090 = vmatmul.mubr.bf16.gmra.mrb[0].mxu0 %v1863
        %v2091 = vpop.f32.mrb[0].mxu0
        %v2092 = vadd.f32 %v1442, %v2091
        %v2093 = vpop.f32.mrb[0].mxu0
        %v2094 = vpop.f32.mrb[0].mxu0
        %v2095 = vadd.f32 %v1447, %v2094
        %v2096 = vpop.f32.mrb[0].mxu0
        %2097 = vmatprep.mubr.bf16.mxu0 %v1866
        %2098 = vmatmul.mubr.bf16.gmra.mrb[0].mxu0 %v1865
        %v2099 = vpop.f32.mrb[0].mxu0
        %v2100 = vadd.f32 %v1452, %v2099
        %v2101 = vpop.f32.mrb[0].mxu0
        %v2102 = vpop.f32.mrb[0].mxu0
        %v2103 = vadd.f32 %v1457, %v2102
        %v2104 = vpop.f32.mrb[0].mxu0
        %2105 = vmatprep.mubr.bf16.mxu0 %v1868
        %2106 = vmatmul.mubr.bf16.gmra.mrb[0].mxu0 %v1867
        %v2107 = vpop.f32.mrb[0].mxu0
        %v2108 = vadd.f32 %v1462, %v2107
        %v2109 = vpop.f32.mrb[0].mxu0
        %v2110 = vpop.f32.mrb[0].mxu0
        %v2111 = vadd.f32 %v1467, %v2110
        %v2112 = vpop.f32.mrb[0].mxu0
        %2113 = vmatprep.mubr.bf16.mxu0 %v1870
        %2114 = vmatmul.mubr.bf16.gmra.mrb[0].mxu0 %v1869
        %v2115 = vpop.f32.mrb[0].mxu0
        %v2116 = vadd.f32 %v1472, %v2115
        %v2117 = vpop.f32.mrb[0].mxu0
        %v2118 = vpop.f32.mrb[0].mxu0
        %v2119 = vadd.f32 %v1477, %v2118
        %v2120 = vpop.f32.mrb[0].mxu0
        %2121 = vmatprep.mubr.bf16.mxu0 %v1872
        %2122 = vmatmul.mubr.bf16.gmra.mrb[0].mxu0 %v1871
        %v2123 = vpop.f32.mrb[0].mxu0
        %v2124 = vadd.f32 %v1482, %v2123
        %v2125 = vpop.f32.mrb[0].mxu0
        %v2126 = vpop.f32.mrb[0].mxu0
        %v2127 = vadd.f32 %v1487, %v2126
        %v2128 = vpop.f32.mrb[0].mxu0
        %2129 = vmatprep.mubr.bf16.mxu0 %v1874
        %2130 = vmatmul.mubr.bf16.gmra.mrb[0].mxu0 %v1873
        %v2131 = vpop.f32.mrb[0].mxu0
        %v2132 = vadd.f32 %v1492, %v2131
        %v2133 = vpop.f32.mrb[0].mxu0
        %v2134 = vpop.f32.mrb[0].mxu0
        %v2135 = vadd.f32 %v1497, %v2134
        %v2136 = vpop.f32.mrb[0].mxu0
        %2137 = vmatprep.mubr.bf16.mxu0 %v1876
        %2138 = vmatmul.mubr.bf16.gmra.mrb[0].mxu0 %v1875
        %v2139 = vpop.f32.mrb[0].mxu0
        %v2140 = vadd.f32 %v1502, %v2139
        %v2141 = vpop.f32.mrb[0].mxu0
        %v2142 = vpop.f32.mrb[0].mxu0
        %v2143 = vadd.f32 %v1507, %v2142
        %v2144 = vpop.f32.mrb[0].mxu0
        %2145 = vmatprep.mubr.bf16.mxu0 %v1878
        %2146 = vmatmul.mubr.bf16.gmra.mrb[0].mxu0 %v1877
        %v2147 = vpop.f32.mrb[0].mxu0
        %v2148 = vadd.f32 %v1512, %v2147
        %v2149 = vpop.f32.mrb[0].mxu0
        %v2150 = vpop.f32.mrb[0].mxu0
        %v2151 = vadd.f32 %v1517, %v2150
        %v2152 = vpop.f32.mrb[0].mxu0
        %2153 = vmatprep.mubr.bf16.mxu0 %v1880
        %2154 = vmatmul.mubr.bf16.gmra.mrb[0].mxu0 %v1879
        %v2155 = vpop.f32.mrb[0].mxu0
        %v2156 = vadd.f32 %v1522, %v2155
        %v2157 = vpop.f32.mrb[0].mxu0
        %v2158 = vpop.f32.mrb[0].mxu0
        %v2159 = vadd.f32 %v1527, %v2158
        %v2160 = vpop.f32.mrb[0].mxu0
        %2161 = vmatprep.mubr.bf16.mxu0 %v1882
        %2162 = vmatmul.mubr.bf16.gmra.mrb[0].mxu0 %v1881
        %v2163 = vpop.f32.mrb[0].mxu0
        %v2164 = vadd.f32 %v1532, %v2163
        %v2165 = vpop.f32.mrb[0].mxu0
        %v2166 = vpop.f32.mrb[0].mxu0
        %v2167 = vadd.f32 %v1537, %v2166
        %v2168 = vpop.f32.mrb[0].mxu0
        %2169 = vmatprep.mubr.bf16.mxu0 %v1884
        %2170 = vmatmul.mubr.bf16.gmra.mrb[0].mxu0 %v1883
        %v2171 = vpop.f32.mrb[0].mxu0
        %v2172 = vadd.f32 %v1542, %v2171
        %v2173 = vpop.f32.mrb[0].mxu0
        %v2174 = vpop.f32.mrb[0].mxu0
        %v2175 = vadd.f32 %v1547, %v2174
        %v2176 = vpop.f32.mrb[0].mxu0
        %2177 = vmatprep.mubr.bf16.mxu0 %v1886
        %2178 = vmatmul.mubr.bf16.gmra.mrb[0].mxu0 %v1885
        %v2179 = vpop.f32.mrb[0].mxu0
        %v2180 = vadd.f32 %v1552, %v2179
        %v2181 = vpop.f32.mrb[0].mxu0
        %v2182 = vpop.f32.mrb[0].mxu0
        %v2183 = vadd.f32 %v1557, %v2182
        %v2184 = vpop.f32.mrb[0].mxu0
        %2185 = vmatprep.mubr.bf16.mxu0 %v1888
        %2186 = vmatmul.mubr.bf16.gmra.mrb[0].mxu0 %v1887
        %v2187 = vpop.f32.mrb[0].mxu0
        %v2188 = vadd.f32 %v1562, %v2187
        %v2189 = vpop.f32.mrb[0].mxu0
        %v2190 = vpop.f32.mrb[0].mxu0
        %v2191 = vadd.f32 %v1567, %v2190
        %v2192 = vpop.f32.mrb[0].mxu0
        %2193 = vmatprep.mubr.bf16.mxu0 %v1890
        %2194 = vmatmul.mubr.bf16.gmra.mrb[0].mxu0 %v1889
        %v2195 = vpop.f32.mrb[0].mxu0
        %v2196 = vadd.f32 %v1572, %v2195
        %v2197 = vpop.f32.mrb[0].mxu0
        %v2198 = vpop.f32.mrb[0].mxu0
        %v2199 = vadd.f32 %v1577, %v2198
        %v2200 = vpop.f32.mrb[0].mxu0
        %2201 = vmatprep.mubr.bf16.mxu0 %v1892
        %2202 = vmatmul.mubr.bf16.gmra.mrb[0].mxu0 %v1891
        %v2203 = vpop.f32.mrb[0].mxu0
        %v2204 = vadd.f32 %v1582, %v2203
        %v2205 = vpop.f32.mrb[0].mxu0
        %v2206 = vpop.f32.mrb[0].mxu0
        %v2207 = vadd.f32 %v1587, %v2206
        %v2208 = vpop.f32.mrb[0].mxu0
        %2209 = vmatprep.mubr.bf16.mxu0 %v1894
        %2210 = vmatmul.mubr.bf16.gmra.mrb[0].mxu0 %v1893
        %v2211 = vpop.f32.mrb[0].mxu0
        %v2212 = vadd.f32 %v1592, %v2211
        %v2213 = vpop.f32.mrb[0].mxu0
        %v2214 = vpop.f32.mrb[0].mxu0
        %v2215 = vadd.f32 %v1597, %v2214
        %v2216 = vpop.f32.mrb[0].mxu0
        %2217 = vmatprep.mubr.bf16.mxu0 %v1896
        %2218 = vmatmul.mubr.bf16.gmra.mrb[0].mxu0 %v1895
        %v2219 = vpop.f32.mrb[0].mxu0
        %v2220 = vadd.f32 %v1602, %v2219
        %v2221 = vpop.f32.mrb[0].mxu0
        %v2222 = vpop.f32.mrb[0].mxu0
        %v2223 = vadd.f32 %v1607, %v2222
        %v2224 = vpop.f32.mrb[0].mxu0
        %2225 = vmatprep.mubr.bf16.mxu0 %v1898
        %2226 = vmatmul.mubr.bf16.gmra.mrb[0].mxu0 %v1897
        %v2227 = vpop.f32.mrb[0].mxu0
        %v2228 = vadd.f32 %v1612, %v2227
        %v2229 = vpop.f32.mrb[0].mxu0
        %v2230 = vpop.f32.mrb[0].mxu0
        %v2231 = vadd.f32 %v1617, %v2230
        %v2232 = vpop.f32.mrb[0].mxu0
        %2233 = vmatprep.mubr.bf16.mxu0 %v1900
        %2234 = vmatmul.mubr.bf16.gmra.mrb[0].mxu0 %v1899
        %v2235 = vpop.f32.mrb[0].mxu0
        %v2236 = vadd.f32 %v1622, %v2235
        %v2237 = vpop.f32.mrb[0].mxu0
        %v2238 = vpop.f32.mrb[0].mxu0
        %v2239 = vadd.f32 %v1627, %v2238
        %v2240 = vpop.f32.mrb[0].mxu0
        %2241 = vmatprep.mubr.bf16.mxu0 %v1902
        %2242 = vmatmul.mubr.bf16.gmra.mrb[0].mxu0 %v1901
        %v2243 = vpop.f32.mrb[0].mxu0
        %v2244 = vadd.f32 %v1632, %v2243
        %v2245 = vpop.f32.mrb[0].mxu0
        %v2246 = vpop.f32.mrb[0].mxu0
        %v2247 = vadd.f32 %v1637, %v2246
        %v2248 = vpop.f32.mrb[0].mxu0
        %2249 = vmatprep.mubr.bf16.mxu0 %v1904
        %2250 = vmatmul.mubr.bf16.gmra.mrb[0].mxu0 %v1903
        %v2251 = vpop.f32.mrb[0].mxu0
        %v2252 = vadd.f32 %v1642, %v2251
        %v2253 = vpop.f32.mrb[0].mxu0
        %v2254 = vpop.f32.mrb[0].mxu0
        %v2255 = vadd.f32 %v1647, %v2254
        %v2256 = vpop.f32.mrb[0].mxu0
        %2257 = vdwg.mxu0
        %v2258 = vmax.f32 %v2004, 0.0
        %v2259 = vmax.f32 %v2007, 0.0
        %v2260 = vmax.f32 %v2012, 0.0
        %v2261 = vmax.f32 %v2015, 0.0
        %v2262 = vmax.f32 %v2020, 0.0
        %v2263 = vmax.f32 %v2023, 0.0
        %v2264 = vmax.f32 %v2028, 0.0
        %v2265 = vmax.f32 %v2031, 0.0
        %v2266 = vmax.f32 %v2036, 0.0
        %v2267 = vmax.f32 %v2039, 0.0
        %v2268 = vmax.f32 %v2044, 0.0
        %v2269 = vmax.f32 %v2047, 0.0
        %v2270 = vmax.f32 %v2052, 0.0
        %v2271 = vmax.f32 %v2055, 0.0
        %v2272 = vmax.f32 %v2060, 0.0
        %v2273 = vmax.f32 %v2063, 0.0
        %v2274 = vmax.f32 %v2068, 0.0
        %v2275 = vmax.f32 %v2071, 0.0
        %v2276 = vmax.f32 %v2076, 0.0
        %v2277 = vmax.f32 %v2079, 0.0
        %v2278 = vmax.f32 %v2084, 0.0
        %v2279 = vmax.f32 %v2087, 0.0
        %v2280 = vmax.f32 %v2092, 0.0
        %v2281 = vmax.f32 %v2095, 0.0
        %v2282 = vmax.f32 %v2100, 0.0
        %v2283 = vmax.f32 %v2103, 0.0
        %v2284 = vmax.f32 %v2108, 0.0
        %v2285 = vmax.f32 %v2111, 0.0
        %v2286 = vmax.f32 %v2116, 0.0
        %v2287 = vmax.f32 %v2119, 0.0
        %v2288 = vmax.f32 %v2124, 0.0
        %v2289 = vmax.f32 %v2127, 0.0
        %v2290 = vmax.f32 %v2132, 0.0
        %v2291 = vmax.f32 %v2135, 0.0
        %v2292 = vmax.f32 %v2140, 0.0
        %v2293 = vmax.f32 %v2143, 0.0
        %v2294 = vmax.f32 %v2148, 0.0
        %v2295 = vmax.f32 %v2151, 0.0
        %v2296 = vmax.f32 %v2156, 0.0
        %v2297 = vmax.f32 %v2159, 0.0
        %v2298 = vmax.f32 %v2164, 0.0
        %v2299 = vmax.f32 %v2167, 0.0
        %v2300 = vmax.f32 %v2172, 0.0
        %v2301 = vmax.f32 %v2175, 0.0
        %v2302 = vmax.f32 %v2180, 0.0
        %v2303 = vmax.f32 %v2183, 0.0
        %v2304 = vmax.f32 %v2188, 0.0
        %v2305 = vmax.f32 %v2191, 0.0
        %v2306 = vmax.f32 %v2196, 0.0
        %v2307 = vmax.f32 %v2199, 0.0
        %v2308 = vmax.f32 %v2204, 0.0
        %v2309 = vmax.f32 %v2207, 0.0
        %v2310 = vmax.f32 %v2212, 0.0
        %v2311 = vmax.f32 %v2215, 0.0
        %v2312 = vmax.f32 %v2220, 0.0
        %v2313 = vmax.f32 %v2223, 0.0
        %v2314 = vmax.f32 %v2228, 0.0
        %v2315 = vmax.f32 %v2231, 0.0
        %v2316 = vmax.f32 %v2236, 0.0
        %v2317 = vmax.f32 %v2239, 0.0
        %v2318 = vmax.f32 %v2244, 0.0
        %v2319 = vmax.f32 %v2247, 0.0
        %v2320 = vmax.f32 %v2252, 0.0
        %v2321 = vmax.f32 %v2255, 0.0
        %v2322 = vld [vmem:[%s6] sm:$0xff]
        %v2323 = vld [vmem:[%s6 + $0x8] sm:$0xff]
        %v2324 = vld [vmem:[%s6 + $0x10] sm:$0xff]
        %v2325 = vld [vmem:[%s6 + $0x18] sm:$0xff]
        %v2326 = vld [vmem:[%s6 + $0x20] sm:$0xff]
        %v2327 = vld [vmem:[%s6 + $0x28] sm:$0xff]
        %v2328 = vld [vmem:[%s6 + $0x30] sm:$0xff]
        %v2329 = vld [vmem:[%s6 + $0x38] sm:$0xff]
        %v2330 = vld [vmem:[%s6 + $0x40] sm:$0xff]
        %v2331 = vld [vmem:[%s6 + $0x48] sm:$0xff]
        %v2332 = vld [vmem:[%s6 + $0x50] sm:$0xff]
        %v2333 = vld [vmem:[%s6 + $0x58] sm:$0xff]
        %v2334 = vld [vmem:[%s6 + $0x60] sm:$0xff]
        %v2335 = vld [vmem:[%s6 + $0x68] sm:$0xff]
        %v2336 = vld [vmem:[%s6 + $0x70] sm:$0xff]
        %v2337 = vld [vmem:[%s6 + $0x78] sm:$0xff]
        %v2338 = vld [vmem:[%s6 + $0x80] sm:$0xff]
        %v2339 = vld [vmem:[%s6 + $0x88] sm:$0xff]
        %v2340 = vld [vmem:[%s6 + $0x90] sm:$0xff]
        %v2341 = vld [vmem:[%s6 + $0x98] sm:$0xff]
        %v2342 = vld [vmem:[%s6 + $0xa0] sm:$0xff]
        %v2343 = vld [vmem:[%s6 + $0xa8] sm:$0xff]
        %v2344 = vld [vmem:[%s6 + $0xb0] sm:$0xff]
        %v2345 = vld [vmem:[%s6 + $0xb8] sm:$0xff]
        %v2346 = vld [vmem:[%s6 + $0xc0] sm:$0xff]
        %v2347 = vld [vmem:[%s6 + $0xc8] sm:$0xff]
        %v2348 = vld [vmem:[%s6 + $0xd0] sm:$0xff]
        %v2349 = vld [vmem:[%s6 + $0xd8] sm:$0xff]
        %v2350 = vld [vmem:[%s6 + $0xe0] sm:$0xff]
        %v2351 = vld [vmem:[%s6 + $0xe8] sm:$0xff]
        %v2352 = vld [vmem:[%s6 + $0xf0] sm:$0xff]
        %v2353 = vld [vmem:[%s6 + $0xf8] sm:$0xff]
        %v2354 = vld [vmem:[%s6 + $0x100] sm:$0xff]
        %v2355 = vld [vmem:[%s6 + $0x108] sm:$0xff]
        %v2356 = vld [vmem:[%s6 + $0x110] sm:$0xff]
        %v2357 = vld [vmem:[%s6 + $0x118] sm:$0xff]
        %v2358 = vld [vmem:[%s6 + $0x120] sm:$0xff]
        %v2359 = vld [vmem:[%s6 + $0x128] sm:$0xff]
        %v2360 = vld [vmem:[%s6 + $0x130] sm:$0xff]
        %v2361 = vld [vmem:[%s6 + $0x138] sm:$0xff]
        %v2362 = vld [vmem:[%s6 + $0x140] sm:$0xff]
        %v2363 = vld [vmem:[%s6 + $0x148] sm:$0xff]
        %v2364 = vld [vmem:[%s6 + $0x150] sm:$0xff]
        %v2365 = vld [vmem:[%s6 + $0x158] sm:$0xff]
        %v2366 = vld [vmem:[%s6 + $0x160] sm:$0xff]
        %v2367 = vld [vmem:[%s6 + $0x168] sm:$0xff]
        %v2368 = vld [vmem:[%s6 + $0x170] sm:$0xff]
        %v2369 = vld [vmem:[%s6 + $0x178] sm:$0xff]
        %v2370 = vld [vmem:[%s6 + $0x180] sm:$0xff]
        %v2371 = vld [vmem:[%s6 + $0x188] sm:$0xff]
        %v2372 = vld [vmem:[%s6 + $0x190] sm:$0xff]
        %v2373 = vld [vmem:[%s6 + $0x198] sm:$0xff]
        %v2374 = vld [vmem:[%s6 + $0x1a0] sm:$0xff]
        %v2375 = vld [vmem:[%s6 + $0x1a8] sm:$0xff]
        %v2376 = vld [vmem:[%s6 + $0x1b0] sm:$0xff]
        %v2377 = vld [vmem:[%s6 + $0x1b8] sm:$0xff]
        %v2378 = vld [vmem:[%s6 + $0x1c0] sm:$0xff]
        %v2379 = vld [vmem:[%s6 + $0x1c8] sm:$0xff]
        %v2380 = vld [vmem:[%s6 + $0x1d0] sm:$0xff]
        %v2381 = vld [vmem:[%s6 + $0x1d8] sm:$0xff]
        %v2382 = vld [vmem:[%s6 + $0x1e0] sm:$0xff]
        %v2383 = vld [vmem:[%s6 + $0x1e8] sm:$0xff]
        %v2384 = vld [vmem:[%s6 + $0x1f0] sm:$0xff]
        %v2385 = vld [vmem:[%s6 + $0x1f8] sm:$0xff]
        %v2386 = vld [vmem:[%s6 + $0x200] sm:$0xff]
        %v2387 = vld [vmem:[%s6 + $0x208] sm:$0xff]
        %v2388 = vld [vmem:[%s6 + $0x210] sm:$0xff]
        %v2389 = vld [vmem:[%s6 + $0x218] sm:$0xff]
        %v2390 = vld [vmem:[%s6 + $0x220] sm:$0xff]
        %v2391 = vld [vmem:[%s6 + $0x228] sm:$0xff]
        %v2392 = vld [vmem:[%s6 + $0x230] sm:$0xff]
        %v2393 = vld [vmem:[%s6 + $0x238] sm:$0xff]
        %v2394 = vld [vmem:[%s6 + $0x240] sm:$0xff]
        %v2395 = vld [vmem:[%s6 + $0x248] sm:$0xff]
        %v2396 = vld [vmem:[%s6 + $0x250] sm:$0xff]
        %v2397 = vld [vmem:[%s6 + $0x258] sm:$0xff]
        %v2398 = vld [vmem:[%s6 + $0x260] sm:$0xff]
        %v2399 = vld [vmem:[%s6 + $0x268] sm:$0xff]
        %v2400 = vld [vmem:[%s6 + $0x270] sm:$0xff]
        %v2401 = vld [vmem:[%s6 + $0x278] sm:$0xff]
        %v2402 = vld [vmem:[%s6 + $0x280] sm:$0xff]
        %v2403 = vld [vmem:[%s6 + $0x288] sm:$0xff]
        %v2404 = vld [vmem:[%s6 + $0x290] sm:$0xff]
        %v2405 = vld [vmem:[%s6 + $0x298] sm:$0xff]
        %v2406 = vld [vmem:[%s6 + $0x2a0] sm:$0xff]
        %v2407 = vld [vmem:[%s6 + $0x2a8] sm:$0xff]
        %v2408 = vld [vmem:[%s6 + $0x2b0] sm:$0xff]
        %v2409 = vld [vmem:[%s6 + $0x2b8] sm:$0xff]
        %v2410 = vld [vmem:[%s6 + $0x2c0] sm:$0xff]
        %v2411 = vld [vmem:[%s6 + $0x2c8] sm:$0xff]
        %v2412 = vld [vmem:[%s6 + $0x2d0] sm:$0xff]
        %v2413 = vld [vmem:[%s6 + $0x2d8] sm:$0xff]
        %v2414 = vld [vmem:[%s6 + $0x2e0] sm:$0xff]
        %v2415 = vld [vmem:[%s6 + $0x2e8] sm:$0xff]
        %v2416 = vld [vmem:[%s6 + $0x2f0] sm:$0xff]
        %v2417 = vld [vmem:[%s6 + $0x2f8] sm:$0xff]
        %v2418 = vpack.c.bf16 %v2259, %v2258
        %v2419 = vpack.c.bf16 %v2261, %v2260
        %v2420 = vpack.c.bf16 %v2263, %v2262
        %v2421 = vpack.c.bf16 %v2265, %v2264
        %v2422 = vpack.c.bf16 %v2267, %v2266
        %v2423 = vpack.c.bf16 %v2269, %v2268
        %v2424 = vpack.c.bf16 %v2271, %v2270
        %v2425 = vpack.c.bf16 %v2273, %v2272
        %v2426 = vpack.c.bf16 %v2275, %v2274
        %v2427 = vpack.c.bf16 %v2277, %v2276
        %v2428 = vpack.c.bf16 %v2279, %v2278
        %v2429 = vpack.c.bf16 %v2281, %v2280
        %v2430 = vpack.c.bf16 %v2283, %v2282
        %v2431 = vpack.c.bf16 %v2285, %v2284
        %v2432 = vpack.c.bf16 %v2287, %v2286
        %v2433 = vpack.c.bf16 %v2289, %v2288
        %v2434 = vpack.c.bf16 %v2291, %v2290
        %v2435 = vpack.c.bf16 %v2293, %v2292
        %v2436 = vpack.c.bf16 %v2295, %v2294
        %v2437 = vpack.c.bf16 %v2297, %v2296
        %v2438 = vpack.c.bf16 %v2299, %v2298
        %v2439 = vpack.c.bf16 %v2301, %v2300
        %v2440 = vpack.c.bf16 %v2303, %v2302
        %v2441 = vpack.c.bf16 %v2305, %v2304
        %v2442 = vpack.c.bf16 %v2307, %v2306
        %v2443 = vpack.c.bf16 %v2309, %v2308
        %v2444 = vpack.c.bf16 %v2311, %v2310
        %v2445 = vpack.c.bf16 %v2313, %v2312
        %v2446 = vpack.c.bf16 %v2315, %v2314
        %v2447 = vpack.c.bf16 %v2317, %v2316
        %v2448 = vpack.c.bf16 %v2319, %v2318
        %v2449 = vpack.c.bf16 %v2321, %v2320
        %v2450 = vld [vmem:[%s7] sm:$0xf]
        %v2451 = vld [vmem:[%s7 + $0x4] sm:$0xf]
        %v2452 = vld [vmem:[%s7 + $0x8] sm:$0xf]
        %v2453 = vld [vmem:[%s7 + $0xc] sm:$0xf]
        %v2454 = vld [vmem:[%s7 + $0x10] sm:$0xf]
        %v2455 = vld [vmem:[%s7 + $0x14] sm:$0xf]
        %v2456 = vld [vmem:[%s7 + $0x18] sm:$0xf]
        %v2457 = vld [vmem:[%s7 + $0x1c] sm:$0xf]
        %v2458 = vld [vmem:[%s7 + $0x20] sm:$0xf]
        %v2459 = vld [vmem:[%s7 + $0x24] sm:$0xf]
        %v2460 = vld [vmem:[%s7 + $0x28] sm:$0xf]
        %v2461 = vld [vmem:[%s7 + $0x2c] sm:$0xf]
        %v2462 = vld [vmem:[%s7 + $0x30] sm:$0xf]
        %v2463 = vld [vmem:[%s7 + $0x34] sm:$0xf]
        %v2464 = vld [vmem:[%s7 + $0x38] sm:$0xf]
        %v2465 = vld [vmem:[%s7 + $0x3c] sm:$0xf]
        %v2466 = vld [vmem:[%s7 + $0x40] sm:$0xf]
        %v2467 = vld [vmem:[%s7 + $0x44] sm:$0xf]
        %v2468 = vld [vmem:[%s7 + $0x48] sm:$0xf]
        %v2469 = vld [vmem:[%s7 + $0x4c] sm:$0xf]
        %v2470 = vld [vmem:[%s7 + $0x50] sm:$0xf]
        %v2471 = vld [vmem:[%s7 + $0x54] sm:$0xf]
        %v2472 = vld [vmem:[%s7 + $0x58] sm:$0xf]
        %v2473 = vld [vmem:[%s7 + $0x5c] sm:$0xf]
        %v2474 = vld [vmem:[%s7 + $0x60] sm:$0xf]
        %v2475 = vld [vmem:[%s7 + $0x64] sm:$0xf]
        %v2476 = vld [vmem:[%s7 + $0x68] sm:$0xf]
        %v2477 = vld [vmem:[%s7 + $0x6c] sm:$0xf]
        %v2478 = vld [vmem:[%s7 + $0x70] sm:$0xf]
        %v2479 = vld [vmem:[%s7 + $0x74] sm:$0xf]
        %v2480 = vld [vmem:[%s7 + $0x78] sm:$0xf]
        %v2481 = vld [vmem:[%s7 + $0x7c] sm:$0xf]
        %v2482 = vld [vmem:[%s7 + $0x80] sm:$0xf]
        %v2483 = vld [vmem:[%s7 + $0x84] sm:$0xf]
        %v2484 = vld [vmem:[%s7 + $0x88] sm:$0xf]
        %v2485 = vld [vmem:[%s7 + $0x8c] sm:$0xf]
        %v2486 = vld [vmem:[%s7 + $0x90] sm:$0xf]
        %v2487 = vld [vmem:[%s7 + $0x94] sm:$0xf]
        %v2488 = vld [vmem:[%s7 + $0x98] sm:$0xf]
        %v2489 = vld [vmem:[%s7 + $0x9c] sm:$0xf]
        %v2490 = vld [vmem:[%s7 + $0xa0] sm:$0xf]
        %v2491 = vld [vmem:[%s7 + $0xa4] sm:$0xf]
        %v2492 = vld [vmem:[%s7 + $0xa8] sm:$0xf]
        %v2493 = vld [vmem:[%s7 + $0xac] sm:$0xf]
        %v2494 = vld [vmem:[%s7 + $0xb0] sm:$0xf]
        %v2495 = vld [vmem:[%s7 + $0xb4] sm:$0xf]
        %v2496 = vld [vmem:[%s7 + $0xb8] sm:$0xf]
        %v2497 = vld [vmem:[%s7 + $0xbc] sm:$0xf]
        %v2498 = vld [vmem:[%s563] sm:$0xf]
        %v2499 = vld [vmem:[%s563 + $0x4] sm:$0xf]
        %v2500 = vld [vmem:[%s563 + $0x8] sm:$0xf]
        %v2501 = vld [vmem:[%s563 + $0xc] sm:$0xf]
        %v2502 = vld [vmem:[%s563 + $0x10] sm:$0xf]
        %v2503 = vld [vmem:[%s563 + $0x14] sm:$0xf]
        %v2504 = vld [vmem:[%s563 + $0x18] sm:$0xf]
        %v2505 = vld [vmem:[%s563 + $0x1c] sm:$0xf]
        %v2506 = vld [vmem:[%s563 + $0x20] sm:$0xf]
        %v2507 = vld [vmem:[%s563 + $0x24] sm:$0xf]
        %v2508 = vld [vmem:[%s563 + $0x28] sm:$0xf]
        %v2509 = vld [vmem:[%s563 + $0x2c] sm:$0xf]
        %v2510 = vld [vmem:[%s563 + $0x30] sm:$0xf]
        %v2511 = vld [vmem:[%s563 + $0x34] sm:$0xf]
        %v2512 = vld [vmem:[%s563 + $0x38] sm:$0xf]
        %v2513 = vld [vmem:[%s563 + $0x3c] sm:$0xf]
        %v2562 = vunpack.c.l.b16 %v2450
        %v2563 = vunpack.c.l.b16 %v2451
        %v2564 = vunpack.c.l.b16 %v2452
        %v2565 = vunpack.c.l.b16 %v2453
        %v2566 = vunpack.c.l.b16 %v2454
        %v2567 = vunpack.c.l.b16 %v2455
        %v2568 = vunpack.c.l.b16 %v2456
        %v2569 = vunpack.c.l.b16 %v2457
        %v2570 = vunpack.c.l.b16 %v2458
        %v2571 = vunpack.c.l.b16 %v2459
        %v2572 = vunpack.c.l.b16 %v2460
        %v2573 = vunpack.c.l.b16 %v2461
        %v2574 = vunpack.c.l.b16 %v2462
        %v2575 = vunpack.c.l.b16 %v2463
        %v2576 = vunpack.c.l.b16 %v2464
        %v2577 = vunpack.c.l.b16 %v2465
        %v2578 = vunpack.c.l.b16 %v2466
        %v2579 = vunpack.c.l.b16 %v2467
        %v2580 = vunpack.c.l.b16 %v2468
        %v2581 = vunpack.c.l.b16 %v2469
        %v2582 = vunpack.c.l.b16 %v2470
        %v2583 = vunpack.c.l.b16 %v2471
        %v2584 = vunpack.c.l.b16 %v2472
        %v2585 = vunpack.c.l.b16 %v2473
        %v2586 = vunpack.c.l.b16 %v2474
        %v2587 = vunpack.c.l.b16 %v2475
        %v2588 = vunpack.c.l.b16 %v2476
        %v2589 = vunpack.c.l.b16 %v2477
        %v2590 = vunpack.c.l.b16 %v2478
        %v2591 = vunpack.c.l.b16 %v2479
        %v2592 = vunpack.c.l.b16 %v2480
        %v2593 = vunpack.c.l.b16 %v2481
        %v2594 = vunpack.c.l.b16 %v2482
        %v2595 = vunpack.c.l.b16 %v2483
        %v2596 = vunpack.c.l.b16 %v2484
        %v2597 = vunpack.c.l.b16 %v2485
        %v2598 = vunpack.c.l.b16 %v2486
        %v2599 = vunpack.c.l.b16 %v2487
        %v2600 = vunpack.c.l.b16 %v2488
        %v2601 = vunpack.c.l.b16 %v2489
        %v2602 = vunpack.c.l.b16 %v2490
        %v2603 = vunpack.c.l.b16 %v2491
        %v2604 = vunpack.c.l.b16 %v2492
        %v2605 = vunpack.c.l.b16 %v2493
        %v2606 = vunpack.c.l.b16 %v2494
        %v2607 = vunpack.c.l.b16 %v2495
        %v2608 = vunpack.c.l.b16 %v2496
        %v2609 = vunpack.c.l.b16 %v2497
        %v2610 = vpack.c.b16 %v2563, %v2562
        %v2611 = vpack.c.b16 %v2565, %v2564
        %v2612 = vpack.c.b16 %v2567, %v2566
        %v2613 = vpack.c.b16 %v2569, %v2568
        %v2614 = vpack.c.b16 %v2571, %v2570
        %v2615 = vpack.c.b16 %v2573, %v2572
        %v2616 = vpack.c.b16 %v2575, %v2574
        %v2617 = vpack.c.b16 %v2577, %v2576
        %v2618 = vpack.c.b16 %v2579, %v2578
        %v2619 = vpack.c.b16 %v2581, %v2580
        %v2620 = vpack.c.b16 %v2583, %v2582
        %v2621 = vpack.c.b16 %v2585, %v2584
        %v2622 = vpack.c.b16 %v2587, %v2586
        %v2623 = vpack.c.b16 %v2589, %v2588
        %v2624 = vpack.c.b16 %v2591, %v2590
        %v2625 = vpack.c.b16 %v2593, %v2592
        %v2626 = vpack.c.b16 %v2595, %v2594
        %v2627 = vpack.c.b16 %v2597, %v2596
        %v2628 = vpack.c.b16 %v2599, %v2598
        %v2629 = vpack.c.b16 %v2601, %v2600
        %v2630 = vpack.c.b16 %v2603, %v2602
        %v2631 = vpack.c.b16 %v2605, %v2604
        %v2632 = vpack.c.b16 %v2607, %v2606
        %v2633 = vpack.c.b16 %v2609, %v2608
        %v2674 = vunpack.c.l.b16 %v2498
        %v2675 = vunpack.c.l.b16 %v2499
        %v2676 = vunpack.c.l.b16 %v2500
        %v2677 = vunpack.c.l.b16 %v2501
        %v2678 = vunpack.c.l.b16 %v2502
        %v2679 = vunpack.c.l.b16 %v2503
        %v2680 = vunpack.c.l.b16 %v2504
        %v2681 = vunpack.c.l.b16 %v2505
        %v2682 = vunpack.c.l.b16 %v2506
        %v2683 = vunpack.c.l.b16 %v2507
        %v2684 = vunpack.c.l.b16 %v2508
        %v2685 = vunpack.c.l.b16 %v2509
        %v2686 = vunpack.c.l.b16 %v2510
        %v2687 = vunpack.c.l.b16 %v2511
        %v2688 = vunpack.c.l.b16 %v2512
        %v2689 = vunpack.c.l.b16 %v2513
        %v2690 = vpack.c.b16 %v2675, %v2674
        %v2691 = vpack.c.b16 %v2677, %v2676
        %v2692 = vpack.c.b16 %v2679, %v2678
        %v2693 = vpack.c.b16 %v2681, %v2680
        %v2694 = vpack.c.b16 %v2683, %v2682
        %v2695 = vpack.c.b16 %v2685, %v2684
        %v2696 = vpack.c.b16 %v2687, %v2686
        %v2697 = vpack.c.b16 %v2689, %v2688
        %2706 = vmatprep.subr.bf16.mxu0 0
        %2707 = vmatpush1.bf16.msra.mxu0 %v2690
        %2708 = vmatprep.subr.bf16.mxu0 0
        %2709 = vmatpush1.bf16.msra.mxu0 %v2691
        %2710 = vmatprep.subr.bf16.mxu0 0
        %2711 = vmatpush1.bf16.msra.mxu0 %v2692
        %2712 = vmatprep.subr.bf16.mxu0 0
        %2713 = vmatpush1.bf16.msra.mxu0 %v2693
        %2714 = vmatprep.subr.bf16.mxu0 0
        %2715 = vmatpush1.bf16.msra.mxu0 %v2694
        %2716 = vmatprep.subr.bf16.mxu0 0
        %2717 = vmatpush1.bf16.msra.mxu0 %v2695
        %2718 = vmatprep.subr.bf16.mxu0 0
        %2719 = vmatpush1.bf16.msra.mxu0 %v2696
        %2720 = vmatprep.subr.bf16.mxu0 0
        %2721 = vmatpush1.bf16.msra.mxu0 %v2697
        %2722 = vmatprep.subr.bf16.mxu0 0
        %2723 = vmatpush1.bf16.msra.mxu0 0
        %2724 = vmatprep.subr.bf16.mxu0 0
        %2725 = vmatpush1.bf16.msra.mxu0 0
        %2726 = vmatprep.subr.bf16.mxu0 0
        %2727 = vmatpush1.bf16.msra.mxu0 0
        %2728 = vmatprep.subr.bf16.mxu0 0
        %2729 = vmatpush1.bf16.msra.mxu0 0
        %2730 = vmatprep.subr.bf16.mxu0 0
        %2731 = vmatpush1.bf16.msra.mxu0 0
        %2732 = vmatprep.subr.bf16.mxu0 0
        %2733 = vmatpush1.bf16.msra.mxu0 0
        %2734 = vmatprep.subr.bf16.mxu0 0
        %2735 = vmatpush1.bf16.msra.mxu0 0
        %2736 = vmatprep.subr.bf16.mxu0 0
        %2737 = vmatpush1.bf16.msra.mxu0 0
        %2738 = vmatprep.mubr.bf16.mxu0 0
        %2739 = vmatmul.mubr.bf16.gmra.mrb[0].mxu0 %v2610
        %v2740 = vpop.f32.mrb[0].mxu0
        %v2741 = vadd.f32 0.0, %v2740
        %v2742 = vpop.f32.mrb[0].mxu0
        %v2743 = vpop.f32.mrb[0].mxu0
        %v2744 = vadd.f32 0.0, %v2743
        %v2745 = vpop.f32.mrb[0].mxu0
        %2746 = vmatprep.mubr.bf16.mxu0 0
        %2747 = vmatmul.mubr.bf16.gmra.mrb[0].mxu0 %v2611
        %v2748 = vpop.f32.mrb[0].mxu0
        %v2749 = vadd.f32 0.0, %v2748
        %v2750 = vpop.f32.mrb[0].mxu0
        %v2751 = vpop.f32.mrb[0].mxu0
        %v2752 = vadd.f32 0.0, %v2751
        %v2753 = vpop.f32.mrb[0].mxu0
        %2754 = vmatprep.mubr.bf16.mxu0 0
        %2755 = vmatmul.mubr.bf16.gmra.mrb[0].mxu0 %v2612
        %v2756 = vpop.f32.mrb[0].mxu0
        %v2757 = vadd.f32 0.0, %v2756
        %v2758 = vpop.f32.mrb[0].mxu0
        %v2759 = vpop.f32.mrb[0].mxu0
        %v2760 = vadd.f32 0.0, %v2759
        %v2761 = vpop.f32.mrb[0].mxu0
        %2762 = vmatprep.mubr.bf16.mxu0 0
        %2763 = vmatmul.mubr.bf16.gmra.mrb[0].mxu0 %v2613
        %v2764 = vpop.f32.mrb[0].mxu0
        %v2765 = vadd.f32 0.0, %v2764
        %v2766 = vpop.f32.mrb[0].mxu0
        %v2767 = vpop.f32.mrb[0].mxu0
        %v2768 = vadd.f32 0.0, %v2767
        %v2769 = vpop.f32.mrb[0].mxu0
        %2770 = vmatprep.mubr.bf16.mxu0 0
        %2771 = vmatmul.mubr.bf16.gmra.mrb[0].mxu0 %v2614
        %v2772 = vpop.f32.mrb[0].mxu0
        %v2773 = vadd.f32 0.0, %v2772
        %v2774 = vpop.f32.mrb[0].mxu0
        %v2775 = vpop.f32.mrb[0].mxu0
        %v2776 = vadd.f32 0.0, %v2775
        %v2777 = vpop.f32.mrb[0].mxu0
        %2778 = vmatprep.mubr.bf16.mxu0 0
        %2779 = vmatmul.mubr.bf16.gmra.mrb[0].mxu0 %v2615
        %v2780 = vpop.f32.mrb[0].mxu0
        %v2781 = vadd.f32 0.0, %v2780
        %v2782 = vpop.f32.mrb[0].mxu0
        %v2783 = vpop.f32.mrb[0].mxu0
        %v2784 = vadd.f32 0.0, %v2783
        %v2785 = vpop.f32.mrb[0].mxu0
        %2786 = vmatprep.mubr.bf16.mxu0 0
        %2787 = vmatmul.mubr.bf16.gmra.mrb[0].mxu0 %v2616
        %v2788 = vpop.f32.mrb[0].mxu0
        %v2789 = vadd.f32 0.0, %v2788
        %v2790 = vpop.f32.mrb[0].mxu0
        %v2791 = vpop.f32.mrb[0].mxu0
        %v2792 = vadd.f32 0.0, %v2791
        %v2793 = vpop.f32.mrb[0].mxu0
        %2794 = vmatprep.mubr.bf16.mxu0 0
        %2795 = vmatmul.mubr.bf16.gmra.mrb[0].mxu0 %v2617
        %v2796 = vpop.f32.mrb[0].mxu0
        %v2797 = vadd.f32 0.0, %v2796
        %v2798 = vpop.f32.mrb[0].mxu0
        %v2799 = vpop.f32.mrb[0].mxu0
        %v2800 = vadd.f32 0.0, %v2799
        %v2801 = vpop.f32.mrb[0].mxu0
        %2802 = vmatprep.mubr.bf16.mxu0 0
        %2803 = vmatmul.mubr.bf16.gmra.mrb[0].mxu0 %v2618
        %v2804 = vpop.f32.mrb[0].mxu0
        %v2805 = vadd.f32 0.0, %v2804
        %v2806 = vpop.f32.mrb[0].mxu0
        %v2807 = vpop.f32.mrb[0].mxu0
        %v2808 = vadd.f32 0.0, %v2807
        %v2809 = vpop.f32.mrb[0].mxu0
        %2810 = vmatprep.mubr.bf16.mxu0 0
        %2811 = vmatmul.mubr.bf16.gmra.mrb[0].mxu0 %v2619
        %v2812 = vpop.f32.mrb[0].mxu0
        %v2813 = vadd.f32 0.0, %v2812
        %v2814 = vpop.f32.mrb[0].mxu0
        %v2815 = vpop.f32.mrb[0].mxu0
        %v2816 = vadd.f32 0.0, %v2815
        %v2817 = vpop.f32.mrb[0].mxu0
        %2818 = vmatprep.mubr.bf16.mxu0 0
        %2819 = vmatmul.mubr.bf16.gmra.mrb[0].mxu0 %v2620
        %v2820 = vpop.f32.mrb[0].mxu0
        %v2821 = vadd.f32 0.0, %v2820
        %v2822 = vpop.f32.mrb[0].mxu0
        %v2823 = vpop.f32.mrb[0].mxu0
        %v2824 = vadd.f32 0.0, %v2823
        %v2825 = vpop.f32.mrb[0].mxu0
        %2826 = vmatprep.mubr.bf16.mxu0 0
        %2827 = vmatmul.mubr.bf16.gmra.mrb[0].mxu0 %v2621
        %v2828 = vpop.f32.mrb[0].mxu0
        %v2829 = vadd.f32 0.0, %v2828
        %v2830 = vpop.f32.mrb[0].mxu0
        %v2831 = vpop.f32.mrb[0].mxu0
        %v2832 = vadd.f32 0.0, %v2831
        %v2833 = vpop.f32.mrb[0].mxu0
        %2834 = vmatprep.mubr.bf16.mxu0 0
        %2835 = vmatmul.mubr.bf16.gmra.mrb[0].mxu0 %v2622
        %v2836 = vpop.f32.mrb[0].mxu0
        %v2837 = vadd.f32 0.0, %v2836
        %v2838 = vpop.f32.mrb[0].mxu0
        %v2839 = vpop.f32.mrb[0].mxu0
        %v2840 = vadd.f32 0.0, %v2839
        %v2841 = vpop.f32.mrb[0].mxu0
        %2842 = vmatprep.mubr.bf16.mxu0 0
        %2843 = vmatmul.mubr.bf16.gmra.mrb[0].mxu0 %v2623
        %v2844 = vpop.f32.mrb[0].mxu0
        %v2845 = vadd.f32 0.0, %v2844
        %v2846 = vpop.f32.mrb[0].mxu0
        %v2847 = vpop.f32.mrb[0].mxu0
        %v2848 = vadd.f32 0.0, %v2847
        %v2849 = vpop.f32.mrb[0].mxu0
        %2850 = vmatprep.mubr.bf16.mxu0 0
        %2851 = vmatmul.mubr.bf16.gmra.mrb[0].mxu0 %v2624
        %v2852 = vpop.f32.mrb[0].mxu0
        %v2853 = vadd.f32 0.0, %v2852
        %v2854 = vpop.f32.mrb[0].mxu0
        %v2855 = vpop.f32.mrb[0].mxu0
        %v2856 = vadd.f32 0.0, %v2855
        %v2857 = vpop.f32.mrb[0].mxu0
        %2858 = vmatprep.mubr.bf16.mxu0 0
        %2859 = vmatmul.mubr.bf16.gmra.mrb[0].mxu0 %v2625
        %v2860 = vpop.f32.mrb[0].mxu0
        %v2861 = vadd.f32 0.0, %v2860
        %v2862 = vpop.f32.mrb[0].mxu0
        %v2863 = vpop.f32.mrb[0].mxu0
        %v2864 = vadd.f32 0.0, %v2863
        %v2865 = vpop.f32.mrb[0].mxu0
        %2866 = vmatprep.mubr.bf16.mxu0 0
        %2867 = vmatmul.mubr.bf16.gmra.mrb[0].mxu0 %v2626
        %v2868 = vpop.f32.mrb[0].mxu0
        %v2869 = vadd.f32 0.0, %v2868
        %v2870 = vpop.f32.mrb[0].mxu0
        %v2871 = vpop.f32.mrb[0].mxu0
        %v2872 = vadd.f32 0.0, %v2871
        %v2873 = vpop.f32.mrb[0].mxu0
        %2874 = vmatprep.mubr.bf16.mxu0 0
        %2875 = vmatmul.mubr.bf16.gmra.mrb[0].mxu0 %v2627
        %v2876 = vpop.f32.mrb[0].mxu0
        %v2877 = vadd.f32 0.0, %v2876
        %v2878 = vpop.f32.mrb[0].mxu0
        %v2879 = vpop.f32.mrb[0].mxu0
        %v2880 = vadd.f32 0.0, %v2879
        %v2881 = vpop.f32.mrb[0].mxu0
        %2882 = vmatprep.mubr.bf16.mxu0 0
        %2883 = vmatmul.mubr.bf16.gmra.mrb[0].mxu0 %v2628
        %v2884 = vpop.f32.mrb[0].mxu0
        %v2885 = vadd.f32 0.0, %v2884
        %v2886 = vpop.f32.mrb[0].mxu0
        %v2887 = vpop.f32.mrb[0].mxu0
        %v2888 = vadd.f32 0.0, %v2887
        %v2889 = vpop.f32.mrb[0].mxu0
        %2890 = vmatprep.mubr.bf16.mxu0 0
        %2891 = vmatmul.mubr.bf16.gmra.mrb[0].mxu0 %v2629
        %v2892 = vpop.f32.mrb[0].mxu0
        %v2893 = vadd.f32 0.0, %v2892
        %v2894 = vpop.f32.mrb[0].mxu0
        %v2895 = vpop.f32.mrb[0].mxu0
        %v2896 = vadd.f32 0.0, %v2895
        %v2897 = vpop.f32.mrb[0].mxu0
        %2898 = vmatprep.mubr.bf16.mxu0 0
        %2899 = vmatmul.mubr.bf16.gmra.mrb[0].mxu0 %v2630
        %v2900 = vpop.f32.mrb[0].mxu0
        %v2901 = vadd.f32 0.0, %v2900
        %v2902 = vpop.f32.mrb[0].mxu0
        %v2903 = vpop.f32.mrb[0].mxu0
        %v2904 = vadd.f32 0.0, %v2903
        %v2905 = vpop.f32.mrb[0].mxu0
        %2906 = vmatprep.mubr.bf16.mxu0 0
        %2907 = vmatmul.mubr.bf16.gmra.mrb[0].mxu0 %v2631
        %v2908 = vpop.f32.mrb[0].mxu0
        %v2909 = vadd.f32 0.0, %v2908
        %v2910 = vpop.f32.mrb[0].mxu0
        %v2911 = vpop.f32.mrb[0].mxu0
        %v2912 = vadd.f32 0.0, %v2911
        %v2913 = vpop.f32.mrb[0].mxu0
        %2914 = vmatprep.mubr.bf16.mxu0 0
        %2915 = vmatmul.mubr.bf16.gmra.mrb[0].mxu0 %v2632
        %v2916 = vpop.f32.mrb[0].mxu0
        %v2917 = vadd.f32 0.0, %v2916
        %v2918 = vpop.f32.mrb[0].mxu0
        %v2919 = vpop.f32.mrb[0].mxu0
        %v2920 = vadd.f32 0.0, %v2919
        %v2921 = vpop.f32.mrb[0].mxu0
        %2922 = vmatprep.mubr.bf16.mxu0 0
        %2923 = vmatmul.mubr.bf16.gmra.mrb[0].mxu0 %v2633
        %v2924 = vpop.f32.mrb[0].mxu0
        %v2925 = vadd.f32 0.0, %v2924
        %v2926 = vpop.f32.mrb[0].mxu0
        %v2927 = vpop.f32.mrb[0].mxu0
        %v2928 = vadd.f32 0.0, %v2927
        %v2929 = vpop.f32.mrb[0].mxu0
        %2930 = vdwg.mxu0
        %v3027 = vunpack.c.l.b16 %v2322
        %v3028 = vunpack.c.h.b16 %v2322
        %v3029 = vunpack.c.l.b16 %v2323
        %v3030 = vunpack.c.h.b16 %v2323
        %v3031 = vunpack.c.l.b16 %v2324
        %v3032 = vunpack.c.h.b16 %v2324
        %v3033 = vunpack.c.l.b16 %v2325
        %v3034 = vunpack.c.h.b16 %v2325
        %v3035 = vunpack.c.l.b16 %v2326
        %v3036 = vunpack.c.h.b16 %v2326
        %v3037 = vunpack.c.l.b16 %v2327
        %v3038 = vunpack.c.h.b16 %v2327
        %v3039 = vunpack.c.l.b16 %v2328
        %v3040 = vunpack.c.h.b16 %v2328
        %v3041 = vunpack.c.l.b16 %v2329
        %v3042 = vunpack.c.h.b16 %v2329
        %v3043 = vunpack.c.l.b16 %v2330
        %v3044 = vunpack.c.h.b16 %v2330
        %v3045 = vunpack.c.l.b16 %v2331
        %v3046 = vunpack.c.h.b16 %v2331
        %v3047 = vunpack.c.l.b16 %v2332
        %v3048 = vunpack.c.h.b16 %v2332
        %v3049 = vunpack.c.l.b16 %v2333
        %v3050 = vunpack.c.h.b16 %v2333
        %v3051 = vunpack.c.l.b16 %v2334
        %v3052 = vunpack.c.h.b16 %v2334
        %v3053 = vunpack.c.l.b16 %v2335
        %v3054 = vunpack.c.h.b16 %v2335
        %v3055 = vunpack.c.l.b16 %v2336
        %v3056 = vunpack.c.h.b16 %v2336
        %v3057 = vunpack.c.l.b16 %v2337
        %v3058 = vunpack.c.h.b16 %v2337
        %v3059 = vunpack.c.l.b16 %v2338
        %v3060 = vunpack.c.h.b16 %v2338
        %v3061 = vunpack.c.l.b16 %v2339
        %v3062 = vunpack.c.h.b16 %v2339
        %v3063 = vunpack.c.l.b16 %v2340
        %v3064 = vunpack.c.h.b16 %v2340
        %v3065 = vunpack.c.l.b16 %v2341
        %v3066 = vunpack.c.h.b16 %v2341
        %v3067 = vunpack.c.l.b16 %v2342
        %v3068 = vunpack.c.h.b16 %v2342
        %v3069 = vunpack.c.l.b16 %v2343
        %v3070 = vunpack.c.h.b16 %v2343
        %v3071 = vunpack.c.l.b16 %v2344
        %v3072 = vunpack.c.h.b16 %v2344
        %v3073 = vunpack.c.l.b16 %v2345
        %v3074 = vunpack.c.h.b16 %v2345
        %v3075 = vunpack.c.l.b16 %v2346
        %v3076 = vunpack.c.h.b16 %v2346
        %v3077 = vunpack.c.l.b16 %v2347
        %v3078 = vunpack.c.h.b16 %v2347
        %v3079 = vunpack.c.l.b16 %v2348
        %v3080 = vunpack.c.h.b16 %v2348
        %v3081 = vunpack.c.l.b16 %v2349
        %v3082 = vunpack.c.h.b16 %v2349
        %v3083 = vunpack.c.l.b16 %v2350
        %v3084 = vunpack.c.h.b16 %v2350
        %v3085 = vunpack.c.l.b16 %v2351
        %v3086 = vunpack.c.h.b16 %v2351
        %v3087 = vunpack.c.l.b16 %v2352
        %v3088 = vunpack.c.h.b16 %v2352
        %v3089 = vunpack.c.l.b16 %v2353
        %v3090 = vunpack.c.h.b16 %v2353
        %v3091 = vunpack.c.l.b16 %v2354
        %v3092 = vunpack.c.h.b16 %v2354
        %v3093 = vunpack.c.l.b16 %v2355
        %v3094 = vunpack.c.h.b16 %v2355
        %v3095 = vunpack.c.l.b16 %v2356
        %v3096 = vunpack.c.h.b16 %v2356
        %v3097 = vunpack.c.l.b16 %v2357
        %v3098 = vunpack.c.h.b16 %v2357
        %v3099 = vunpack.c.l.b16 %v2358
        %v3100 = vunpack.c.h.b16 %v2358
        %v3101 = vunpack.c.l.b16 %v2359
        %v3102 = vunpack.c.h.b16 %v2359
        %v3103 = vunpack.c.l.b16 %v2360
        %v3104 = vunpack.c.h.b16 %v2360
        %v3105 = vunpack.c.l.b16 %v2361
        %v3106 = vunpack.c.h.b16 %v2361
        %v3107 = vunpack.c.l.b16 %v2362
        %v3108 = vunpack.c.h.b16 %v2362
        %v3109 = vunpack.c.l.b16 %v2363
        %v3110 = vunpack.c.h.b16 %v2363
        %v3111 = vunpack.c.l.b16 %v2364
        %v3112 = vunpack.c.h.b16 %v2364
        %v3113 = vunpack.c.l.b16 %v2365
        %v3114 = vunpack.c.h.b16 %v2365
        %v3115 = vunpack.c.l.b16 %v2366
        %v3116 = vunpack.c.h.b16 %v2366
        %v3117 = vunpack.c.l.b16 %v2367
        %v3118 = vunpack.c.h.b16 %v2367
        %v3119 = vunpack.c.l.b16 %v2368
        %v3120 = vunpack.c.h.b16 %v2368
        %v3121 = vunpack.c.l.b16 %v2369
        %v3122 = vunpack.c.h.b16 %v2369
        %v3123 = vunpack.c.l.b16 %v2370
        %v3124 = vunpack.c.h.b16 %v2370
        %v3125 = vunpack.c.l.b16 %v2371
        %v3126 = vunpack.c.h.b16 %v2371
        %v3127 = vunpack.c.l.b16 %v2372
        %v3128 = vunpack.c.h.b16 %v2372
        %v3129 = vunpack.c.l.b16 %v2373
        %v3130 = vunpack.c.h.b16 %v2373
        %v3131 = vunpack.c.l.b16 %v2374
        %v3132 = vunpack.c.h.b16 %v2374
        %v3133 = vunpack.c.l.b16 %v2375
        %v3134 = vunpack.c.h.b16 %v2375
        %v3135 = vunpack.c.l.b16 %v2376
        %v3136 = vunpack.c.h.b16 %v2376
        %v3137 = vunpack.c.l.b16 %v2377
        %v3138 = vunpack.c.h.b16 %v2377
        %v3139 = vunpack.c.l.b16 %v2378
        %v3140 = vunpack.c.h.b16 %v2378
        %v3141 = vunpack.c.l.b16 %v2379
        %v3142 = vunpack.c.h.b16 %v2379
        %v3143 = vunpack.c.l.b16 %v2380
        %v3144 = vunpack.c.h.b16 %v2380
        %v3145 = vunpack.c.l.b16 %v2381
        %v3146 = vunpack.c.h.b16 %v2381
        %v3147 = vunpack.c.l.b16 %v2382
        %v3148 = vunpack.c.h.b16 %v2382
        %v3149 = vunpack.c.l.b16 %v2383
        %v3150 = vunpack.c.h.b16 %v2383
        %v3151 = vunpack.c.l.b16 %v2384
        %v3152 = vunpack.c.h.b16 %v2384
        %v3153 = vunpack.c.l.b16 %v2385
        %v3154 = vunpack.c.h.b16 %v2385
        %v3155 = vunpack.c.l.b16 %v2386
        %v3156 = vunpack.c.h.b16 %v2386
        %v3157 = vunpack.c.l.b16 %v2387
        %v3158 = vunpack.c.h.b16 %v2387
        %v3159 = vunpack.c.l.b16 %v2388
        %v3160 = vunpack.c.h.b16 %v2388
        %v3161 = vunpack.c.l.b16 %v2389
        %v3162 = vunpack.c.h.b16 %v2389
        %v3163 = vunpack.c.l.b16 %v2390
        %v3164 = vunpack.c.h.b16 %v2390
        %v3165 = vunpack.c.l.b16 %v2391
        %v3166 = vunpack.c.h.b16 %v2391
        %v3167 = vunpack.c.l.b16 %v2392
        %v3168 = vunpack.c.h.b16 %v2392
        %v3169 = vunpack.c.l.b16 %v2393
        %v3170 = vunpack.c.h.b16 %v2393
        %v3171 = vunpack.c.l.b16 %v2394
        %v3172 = vunpack.c.h.b16 %v2394
        %v3173 = vunpack.c.l.b16 %v2395
        %v3174 = vunpack.c.h.b16 %v2395
        %v3175 = vunpack.c.l.b16 %v2396
        %v3176 = vunpack.c.h.b16 %v2396
        %v3177 = vunpack.c.l.b16 %v2397
        %v3178 = vunpack.c.h.b16 %v2397
        %v3179 = vunpack.c.l.b16 %v2398
        %v3180 = vunpack.c.h.b16 %v2398
        %v3181 = vunpack.c.l.b16 %v2399
        %v3182 = vunpack.c.h.b16 %v2399
        %v3183 = vunpack.c.l.b16 %v2400
        %v3184 = vunpack.c.h.b16 %v2400
        %v3185 = vunpack.c.l.b16 %v2401
        %v3186 = vunpack.c.h.b16 %v2401
        %v3187 = vunpack.c.l.b16 %v2402
        %v3188 = vunpack.c.h.b16 %v2402
        %v3189 = vunpack.c.l.b16 %v2403
        %v3190 = vunpack.c.h.b16 %v2403
        %v3191 = vunpack.c.l.b16 %v2404
        %v3192 = vunpack.c.h.b16 %v2404
        %v3193 = vunpack.c.l.b16 %v2405
        %v3194 = vunpack.c.h.b16 %v2405
        %v3195 = vunpack.c.l.b16 %v2406
        %v3196 = vunpack.c.h.b16 %v2406
        %v3197 = vunpack.c.l.b16 %v2407
        %v3198 = vunpack.c.h.b16 %v2407
        %v3199 = vunpack.c.l.b16 %v2408
        %v3200 = vunpack.c.h.b16 %v2408
        %v3201 = vunpack.c.l.b16 %v2409
        %v3202 = vunpack.c.h.b16 %v2409
        %v3203 = vunpack.c.l.b16 %v2410
        %v3204 = vunpack.c.h.b16 %v2410
        %v3205 = vunpack.c.l.b16 %v2411
        %v3206 = vunpack.c.h.b16 %v2411
        %v3207 = vunpack.c.l.b16 %v2412
        %v3208 = vunpack.c.h.b16 %v2412
        %v3209 = vunpack.c.l.b16 %v2413
        %v3210 = vunpack.c.h.b16 %v2413
        %v3211 = vunpack.c.l.b16 %v2414
        %v3212 = vunpack.c.h.b16 %v2414
        %v3213 = vunpack.c.l.b16 %v2415
        %v3214 = vunpack.c.h.b16 %v2415
        %v3215 = vunpack.c.l.b16 %v2416
        %v3216 = vunpack.c.h.b16 %v2416
        %v3217 = vunpack.c.l.b16 %v2417
        %v3218 = vunpack.c.h.b16 %v2417
        %v3219 = vpack.c.b16 %v3031, %v3027
        %v3220 = vpack.c.b16 %v3032, %v3028
        %v3221 = vpack.c.b16 %v3033, %v3029
        %v3222 = vpack.c.b16 %v3034, %v3030
        %v3223 = vpack.c.b16 %v3039, %v3035
        %v3224 = vpack.c.b16 %v3040, %v3036
        %v3225 = vpack.c.b16 %v3041, %v3037
        %v3226 = vpack.c.b16 %v3042, %v3038
        %v3227 = vpack.c.b16 %v3047, %v3043
        %v3228 = vpack.c.b16 %v3048, %v3044
        %v3229 = vpack.c.b16 %v3049, %v3045
        %v3230 = vpack.c.b16 %v3050, %v3046
        %v3231 = vpack.c.b16 %v3055, %v3051
        %v3232 = vpack.c.b16 %v3056, %v3052
        %v3233 = vpack.c.b16 %v3057, %v3053
        %v3234 = vpack.c.b16 %v3058, %v3054
        %v3235 = vpack.c.b16 %v3063, %v3059
        %v3236 = vpack.c.b16 %v3064, %v3060
        %v3237 = vpack.c.b16 %v3065, %v3061
        %v3238 = vpack.c.b16 %v3066, %v3062
        %v3239 = vpack.c.b16 %v3071, %v3067
        %v3240 = vpack.c.b16 %v3072, %v3068
        %v3241 = vpack.c.b16 %v3073, %v3069
        %v3242 = vpack.c.b16 %v3074, %v3070
        %v3243 = vpack.c.b16 %v3079, %v3075
        %v3244 = vpack.c.b16 %v3080, %v3076
        %v3245 = vpack.c.b16 %v3081, %v3077
        %v3246 = vpack.c.b16 %v3082, %v3078
        %v3247 = vpack.c.b16 %v3087, %v3083
        %v3248 = vpack.c.b16 %v3088, %v3084
        %v3249 = vpack.c.b16 %v3089, %v3085
        %v3250 = vpack.c.b16 %v3090, %v3086
        %v3251 = vpack.c.b16 %v3095, %v3091
        %v3252 = vpack.c.b16 %v3096, %v3092
        %v3253 = vpack.c.b16 %v3097, %v3093
        %v3254 = vpack.c.b16 %v3098, %v3094
        %v3255 = vpack.c.b16 %v3103, %v3099
        %v3256 = vpack.c.b16 %v3104, %v3100
        %v3257 = vpack.c.b16 %v3105, %v3101
        %v3258 = vpack.c.b16 %v3106, %v3102
        %v3259 = vpack.c.b16 %v3111, %v3107
        %v3260 = vpack.c.b16 %v3112, %v3108
        %v3261 = vpack.c.b16 %v3113, %v3109
        %v3262 = vpack.c.b16 %v3114, %v3110
        %v3263 = vpack.c.b16 %v3119, %v3115
        %v3264 = vpack.c.b16 %v3120, %v3116
        %v3265 = vpack.c.b16 %v3121, %v3117
        %v3266 = vpack.c.b16 %v3122, %v3118
        %v3267 = vpack.c.b16 %v3127, %v3123
        %v3268 = vpack.c.b16 %v3128, %v3124
        %v3269 = vpack.c.b16 %v3129, %v3125
        %v3270 = vpack.c.b16 %v3130, %v3126
        %v3271 = vpack.c.b16 %v3135, %v3131
        %v3272 = vpack.c.b16 %v3136, %v3132
        %v3273 = vpack.c.b16 %v3137, %v3133
        %v3274 = vpack.c.b16 %v3138, %v3134
        %v3275 = vpack.c.b16 %v3143, %v3139
        %v3276 = vpack.c.b16 %v3144, %v3140
        %v3277 = vpack.c.b16 %v3145, %v3141
        %v3278 = vpack.c.b16 %v3146, %v3142
        %v3279 = vpack.c.b16 %v3151, %v3147
        %v3280 = vpack.c.b16 %v3152, %v3148
        %v3281 = vpack.c.b16 %v3153, %v3149
        %v3282 = vpack.c.b16 %v3154, %v3150
        %v3283 = vpack.c.b16 %v3159, %v3155
        %v3284 = vpack.c.b16 %v3160, %v3156
        %v3285 = vpack.c.b16 %v3161, %v3157
        %v3286 = vpack.c.b16 %v3162, %v3158
        %v3287 = vpack.c.b16 %v3167, %v3163
        %v3288 = vpack.c.b16 %v3168, %v3164
        %v3289 = vpack.c.b16 %v3169, %v3165
        %v3290 = vpack.c.b16 %v3170, %v3166
        %v3291 = vpack.c.b16 %v3175, %v3171
        %v3292 = vpack.c.b16 %v3176, %v3172
        %v3293 = vpack.c.b16 %v3177, %v3173
        %v3294 = vpack.c.b16 %v3178, %v3174
        %v3295 = vpack.c.b16 %v3183, %v3179
        %v3296 = vpack.c.b16 %v3184, %v3180
        %v3297 = vpack.c.b16 %v3185, %v3181
        %v3298 = vpack.c.b16 %v3186, %v3182
        %v3299 = vpack.c.b16 %v3191, %v3187
        %v3300 = vpack.c.b16 %v3192, %v3188
        %v3301 = vpack.c.b16 %v3193, %v3189
        %v3302 = vpack.c.b16 %v3194, %v3190
        %v3303 = vpack.c.b16 %v3199, %v3195
        %v3304 = vpack.c.b16 %v3200, %v3196
        %v3305 = vpack.c.b16 %v3201, %v3197
        %v3306 = vpack.c.b16 %v3202, %v3198
        %v3307 = vpack.c.b16 %v3207, %v3203
        %v3308 = vpack.c.b16 %v3208, %v3204
        %v3309 = vpack.c.b16 %v3209, %v3205
        %v3310 = vpack.c.b16 %v3210, %v3206
        %v3311 = vpack.c.b16 %v3215, %v3211
        %v3312 = vpack.c.b16 %v3216, %v3212
        %v3313 = vpack.c.b16 %v3217, %v3213
        %v3314 = vpack.c.b16 %v3218, %v3214
        %3411 = vmatprep.subr.bf16.mxu0 0
        %3412 = vmatpush1.bf16.msra.mxu0 %v2418
        %3413 = vmatprep.subr.bf16.mxu0 0
        %3414 = vmatpush1.bf16.msra.mxu0 %v2419
        %3415 = vmatprep.subr.bf16.mxu0 0
        %3416 = vmatpush1.bf16.msra.mxu0 %v2420
        %3417 = vmatprep.subr.bf16.mxu0 0
        %3418 = vmatpush1.bf16.msra.mxu0 %v2421
        %3419 = vmatprep.subr.bf16.mxu0 0
        %3420 = vmatpush1.bf16.msra.mxu0 %v2422
        %3421 = vmatprep.subr.bf16.mxu0 0
        %3422 = vmatpush1.bf16.msra.mxu0 %v2423
        %3423 = vmatprep.subr.bf16.mxu0 0
        %3424 = vmatpush1.bf16.msra.mxu0 %v2424
        %3425 = vmatprep.subr.bf16.mxu0 0
        %3426 = vmatpush1.bf16.msra.mxu0 %v2425
        %3427 = vmatprep.subr.bf16.mxu0 0
        %3428 = vmatpush1.bf16.msra.mxu0 %v2426
        %3429 = vmatprep.subr.bf16.mxu0 0
        %3430 = vmatpush1.bf16.msra.mxu0 %v2427
        %3431 = vmatprep.subr.bf16.mxu0 0
        %3432 = vmatpush1.bf16.msra.mxu0 %v2428
        %3433 = vmatprep.subr.bf16.mxu0 0
        %3434 = vmatpush1.bf16.msra.mxu0 %v2429
        %3435 = vmatprep.subr.bf16.mxu0 0
        %3436 = vmatpush1.bf16.msra.mxu0 %v2430
        %3437 = vmatprep.subr.bf16.mxu0 0
        %3438 = vmatpush1.bf16.msra.mxu0 %v2431
        %3439 = vmatprep.subr.bf16.mxu0 0
        %3440 = vmatpush1.bf16.msra.mxu0 %v2432
        %3441 = vmatprep.subr.bf16.mxu0 0
        %3442 = vmatpush1.bf16.msra.mxu0 %v2433
        %3443 = vmatprep.mubr.bf16.mxu0 %v3220
        %3444 = vmatmul.mubr.bf16.gmra.mrb[0].mxu0 %v3219
        %v3445 = vpop.f32.mrb[0].mxu0
        %v3446 = vadd.f32 %v2741, %v3445
        %v3447 = vpop.f32.mrb[0].mxu0
        %v3448 = vpop.f32.mrb[0].mxu0
        %v3449 = vadd.f32 %v2744, %v3448
        %v3450 = vpop.f32.mrb[0].mxu0
        %3451 = vmatprep.mubr.bf16.mxu0 %v3224
        %3452 = vmatmul.mubr.bf16.gmra.mrb[0].mxu0 %v3223
        %v3453 = vpop.f32.mrb[0].mxu0
        %v3454 = vadd.f32 %v2749, %v3453
        %v3455 = vpop.f32.mrb[0].mxu0
        %v3456 = vpop.f32.mrb[0].mxu0
        %v3457 = vadd.f32 %v2752, %v3456
        %v3458 = vpop.f32.mrb[0].mxu0
        %3459 = vmatprep.mubr.bf16.mxu0 %v3228
        %3460 = vmatmul.mubr.bf16.gmra.mrb[0].mxu0 %v3227
        %v3461 = vpop.f32.mrb[0].mxu0
        %v3462 = vadd.f32 %v2757, %v3461
        %v3463 = vpop.f32.mrb[0].mxu0
        %v3464 = vpop.f32.mrb[0].mxu0
        %v3465 = vadd.f32 %v2760, %v3464
        %v3466 = vpop.f32.mrb[0].mxu0
        %3467 = vmatprep.mubr.bf16.mxu0 %v3232
        %3468 = vmatmul.mubr.bf16.gmra.mrb[0].mxu0 %v3231
        %v3469 = vpop.f32.mrb[0].mxu0
        %v3470 = vadd.f32 %v2765, %v3469
        %v3471 = vpop.f32.mrb[0].mxu0
        %v3472 = vpop.f32.mrb[0].mxu0
        %v3473 = vadd.f32 %v2768, %v3472
        %v3474 = vpop.f32.mrb[0].mxu0
        %3475 = vmatprep.mubr.bf16.mxu0 %v3236
        %3476 = vmatmul.mubr.bf16.gmra.mrb[0].mxu0 %v3235
        %v3477 = vpop.f32.mrb[0].mxu0
        %v3478 = vadd.f32 %v2773, %v3477
        %v3479 = vpop.f32.mrb[0].mxu0
        %v3480 = vpop.f32.mrb[0].mxu0
        %v3481 = vadd.f32 %v2776, %v3480
        %v3482 = vpop.f32.mrb[0].mxu0
        %3483 = vmatprep.mubr.bf16.mxu0 %v3240
        %3484 = vmatmul.mubr.bf16.gmra.mrb[0].mxu0 %v3239
        %v3485 = vpop.f32.mrb[0].mxu0
        %v3486 = vadd.f32 %v2781, %v3485
        %v3487 = vpop.f32.mrb[0].mxu0
        %v3488 = vpop.f32.mrb[0].mxu0
        %v3489 = vadd.f32 %v2784, %v3488
        %v3490 = vpop.f32.mrb[0].mxu0
        %3491 = vmatprep.mubr.bf16.mxu0 %v3244
        %3492 = vmatmul.mubr.bf16.gmra.mrb[0].mxu0 %v3243
        %v3493 = vpop.f32.mrb[0].mxu0
        %v3494 = vadd.f32 %v2789, %v3493
        %v3495 = vpop.f32.mrb[0].mxu0
        %v3496 = vpop.f32.mrb[0].mxu0
        %v3497 = vadd.f32 %v2792, %v3496
        %v3498 = vpop.f32.mrb[0].mxu0
        %3499 = vmatprep.mubr.bf16.mxu0 %v3248
        %3500 = vmatmul.mubr.bf16.gmra.mrb[0].mxu0 %v3247
        %v3501 = vpop.f32.mrb[0].mxu0
        %v3502 = vadd.f32 %v2797, %v3501
        %v3503 = vpop.f32.mrb[0].mxu0
        %v3504 = vpop.f32.mrb[0].mxu0
        %v3505 = vadd.f32 %v2800, %v3504
        %v3506 = vpop.f32.mrb[0].mxu0
        %3507 = vmatprep.mubr.bf16.mxu0 %v3252
        %3508 = vmatmul.mubr.bf16.gmra.mrb[0].mxu0 %v3251
        %v3509 = vpop.f32.mrb[0].mxu0
        %v3510 = vadd.f32 %v2805, %v3509
        %v3511 = vpop.f32.mrb[0].mxu0
        %v3512 = vpop.f32.mrb[0].mxu0
        %v3513 = vadd.f32 %v2808, %v3512
        %v3514 = vpop.f32.mrb[0].mxu0
        %3515 = vmatprep.mubr.bf16.mxu0 %v3256
        %3516 = vmatmul.mubr.bf16.gmra.mrb[0].mxu0 %v3255
        %v3517 = vpop.f32.mrb[0].mxu0
        %v3518 = vadd.f32 %v2813, %v3517
        %v3519 = vpop.f32.mrb[0].mxu0
        %v3520 = vpop.f32.mrb[0].mxu0
        %v3521 = vadd.f32 %v2816, %v3520
        %v3522 = vpop.f32.mrb[0].mxu0
        %3523 = vmatprep.mubr.bf16.mxu0 %v3260
        %3524 = vmatmul.mubr.bf16.gmra.mrb[0].mxu0 %v3259
        %v3525 = vpop.f32.mrb[0].mxu0
        %v3526 = vadd.f32 %v2821, %v3525
        %v3527 = vpop.f32.mrb[0].mxu0
        %v3528 = vpop.f32.mrb[0].mxu0
        %v3529 = vadd.f32 %v2824, %v3528
        %v3530 = vpop.f32.mrb[0].mxu0
        %3531 = vmatprep.mubr.bf16.mxu0 %v3264
        %3532 = vmatmul.mubr.bf16.gmra.mrb[0].mxu0 %v3263
        %v3533 = vpop.f32.mrb[0].mxu0
        %v3534 = vadd.f32 %v2829, %v3533
        %v3535 = vpop.f32.mrb[0].mxu0
        %v3536 = vpop.f32.mrb[0].mxu0
        %v3537 = vadd.f32 %v2832, %v3536
        %v3538 = vpop.f32.mrb[0].mxu0
        %3539 = vmatprep.mubr.bf16.mxu0 %v3268
        %3540 = vmatmul.mubr.bf16.gmra.mrb[0].mxu0 %v3267
        %v3541 = vpop.f32.mrb[0].mxu0
        %v3542 = vadd.f32 %v2837, %v3541
        %v3543 = vpop.f32.mrb[0].mxu0
        %v3544 = vpop.f32.mrb[0].mxu0
        %v3545 = vadd.f32 %v2840, %v3544
        %v3546 = vpop.f32.mrb[0].mxu0
        %3547 = vmatprep.mubr.bf16.mxu0 %v3272
        %3548 = vmatmul.mubr.bf16.gmra.mrb[0].mxu0 %v3271
        %v3549 = vpop.f32.mrb[0].mxu0
        %v3550 = vadd.f32 %v2845, %v3549
        %v3551 = vpop.f32.mrb[0].mxu0
        %v3552 = vpop.f32.mrb[0].mxu0
        %v3553 = vadd.f32 %v2848, %v3552
        %v3554 = vpop.f32.mrb[0].mxu0
        %3555 = vmatprep.mubr.bf16.mxu0 %v3276
        %3556 = vmatmul.mubr.bf16.gmra.mrb[0].mxu0 %v3275
        %v3557 = vpop.f32.mrb[0].mxu0
        %v3558 = vadd.f32 %v2853, %v3557
        %v3559 = vpop.f32.mrb[0].mxu0
        %v3560 = vpop.f32.mrb[0].mxu0
        %v3561 = vadd.f32 %v2856, %v3560
        %v3562 = vpop.f32.mrb[0].mxu0
        %3563 = vmatprep.mubr.bf16.mxu0 %v3280
        %3564 = vmatmul.mubr.bf16.gmra.mrb[0].mxu0 %v3279
        %v3565 = vpop.f32.mrb[0].mxu0
        %v3566 = vadd.f32 %v2861, %v3565
        %v3567 = vpop.f32.mrb[0].mxu0
        %v3568 = vpop.f32.mrb[0].mxu0
        %v3569 = vadd.f32 %v2864, %v3568
        %v3570 = vpop.f32.mrb[0].mxu0
        %3571 = vmatprep.mubr.bf16.mxu0 %v3284
        %3572 = vmatmul.mubr.bf16.gmra.mrb[0].mxu0 %v3283
        %v3573 = vpop.f32.mrb[0].mxu0
        %v3574 = vadd.f32 %v2869, %v3573
        %v3575 = vpop.f32.mrb[0].mxu0
        %v3576 = vpop.f32.mrb[0].mxu0
        %v3577 = vadd.f32 %v2872, %v3576
        %v3578 = vpop.f32.mrb[0].mxu0
        %3579 = vmatprep.mubr.bf16.mxu0 %v3288
        %3580 = vmatmul.mubr.bf16.gmra.mrb[0].mxu0 %v3287
        %v3581 = vpop.f32.mrb[0].mxu0
        %v3582 = vadd.f32 %v2877, %v3581
        %v3583 = vpop.f32.mrb[0].mxu0
        %v3584 = vpop.f32.mrb[0].mxu0
        %v3585 = vadd.f32 %v2880, %v3584
        %v3586 = vpop.f32.mrb[0].mxu0
        %3587 = vmatprep.mubr.bf16.mxu0 %v3292
        %3588 = vmatmul.mubr.bf16.gmra.mrb[0].mxu0 %v3291
        %v3589 = vpop.f32.mrb[0].mxu0
        %v3590 = vadd.f32 %v2885, %v3589
        %v3591 = vpop.f32.mrb[0].mxu0
        %v3592 = vpop.f32.mrb[0].mxu0
        %v3593 = vadd.f32 %v2888, %v3592
        %v3594 = vpop.f32.mrb[0].mxu0
        %3595 = vmatprep.mubr.bf16.mxu0 %v3296
        %3596 = vmatmul.mubr.bf16.gmra.mrb[0].mxu0 %v3295
        %v3597 = vpop.f32.mrb[0].mxu0
        %v3598 = vadd.f32 %v2893, %v3597
        %v3599 = vpop.f32.mrb[0].mxu0
        %v3600 = vpop.f32.mrb[0].mxu0
        %v3601 = vadd.f32 %v2896, %v3600
        %v3602 = vpop.f32.mrb[0].mxu0
        %3603 = vmatprep.mubr.bf16.mxu0 %v3300
        %3604 = vmatmul.mubr.bf16.gmra.mrb[0].mxu0 %v3299
        %v3605 = vpop.f32.mrb[0].mxu0
        %v3606 = vadd.f32 %v2901, %v3605
        %v3607 = vpop.f32.mrb[0].mxu0
        %v3608 = vpop.f32.mrb[0].mxu0
        %v3609 = vadd.f32 %v2904, %v3608
        %v3610 = vpop.f32.mrb[0].mxu0
        %3611 = vmatprep.mubr.bf16.mxu0 %v3304
        %3612 = vmatmul.mubr.bf16.gmra.mrb[0].mxu0 %v3303
        %v3613 = vpop.f32.mrb[0].mxu0
        %v3614 = vadd.f32 %v2909, %v3613
        %v3615 = vpop.f32.mrb[0].mxu0
        %v3616 = vpop.f32.mrb[0].mxu0
        %v3617 = vadd.f32 %v2912, %v3616
        %v3618 = vpop.f32.mrb[0].mxu0
        %3619 = vmatprep.mubr.bf16.mxu0 %v3308
        %3620 = vmatmul.mubr.bf16.gmra.mrb[0].mxu0 %v3307
        %v3621 = vpop.f32.mrb[0].mxu0
        %v3622 = vadd.f32 %v2917, %v3621
        %v3623 = vpop.f32.mrb[0].mxu0
        %v3624 = vpop.f32.mrb[0].mxu0
        %v3625 = vadd.f32 %v2920, %v3624
        %v3626 = vpop.f32.mrb[0].mxu0
        %3627 = vmatprep.mubr.bf16.mxu0 %v3312
        %3628 = vmatmul.mubr.bf16.gmra.mrb[0].mxu0 %v3311
        %v3629 = vpop.f32.mrb[0].mxu0
        %v3630 = vadd.f32 %v2925, %v3629
        %v3631 = vpop.f32.mrb[0].mxu0
        %v3632 = vpop.f32.mrb[0].mxu0
        %v3633 = vadd.f32 %v2928, %v3632
        %v3634 = vpop.f32.mrb[0].mxu0
        %3635 = vdwg.mxu0
        %3636 = vmatprep.subr.bf16.mxu0 0
        %3637 = vmatpush1.bf16.msra.mxu0 %v2434
        %3638 = vmatprep.subr.bf16.mxu0 0
        %3639 = vmatpush1.bf16.msra.mxu0 %v2435
        %3640 = vmatprep.subr.bf16.mxu0 0
        %3641 = vmatpush1.bf16.msra.mxu0 %v2436
        %3642 = vmatprep.subr.bf16.mxu0 0
        %3643 = vmatpush1.bf16.msra.mxu0 %v2437
        %3644 = vmatprep.subr.bf16.mxu0 0
        %3645 = vmatpush1.bf16.msra.mxu0 %v2438
        %3646 = vmatprep.subr.bf16.mxu0 0
        %3647 = vmatpush1.bf16.msra.mxu0 %v2439
        %3648 = vmatprep.subr.bf16.mxu0 0
        %3649 = vmatpush1.bf16.msra.mxu0 %v2440
        %3650 = vmatprep.subr.bf16.mxu0 0
        %3651 = vmatpush1.bf16.msra.mxu0 %v2441
        %3652 = vmatprep.subr.bf16.mxu0 0
        %3653 = vmatpush1.bf16.msra.mxu0 %v2442
        %3654 = vmatprep.subr.bf16.mxu0 0
        %3655 = vmatpush1.bf16.msra.mxu0 %v2443
        %3656 = vmatprep.subr.bf16.mxu0 0
        %3657 = vmatpush1.bf16.msra.mxu0 %v2444
        %3658 = vmatprep.subr.bf16.mxu0 0
        %3659 = vmatpush1.bf16.msra.mxu0 %v2445
        %3660 = vmatprep.subr.bf16.mxu0 0
        %3661 = vmatpush1.bf16.msra.mxu0 %v2446
        %3662 = vmatprep.subr.bf16.mxu0 0
        %3663 = vmatpush1.bf16.msra.mxu0 %v2447
        %3664 = vmatprep.subr.bf16.mxu0 0
        %3665 = vmatpush1.bf16.msra.mxu0 %v2448
        %3666 = vmatprep.subr.bf16.mxu0 0
        %3667 = vmatpush1.bf16.msra.mxu0 %v2449
        %3668 = vmatprep.mubr.bf16.mxu0 %v3222
        %3669 = vmatmul.mubr.bf16.gmra.mrb[0].mxu0 %v3221
        %v3670 = vpop.f32.mrb[0].mxu0
        %v3671 = vadd.f32 %v3446, %v3670
        %v3672 = vpop.f32.mrb[0].mxu0
        %v3673 = vpop.f32.mrb[0].mxu0
        %v3674 = vadd.f32 %v3449, %v3673
        %v3675 = vpop.f32.mrb[0].mxu0
        %3676 = vmatprep.mubr.bf16.mxu0 %v3226
        %3677 = vmatmul.mubr.bf16.gmra.mrb[0].mxu0 %v3225
        %v3678 = vpop.f32.mrb[0].mxu0
        %v3679 = vadd.f32 %v3454, %v3678
        %v3680 = vpop.f32.mrb[0].mxu0
        %v3681 = vpop.f32.mrb[0].mxu0
        %v3682 = vadd.f32 %v3457, %v3681
        %v3683 = vpop.f32.mrb[0].mxu0
        %3684 = vmatprep.mubr.bf16.mxu0 %v3230
        %3685 = vmatmul.mubr.bf16.gmra.mrb[0].mxu0 %v3229
        %v3686 = vpop.f32.mrb[0].mxu0
        %v3687 = vadd.f32 %v3462, %v3686
        %v3688 = vpop.f32.mrb[0].mxu0
        %v3689 = vpop.f32.mrb[0].mxu0
        %v3690 = vadd.f32 %v3465, %v3689
        %v3691 = vpop.f32.mrb[0].mxu0
        %3692 = vmatprep.mubr.bf16.mxu0 %v3234
        %3693 = vmatmul.mubr.bf16.gmra.mrb[0].mxu0 %v3233
        %v3694 = vpop.f32.mrb[0].mxu0
        %v3695 = vadd.f32 %v3470, %v3694
        %v3696 = vpop.f32.mrb[0].mxu0
        %v3697 = vpop.f32.mrb[0].mxu0
        %v3698 = vadd.f32 %v3473, %v3697
        %v3699 = vpop.f32.mrb[0].mxu0
        %3700 = vmatprep.mubr.bf16.mxu0 %v3238
        %3701 = vmatmul.mubr.bf16.gmra.mrb[0].mxu0 %v3237
        %v3702 = vpop.f32.mrb[0].mxu0
        %v3703 = vadd.f32 %v3478, %v3702
        %v3704 = vpop.f32.mrb[0].mxu0
        %v3705 = vpop.f32.mrb[0].mxu0
        %v3706 = vadd.f32 %v3481, %v3705
        %v3707 = vpop.f32.mrb[0].mxu0
        %3708 = vmatprep.mubr.bf16.mxu0 %v3242
        %3709 = vmatmul.mubr.bf16.gmra.mrb[0].mxu0 %v3241
        %v3710 = vpop.f32.mrb[0].mxu0
        %v3711 = vadd.f32 %v3486, %v3710
        %v3712 = vpop.f32.mrb[0].mxu0
        %v3713 = vpop.f32.mrb[0].mxu0
        %v3714 = vadd.f32 %v3489, %v3713
        %v3715 = vpop.f32.mrb[0].mxu0
        %3716 = vmatprep.mubr.bf16.mxu0 %v3246
        %3717 = vmatmul.mubr.bf16.gmra.mrb[0].mxu0 %v3245
        %v3718 = vpop.f32.mrb[0].mxu0
        %v3719 = vadd.f32 %v3494, %v3718
        %v3720 = vpop.f32.mrb[0].mxu0
        %v3721 = vpop.f32.mrb[0].mxu0
        %v3722 = vadd.f32 %v3497, %v3721
        %v3723 = vpop.f32.mrb[0].mxu0
        %3724 = vmatprep.mubr.bf16.mxu0 %v3250
        %3725 = vmatmul.mubr.bf16.gmra.mrb[0].mxu0 %v3249
        %v3726 = vpop.f32.mrb[0].mxu0
        %v3727 = vadd.f32 %v3502, %v3726
        %v3728 = vpop.f32.mrb[0].mxu0
        %v3729 = vpop.f32.mrb[0].mxu0
        %v3730 = vadd.f32 %v3505, %v3729
        %v3731 = vpop.f32.mrb[0].mxu0
        %3732 = vmatprep.mubr.bf16.mxu0 %v3254
        %3733 = vmatmul.mubr.bf16.gmra.mrb[0].mxu0 %v3253
        %v3734 = vpop.f32.mrb[0].mxu0
        %v3735 = vadd.f32 %v3510, %v3734
        %v3736 = vpop.f32.mrb[0].mxu0
        %v3737 = vpop.f32.mrb[0].mxu0
        %v3738 = vadd.f32 %v3513, %v3737
        %v3739 = vpop.f32.mrb[0].mxu0
        %3740 = vmatprep.mubr.bf16.mxu0 %v3258
        %3741 = vmatmul.mubr.bf16.gmra.mrb[0].mxu0 %v3257
        %v3742 = vpop.f32.mrb[0].mxu0
        %v3743 = vadd.f32 %v3518, %v3742
        %v3744 = vpop.f32.mrb[0].mxu0
        %v3745 = vpop.f32.mrb[0].mxu0
        %v3746 = vadd.f32 %v3521, %v3745
        %v3747 = vpop.f32.mrb[0].mxu0
        %3748 = vmatprep.mubr.bf16.mxu0 %v3262
        %3749 = vmatmul.mubr.bf16.gmra.mrb[0].mxu0 %v3261
        %v3750 = vpop.f32.mrb[0].mxu0
        %v3751 = vadd.f32 %v3526, %v3750
        %v3752 = vpop.f32.mrb[0].mxu0
        %v3753 = vpop.f32.mrb[0].mxu0
        %v3754 = vadd.f32 %v3529, %v3753
        %v3755 = vpop.f32.mrb[0].mxu0
        %3756 = vmatprep.mubr.bf16.mxu0 %v3266
        %3757 = vmatmul.mubr.bf16.gmra.mrb[0].mxu0 %v3265
        %v3758 = vpop.f32.mrb[0].mxu0
        %v3759 = vadd.f32 %v3534, %v3758
        %v3760 = vpop.f32.mrb[0].mxu0
        %v3761 = vpop.f32.mrb[0].mxu0
        %v3762 = vadd.f32 %v3537, %v3761
        %v3763 = vpop.f32.mrb[0].mxu0
        %3764 = vmatprep.mubr.bf16.mxu0 %v3270
        %3765 = vmatmul.mubr.bf16.gmra.mrb[0].mxu0 %v3269
        %v3766 = vpop.f32.mrb[0].mxu0
        %v3767 = vadd.f32 %v3542, %v3766
        %v3768 = vpop.f32.mrb[0].mxu0
        %v3769 = vpop.f32.mrb[0].mxu0
        %v3770 = vadd.f32 %v3545, %v3769
        %v3771 = vpop.f32.mrb[0].mxu0
        %3772 = vmatprep.mubr.bf16.mxu0 %v3274
        %3773 = vmatmul.mubr.bf16.gmra.mrb[0].mxu0 %v3273
        %v3774 = vpop.f32.mrb[0].mxu0
        %v3775 = vadd.f32 %v3550, %v3774
        %v3776 = vpop.f32.mrb[0].mxu0
        %v3777 = vpop.f32.mrb[0].mxu0
        %v3778 = vadd.f32 %v3553, %v3777
        %v3779 = vpop.f32.mrb[0].mxu0
        %3780 = vmatprep.mubr.bf16.mxu0 %v3278
        %3781 = vmatmul.mubr.bf16.gmra.mrb[0].mxu0 %v3277
        %v3782 = vpop.f32.mrb[0].mxu0
        %v3783 = vadd.f32 %v3558, %v3782
        %v3784 = vpop.f32.mrb[0].mxu0
        %v3785 = vpop.f32.mrb[0].mxu0
        %v3786 = vadd.f32 %v3561, %v3785
        %v3787 = vpop.f32.mrb[0].mxu0
        %3788 = vmatprep.mubr.bf16.mxu0 %v3282
        %3789 = vmatmul.mubr.bf16.gmra.mrb[0].mxu0 %v3281
        %v3790 = vpop.f32.mrb[0].mxu0
        %v3791 = vadd.f32 %v3566, %v3790
        %v3792 = vpop.f32.mrb[0].mxu0
        %v3793 = vpop.f32.mrb[0].mxu0
        %v3794 = vadd.f32 %v3569, %v3793
        %v3795 = vpop.f32.mrb[0].mxu0
        %3796 = vmatprep.mubr.bf16.mxu0 %v3286
        %3797 = vmatmul.mubr.bf16.gmra.mrb[0].mxu0 %v3285
        %v3798 = vpop.f32.mrb[0].mxu0
        %v3799 = vadd.f32 %v3574, %v3798
        %v3800 = vpop.f32.mrb[0].mxu0
        %v3801 = vpop.f32.mrb[0].mxu0
        %v3802 = vadd.f32 %v3577, %v3801
        %v3803 = vpop.f32.mrb[0].mxu0
        %3804 = vmatprep.mubr.bf16.mxu0 %v3290
        %3805 = vmatmul.mubr.bf16.gmra.mrb[0].mxu0 %v3289
        %v3806 = vpop.f32.mrb[0].mxu0
        %v3807 = vadd.f32 %v3582, %v3806
        %v3808 = vpop.f32.mrb[0].mxu0
        %v3809 = vpop.f32.mrb[0].mxu0
        %v3810 = vadd.f32 %v3585, %v3809
        %v3811 = vpop.f32.mrb[0].mxu0
        %3812 = vmatprep.mubr.bf16.mxu0 %v3294
        %3813 = vmatmul.mubr.bf16.gmra.mrb[0].mxu0 %v3293
        %v3814 = vpop.f32.mrb[0].mxu0
        %v3815 = vadd.f32 %v3590, %v3814
        %v3816 = vpop.f32.mrb[0].mxu0
        %v3817 = vpop.f32.mrb[0].mxu0
        %v3818 = vadd.f32 %v3593, %v3817
        %v3819 = vpop.f32.mrb[0].mxu0
        %3820 = vmatprep.mubr.bf16.mxu0 %v3298
        %3821 = vmatmul.mubr.bf16.gmra.mrb[0].mxu0 %v3297
        %v3822 = vpop.f32.mrb[0].mxu0
        %v3823 = vadd.f32 %v3598, %v3822
        %v3824 = vpop.f32.mrb[0].mxu0
        %v3825 = vpop.f32.mrb[0].mxu0
        %v3826 = vadd.f32 %v3601, %v3825
        %v3827 = vpop.f32.mrb[0].mxu0
        %3828 = vmatprep.mubr.bf16.mxu0 %v3302
        %3829 = vmatmul.mubr.bf16.gmra.mrb[0].mxu0 %v3301
        %v3830 = vpop.f32.mrb[0].mxu0
        %v3831 = vadd.f32 %v3606, %v3830
        %v3832 = vpop.f32.mrb[0].mxu0
        %v3833 = vpop.f32.mrb[0].mxu0
        %v3834 = vadd.f32 %v3609, %v3833
        %v3835 = vpop.f32.mrb[0].mxu0
        %3836 = vmatprep.mubr.bf16.mxu0 %v3306
        %3837 = vmatmul.mubr.bf16.gmra.mrb[0].mxu0 %v3305
        %v3838 = vpop.f32.mrb[0].mxu0
        %v3839 = vadd.f32 %v3614, %v3838
        %v3840 = vpop.f32.mrb[0].mxu0
        %v3841 = vpop.f32.mrb[0].mxu0
        %v3842 = vadd.f32 %v3617, %v3841
        %v3843 = vpop.f32.mrb[0].mxu0
        %3844 = vmatprep.mubr.bf16.mxu0 %v3310
        %3845 = vmatmul.mubr.bf16.gmra.mrb[0].mxu0 %v3309
        %v3846 = vpop.f32.mrb[0].mxu0
        %v3847 = vadd.f32 %v3622, %v3846
        %v3848 = vpop.f32.mrb[0].mxu0
        %v3849 = vpop.f32.mrb[0].mxu0
        %v3850 = vadd.f32 %v3625, %v3849
        %v3851 = vpop.f32.mrb[0].mxu0
        %3852 = vmatprep.mubr.bf16.mxu0 %v3314
        %3853 = vmatmul.mubr.bf16.gmra.mrb[0].mxu0 %v3313
        %v3854 = vpop.f32.mrb[0].mxu0
        %v3855 = vadd.f32 %v3630, %v3854
        %v3856 = vpop.f32.mrb[0].mxu0
        %v3857 = vpop.f32.mrb[0].mxu0
        %v3858 = vadd.f32 %v3633, %v3857
        %v3859 = vpop.f32.mrb[0].mxu0
        %3860 = vdwg.mxu0
        %v3861 = vld [vmem:[%s8] sm:$0xff]
        %v3862 = vld [vmem:[%s8 + $0x8] sm:$0xff]
        %v3863 = vld [vmem:[%s8 + $0x10] sm:$0xff]
        %v3864 = vld [vmem:[%s8 + $0x18] sm:$0xff]
        %v3865 = vld [vmem:[%s8 + $0x20] sm:$0xff]
        %v3866 = vld [vmem:[%s8 + $0x28] sm:$0xff]
        %v3867 = vld [vmem:[%s8 + $0x30] sm:$0xff]
        %v3868 = vld [vmem:[%s8 + $0x38] sm:$0xff]
        %v3869 = vld [vmem:[%s8 + $0x40] sm:$0xff]
        %v3870 = vld [vmem:[%s8 + $0x48] sm:$0xff]
        %v3871 = vld [vmem:[%s8 + $0x50] sm:$0xff]
        %v3872 = vld [vmem:[%s8 + $0x58] sm:$0xff]
        %v3873 = vld [vmem:[%s8 + $0x60] sm:$0xff]
        %v3874 = vld [vmem:[%s8 + $0x68] sm:$0xff]
        %v3875 = vld [vmem:[%s8 + $0x70] sm:$0xff]
        %v3876 = vld [vmem:[%s8 + $0x78] sm:$0xff]
        %v3877 = vld [vmem:[%s8 + $0x80] sm:$0xff]
        %v3878 = vld [vmem:[%s8 + $0x88] sm:$0xff]
        %v3879 = vld [vmem:[%s8 + $0x90] sm:$0xff]
        %v3880 = vld [vmem:[%s8 + $0x98] sm:$0xff]
        %v3881 = vld [vmem:[%s8 + $0xa0] sm:$0xff]
        %v3882 = vld [vmem:[%s8 + $0xa8] sm:$0xff]
        %v3883 = vld [vmem:[%s8 + $0xb0] sm:$0xff]
        %v3884 = vld [vmem:[%s8 + $0xb8] sm:$0xff]
        %v3885 = vld [vmem:[%s8 + $0xc0] sm:$0xff]
        %v3886 = vld [vmem:[%s8 + $0xc8] sm:$0xff]
        %v3887 = vld [vmem:[%s8 + $0xd0] sm:$0xff]
        %v3888 = vld [vmem:[%s8 + $0xd8] sm:$0xff]
        %v3889 = vld [vmem:[%s8 + $0xe0] sm:$0xff]
        %v3890 = vld [vmem:[%s8 + $0xe8] sm:$0xff]
        %v3891 = vld [vmem:[%s8 + $0xf0] sm:$0xff]
        %v3892 = vld [vmem:[%s8 + $0xf8] sm:$0xff]
        %v3893 = vld [vmem:[%s8 + $0x100] sm:$0xff]
        %v3894 = vld [vmem:[%s8 + $0x108] sm:$0xff]
        %v3895 = vld [vmem:[%s8 + $0x110] sm:$0xff]
        %v3896 = vld [vmem:[%s8 + $0x118] sm:$0xff]
        %v3897 = vld [vmem:[%s8 + $0x120] sm:$0xff]
        %v3898 = vld [vmem:[%s8 + $0x128] sm:$0xff]
        %v3899 = vld [vmem:[%s8 + $0x130] sm:$0xff]
        %v3900 = vld [vmem:[%s8 + $0x138] sm:$0xff]
        %v3901 = vld [vmem:[%s8 + $0x140] sm:$0xff]
        %v3902 = vld [vmem:[%s8 + $0x148] sm:$0xff]
        %v3903 = vld [vmem:[%s8 + $0x150] sm:$0xff]
        %v3904 = vld [vmem:[%s8 + $0x158] sm:$0xff]
        %v3905 = vld [vmem:[%s8 + $0x160] sm:$0xff]
        %v3906 = vld [vmem:[%s8 + $0x168] sm:$0xff]
        %v3907 = vld [vmem:[%s8 + $0x170] sm:$0xff]
        %v3908 = vld [vmem:[%s8 + $0x178] sm:$0xff]
        %3910 = vset.pattern.permute.xlu0 0
        %3911 = vperm.xlu0 %3910, %v3861
        %v3912 = vpop.permute.xlu0 %3911
        %3915 = vset.pattern.permute.xlu0 0
        %3916 = vperm.xlu0 %3915, %v3862
        %v3917 = vpop.permute.xlu0 %3916
        %3920 = vset.pattern.permute.xlu0 0
        %3921 = vperm.xlu0 %3920, %v3863
        %v3922 = vpop.permute.xlu0 %3921
        %3925 = vset.pattern.permute.xlu0 0
        %3926 = vperm.xlu0 %3925, %v3864
        %v3927 = vpop.permute.xlu0 %3926
        %3930 = vset.pattern.permute.xlu0 0
        %3931 = vperm.xlu0 %3930, %v3865
        %v3932 = vpop.permute.xlu0 %3931
        %3935 = vset.pattern.permute.xlu0 0
        %3936 = vperm.xlu0 %3935, %v3866
        %v3937 = vpop.permute.xlu0 %3936
        %3940 = vset.pattern.permute.xlu0 0
        %3941 = vperm.xlu0 %3940, %v3867
        %v3942 = vpop.permute.xlu0 %3941
        %3945 = vset.pattern.permute.xlu0 0
        %3946 = vperm.xlu0 %3945, %v3868
        %v3947 = vpop.permute.xlu0 %3946
        %3950 = vset.pattern.permute.xlu0 0
        %3951 = vperm.xlu0 %3950, %v3869
        %v3952 = vpop.permute.xlu0 %3951
        %3955 = vset.pattern.permute.xlu0 0
        %3956 = vperm.xlu0 %3955, %v3870
        %v3957 = vpop.permute.xlu0 %3956
        %3960 = vset.pattern.permute.xlu0 0
        %3961 = vperm.xlu0 %3960, %v3871
        %v3962 = vpop.permute.xlu0 %3961
        %3965 = vset.pattern.permute.xlu0 0
        %3966 = vperm.xlu0 %3965, %v3872
        %v3967 = vpop.permute.xlu0 %3966
        %3970 = vset.pattern.permute.xlu0 0
        %3971 = vperm.xlu0 %3970, %v3873
        %v3972 = vpop.permute.xlu0 %3971
        %3975 = vset.pattern.permute.xlu0 0
        %3976 = vperm.xlu0 %3975, %v3874
        %v3977 = vpop.permute.xlu0 %3976
        %3980 = vset.pattern.permute.xlu0 0
        %3981 = vperm.xlu0 %3980, %v3875
        %v3982 = vpop.permute.xlu0 %3981
        %3985 = vset.pattern.permute.xlu0 0
        %3986 = vperm.xlu0 %3985, %v3876
        %v3987 = vpop.permute.xlu0 %3986
        %3990 = vset.pattern.permute.xlu0 0
        %3991 = vperm.xlu0 %3990, %v3877
        %v3992 = vpop.permute.xlu0 %3991
        %3995 = vset.pattern.permute.xlu0 0
        %3996 = vperm.xlu0 %3995, %v3878
        %v3997 = vpop.permute.xlu0 %3996
        %4000 = vset.pattern.permute.xlu0 0
        %4001 = vperm.xlu0 %4000, %v3879
        %v4002 = vpop.permute.xlu0 %4001
        %4005 = vset.pattern.permute.xlu0 0
        %4006 = vperm.xlu0 %4005, %v3880
        %v4007 = vpop.permute.xlu0 %4006
        %4010 = vset.pattern.permute.xlu0 0
        %4011 = vperm.xlu0 %4010, %v3881
        %v4012 = vpop.permute.xlu0 %4011
        %4015 = vset.pattern.permute.xlu0 0
        %4016 = vperm.xlu0 %4015, %v3882
        %v4017 = vpop.permute.xlu0 %4016
        %4020 = vset.pattern.permute.xlu0 0
        %4021 = vperm.xlu0 %4020, %v3883
        %v4022 = vpop.permute.xlu0 %4021
        %4025 = vset.pattern.permute.xlu0 0
        %4026 = vperm.xlu0 %4025, %v3884
        %v4027 = vpop.permute.xlu0 %4026
        %4030 = vset.pattern.permute.xlu0 0
        %4031 = vperm.xlu0 %4030, %v3885
        %v4032 = vpop.permute.xlu0 %4031
        %4035 = vset.pattern.permute.xlu0 0
        %4036 = vperm.xlu0 %4035, %v3886
        %v4037 = vpop.permute.xlu0 %4036
        %4040 = vset.pattern.permute.xlu0 0
        %4041 = vperm.xlu0 %4040, %v3887
        %v4042 = vpop.permute.xlu0 %4041
        %4045 = vset.pattern.permute.xlu0 0
        %4046 = vperm.xlu0 %4045, %v3888
        %v4047 = vpop.permute.xlu0 %4046
        %4050 = vset.pattern.permute.xlu0 0
        %4051 = vperm.xlu0 %4050, %v3889
        %v4052 = vpop.permute.xlu0 %4051
        %4055 = vset.pattern.permute.xlu0 0
        %4056 = vperm.xlu0 %4055, %v3890
        %v4057 = vpop.permute.xlu0 %4056
        %4060 = vset.pattern.permute.xlu0 0
        %4061 = vperm.xlu0 %4060, %v3891
        %v4062 = vpop.permute.xlu0 %4061
        %4065 = vset.pattern.permute.xlu0 0
        %4066 = vperm.xlu0 %4065, %v3892
        %v4067 = vpop.permute.xlu0 %4066
        %4070 = vset.pattern.permute.xlu0 0
        %4071 = vperm.xlu0 %4070, %v3893
        %v4072 = vpop.permute.xlu0 %4071
        %4075 = vset.pattern.permute.xlu0 0
        %4076 = vperm.xlu0 %4075, %v3894
        %v4077 = vpop.permute.xlu0 %4076
        %4080 = vset.pattern.permute.xlu0 0
        %4081 = vperm.xlu0 %4080, %v3895
        %v4082 = vpop.permute.xlu0 %4081
        %4085 = vset.pattern.permute.xlu0 0
        %4086 = vperm.xlu0 %4085, %v3896
        %v4087 = vpop.permute.xlu0 %4086
        %4090 = vset.pattern.permute.xlu0 0
        %4091 = vperm.xlu0 %4090, %v3897
        %v4092 = vpop.permute.xlu0 %4091
        %4095 = vset.pattern.permute.xlu0 0
        %4096 = vperm.xlu0 %4095, %v3898
        %v4097 = vpop.permute.xlu0 %4096
        %4100 = vset.pattern.permute.xlu0 0
        %4101 = vperm.xlu0 %4100, %v3899
        %v4102 = vpop.permute.xlu0 %4101
        %4105 = vset.pattern.permute.xlu0 0
        %4106 = vperm.xlu0 %4105, %v3900
        %v4107 = vpop.permute.xlu0 %4106
        %4110 = vset.pattern.permute.xlu0 0
        %4111 = vperm.xlu0 %4110, %v3901
        %v4112 = vpop.permute.xlu0 %4111
        %4115 = vset.pattern.permute.xlu0 0
        %4116 = vperm.xlu0 %4115, %v3902
        %v4117 = vpop.permute.xlu0 %4116
        %4120 = vset.pattern.permute.xlu0 0
        %4121 = vperm.xlu0 %4120, %v3903
        %v4122 = vpop.permute.xlu0 %4121
        %4125 = vset.pattern.permute.xlu0 0
        %4126 = vperm.xlu0 %4125, %v3904
        %v4127 = vpop.permute.xlu0 %4126
        %4130 = vset.pattern.permute.xlu0 0
        %4131 = vperm.xlu0 %4130, %v3905
        %v4132 = vpop.permute.xlu0 %4131
        %4135 = vset.pattern.permute.xlu0 0
        %4136 = vperm.xlu0 %4135, %v3906
        %v4137 = vpop.permute.xlu0 %4136
        %4140 = vset.pattern.permute.xlu0 0
        %4141 = vperm.xlu0 %4140, %v3907
        %v4142 = vpop.permute.xlu0 %4141
        %4145 = vset.pattern.permute.xlu0 0
        %4146 = vperm.xlu0 %4145, %v3908
        %v4147 = vpop.permute.xlu0 %4146
        %v4149 = vadd.f32 %v3671, %v3912
        %v4150 = vadd.f32 %v3674, %v3917
        %v4151 = vadd.f32 %v3679, %v3922
        %v4152 = vadd.f32 %v3682, %v3927
        %v4153 = vadd.f32 %v3687, %v3932
        %v4154 = vadd.f32 %v3690, %v3937
        %v4155 = vadd.f32 %v3695, %v3942
        %v4156 = vadd.f32 %v3698, %v3947
        %v4157 = vadd.f32 %v3703, %v3952
        %v4158 = vadd.f32 %v3706, %v3957
        %v4159 = vadd.f32 %v3711, %v3962
        %v4160 = vadd.f32 %v3714, %v3967
        %v4161 = vadd.f32 %v3719, %v3972
        %v4162 = vadd.f32 %v3722, %v3977
        %v4163 = vadd.f32 %v3727, %v3982
        %v4164 = vadd.f32 %v3730, %v3987
        %v4165 = vadd.f32 %v3735, %v3992
        %v4166 = vadd.f32 %v3738, %v3997
        %v4167 = vadd.f32 %v3743, %v4002
        %v4168 = vadd.f32 %v3746, %v4007
        %v4169 = vadd.f32 %v3751, %v4012
        %v4170 = vadd.f32 %v3754, %v4017
        %v4171 = vadd.f32 %v3759, %v4022
        %v4172 = vadd.f32 %v3762, %v4027
        %v4173 = vadd.f32 %v3767, %v4032
        %v4174 = vadd.f32 %v3770, %v4037
        %v4175 = vadd.f32 %v3775, %v4042
        %v4176 = vadd.f32 %v3778, %v4047
        %v4177 = vadd.f32 %v3783, %v4052
        %v4178 = vadd.f32 %v3786, %v4057
        %v4179 = vadd.f32 %v3791, %v4062
        %v4180 = vadd.f32 %v3794, %v4067
        %v4181 = vadd.f32 %v3799, %v4072
        %v4182 = vadd.f32 %v3802, %v4077
        %v4183 = vadd.f32 %v3807, %v4082
        %v4184 = vadd.f32 %v3810, %v4087
        %v4185 = vadd.f32 %v3815, %v4092
        %v4186 = vadd.f32 %v3818, %v4097
        %v4187 = vadd.f32 %v3823, %v4102
        %v4188 = vadd.f32 %v3826, %v4107
        %v4189 = vadd.f32 %v3831, %v4112
        %v4190 = vadd.f32 %v3834, %v4117
        %v4191 = vadd.f32 %v3839, %v4122
        %v4192 = vadd.f32 %v3842, %v4127
        %v4193 = vadd.f32 %v3847, %v4132
        %v4194 = vadd.f32 %v3850, %v4137
        %v4195 = vadd.f32 %v3855, %v4142
        %v4196 = vadd.f32 %v3858, %v4147
        %v4197 = vmax.f32 %v4149, 0.0
        %v4198 = vmax.f32 %v4150, 0.0
        %v4199 = vmax.f32 %v4151, 0.0
        %v4200 = vmax.f32 %v4152, 0.0
        %v4201 = vmax.f32 %v4153, 0.0
        %v4202 = vmax.f32 %v4154, 0.0
        %v4203 = vmax.f32 %v4155, 0.0
        %v4204 = vmax.f32 %v4156, 0.0
        %v4205 = vmax.f32 %v4157, 0.0
        %v4206 = vmax.f32 %v4158, 0.0
        %v4207 = vmax.f32 %v4159, 0.0
        %v4208 = vmax.f32 %v4160, 0.0
        %v4209 = vmax.f32 %v4161, 0.0
        %v4210 = vmax.f32 %v4162, 0.0
        %v4211 = vmax.f32 %v4163, 0.0
        %v4212 = vmax.f32 %v4164, 0.0
        %v4213 = vmax.f32 %v4165, 0.0
        %v4214 = vmax.f32 %v4166, 0.0
        %v4215 = vmax.f32 %v4167, 0.0
        %v4216 = vmax.f32 %v4168, 0.0
        %v4217 = vmax.f32 %v4169, 0.0
        %v4218 = vmax.f32 %v4170, 0.0
        %v4219 = vmax.f32 %v4171, 0.0
        %v4220 = vmax.f32 %v4172, 0.0
        %v4221 = vmax.f32 %v4173, 0.0
        %v4222 = vmax.f32 %v4174, 0.0
        %v4223 = vmax.f32 %v4175, 0.0
        %v4224 = vmax.f32 %v4176, 0.0
        %v4225 = vmax.f32 %v4177, 0.0
        %v4226 = vmax.f32 %v4178, 0.0
        %v4227 = vmax.f32 %v4179, 0.0
        %v4228 = vmax.f32 %v4180, 0.0
        %v4229 = vmax.f32 %v4181, 0.0
        %v4230 = vmax.f32 %v4182, 0.0
        %v4231 = vmax.f32 %v4183, 0.0
        %v4232 = vmax.f32 %v4184, 0.0
        %v4233 = vmax.f32 %v4185, 0.0
        %v4234 = vmax.f32 %v4186, 0.0
        %v4235 = vmax.f32 %v4187, 0.0
        %v4236 = vmax.f32 %v4188, 0.0
        %v4237 = vmax.f32 %v4189, 0.0
        %v4238 = vmax.f32 %v4190, 0.0
        %v4239 = vmax.f32 %v4191, 0.0
        %v4240 = vmax.f32 %v4192, 0.0
        %v4241 = vmax.f32 %v4193, 0.0
        %v4242 = vmax.f32 %v4194, 0.0
        %v4243 = vmax.f32 %v4195, 0.0
        %v4244 = vmax.f32 %v4196, 0.0
        %v4245 = vld [vmem:[%s9] sm:$0xff]
        %v4246 = vld [vmem:[%s9 + $0x8] sm:$0xff]
        %v4247 = vld [vmem:[%s9 + $0x10] sm:$0xff]
        %v4248 = vld [vmem:[%s10] sm:$0xff]
        %4250 = vset.pattern.permute.xlu0 0
        %4251 = vperm.xlu0 %4250, %v4248
        %v4252 = vpop.permute.xlu0 %4251
        %4254 = vmatprep.subr.mxu0 0.0
        %4255 = vmatpush1.msra.mxu0 %v4197
        %4256 = vmatprep.subr.mxu0 0.0
        %4257 = vmatpush1.msra.mxu0 %v4198
        %4258 = vmatprep.subr.mxu0 0.0
        %4259 = vmatpush1.msra.mxu0 %v4199
        %4260 = vmatprep.subr.mxu0 0.0
        %4261 = vmatpush1.msra.mxu0 %v4200
        %4262 = vmatprep.subr.mxu0 0.0
        %4263 = vmatpush1.msra.mxu0 %v4201
        %4264 = vmatprep.subr.mxu0 0.0
        %4265 = vmatpush1.msra.mxu0 %v4202
        %4266 = vmatprep.subr.mxu0 0.0
        %4267 = vmatpush1.msra.mxu0 %v4203
        %4268 = vmatprep.subr.mxu0 0.0
        %4269 = vmatpush1.msra.mxu0 %v4204
        %4270 = vmatprep.subr.mxu0 0.0
        %4271 = vmatpush1.msra.mxu0 %v4205
        %4272 = vmatprep.subr.mxu0 0.0
        %4273 = vmatpush1.msra.mxu0 %v4206
        %4274 = vmatprep.subr.mxu0 0.0
        %4275 = vmatpush1.msra.mxu0 %v4207
        %4276 = vmatprep.subr.mxu0 0.0
        %4277 = vmatpush1.msra.mxu0 %v4208
        %4278 = vmatprep.subr.mxu0 0.0
        %4279 = vmatpush1.msra.mxu0 %v4209
        %4280 = vmatprep.subr.mxu0 0.0
        %4281 = vmatpush1.msra.mxu0 %v4210
        %4282 = vmatprep.subr.mxu0 0.0
        %4283 = vmatpush1.msra.mxu0 %v4211
        %4284 = vmatprep.subr.mxu0 0.0
        %4285 = vmatpush1.msra.mxu0 %v4212
        %4286 = vmatprep.subr.mxu0 0.0
        %4287 = vmatpush1.msra.mxu0 %v4213
        %4288 = vmatprep.subr.mxu0 0.0
        %4289 = vmatpush1.msra.mxu0 %v4214
        %4290 = vmatprep.subr.mxu0 0.0
        %4291 = vmatpush1.msra.mxu0 %v4215
        %4292 = vmatprep.subr.mxu0 0.0
        %4293 = vmatpush1.msra.mxu0 %v4216
        %4294 = vmatprep.subr.mxu0 0.0
        %4295 = vmatpush1.msra.mxu0 %v4217
        %4296 = vmatprep.subr.mxu0 0.0
        %4297 = vmatpush1.msra.mxu0 %v4218
        %4298 = vmatprep.subr.mxu0 0.0
        %4299 = vmatpush1.msra.mxu0 %v4219
        %4300 = vmatprep.subr.mxu0 0.0
        %4301 = vmatpush1.msra.mxu0 %v4220
        %4302 = vmatprep.subr.mxu0 0.0
        %4303 = vmatpush1.msra.mxu0 %v4221
        %4304 = vmatprep.subr.mxu0 0.0
        %4305 = vmatpush1.msra.mxu0 %v4222
        %4306 = vmatprep.subr.mxu0 0.0
        %4307 = vmatpush1.msra.mxu0 %v4223
        %4308 = vmatprep.subr.mxu0 0.0
        %4309 = vmatpush1.msra.mxu0 %v4224
        %4310 = vmatprep.subr.mxu0 0.0
        %4311 = vmatpush1.msra.mxu0 %v4225
        %4312 = vmatprep.subr.mxu0 0.0
        %4313 = vmatpush1.msra.mxu0 %v4226
        %4314 = vmatprep.subr.mxu0 0.0
        %4315 = vmatpush1.msra.mxu0 %v4227
        %4316 = vmatprep.subr.mxu0 0.0
        %4317 = vmatpush1.msra.mxu0 %v4228
        %4318 = vmatprep.mubr.f32.mxu0 %v4246
        %4319 = vmatmul.mubr.f32.gmra.mrb[0].mxu0 %v4245
        %v4320 = vpop.f32.mrb[0].mxu0
        %v4321 = vadd.f32 %v4252, %v4320
        %v4322 = vpop.f32.mrb[0].mxu0
        %4323 = vdwg.mxu0
        %4324 = vmatprep.subr.mxu0 0.0
        %4325 = vmatpush1.msra.mxu0 %v4229
        %4326 = vmatprep.subr.mxu0 0.0
        %4327 = vmatpush1.msra.mxu0 %v4230
        %4328 = vmatprep.subr.mxu0 0.0
        %4329 = vmatpush1.msra.mxu0 %v4231
        %4330 = vmatprep.subr.mxu0 0.0
        %4331 = vmatpush1.msra.mxu0 %v4232
        %4332 = vmatprep.subr.mxu0 0.0
        %4333 = vmatpush1.msra.mxu0 %v4233
        %4334 = vmatprep.subr.mxu0 0.0
        %4335 = vmatpush1.msra.mxu0 %v4234
        %4336 = vmatprep.subr.mxu0 0.0
        %4337 = vmatpush1.msra.mxu0 %v4235
        %4338 = vmatprep.subr.mxu0 0.0
        %4339 = vmatpush1.msra.mxu0 %v4236
        %4340 = vmatprep.subr.mxu0 0.0
        %4341 = vmatpush1.msra.mxu0 %v4237
        %4342 = vmatprep.subr.mxu0 0.0
        %4343 = vmatpush1.msra.mxu0 %v4238
        %4344 = vmatprep.subr.mxu0 0.0
        %4345 = vmatpush1.msra.mxu0 %v4239
        %4346 = vmatprep.subr.mxu0 0.0
        %4347 = vmatpush1.msra.mxu0 %v4240
        %4348 = vmatprep.subr.mxu0 0.0
        %4349 = vmatpush1.msra.mxu0 %v4241
        %4350 = vmatprep.subr.mxu0 0.0
        %4351 = vmatpush1.msra.mxu0 %v4242
        %4352 = vmatprep.subr.mxu0 0.0
        %4353 = vmatpush1.msra.mxu0 %v4243
        %4354 = vmatprep.subr.mxu0 0.0
        %4355 = vmatpush1.msra.mxu0 %v4244
        %4356 = vmatprep.subr.mxu0 0.0
        %4357 = vmatpush1.msra.mxu0 0.0
        %4358 = vmatprep.subr.mxu0 0.0
        %4359 = vmatpush1.msra.mxu0 0.0
        %4360 = vmatprep.subr.mxu0 0.0
        %4361 = vmatpush1.msra.mxu0 0.0
        %4362 = vmatprep.subr.mxu0 0.0
        %4363 = vmatpush1.msra.mxu0 0.0
        %4364 = vmatprep.subr.mxu0 0.0
        %4365 = vmatpush1.msra.mxu0 0.0
        %4366 = vmatprep.subr.mxu0 0.0
        %4367 = vmatpush1.msra.mxu0 0.0
        %4368 = vmatprep.subr.mxu0 0.0
        %4369 = vmatpush1.msra.mxu0 0.0
        %4370 = vmatprep.subr.mxu0 0.0
        %4371 = vmatpush1.msra.mxu0 0.0
        %4372 = vmatprep.subr.mxu0 0.0
        %4373 = vmatpush1.msra.mxu0 0.0
        %4374 = vmatprep.subr.mxu0 0.0
        %4375 = vmatpush1.msra.mxu0 0.0
        %4376 = vmatprep.subr.mxu0 0.0
        %4377 = vmatpush1.msra.mxu0 0.0
        %4378 = vmatprep.subr.mxu0 0.0
        %4379 = vmatpush1.msra.mxu0 0.0
        %4380 = vmatprep.subr.mxu0 0.0
        %4381 = vmatpush1.msra.mxu0 0.0
        %4382 = vmatprep.subr.mxu0 0.0
        %4383 = vmatpush1.msra.mxu0 0.0
        %4384 = vmatprep.subr.mxu0 0.0
        %4385 = vmatpush1.msra.mxu0 0.0
        %4386 = vmatprep.subr.mxu0 0.0
        %4387 = vmatpush1.msra.mxu0 0.0
        %4388 = vmatprep.mubr.f32.mxu0 0.0
        %4389 = vmatmul.mubr.f32.gmra.mrb[0].mxu0 %v4247
        %v4390 = vpop.f32.mrb[0].mxu0
        %v4391 = vadd.f32 %v4321, %v4390
        %v4392 = vpop.f32.mrb[0].mxu0
        %4393 = vdwg.mxu0
        %4394 = vst [vmem:[%s606] sm:$0xff] %v4391
        %p4395 = scmp.lt.s32.totalorder %s22, 1
        %s4396 = scalar_select %p4395, %s22, 1
        %s4397 = smul.addr %s4396, 8
        %s4398 = scalar_lea.vmem %s11, %s4397
        // Predicated region
        $region147: #{ddpg_critic_forward.1} parent=137 // pred_check
          %p4399 = pneg %p281
        $region148: #{ddpg_critic_forward.1} parent=137 // pred_check_branch
          %4401 = sbr.rel (%p4399) target = $region150
        $region149: #{ddpg_critic_forward.1} parent=137 // pred_region
          _
        $region150: #{ddpg_critic_forward.1} parent=137 // pred_fallthru
          _
      $region138: #{ddpg_critic_forward.1} parent=5 // pred_fallthru
        _
      %p4402 = scmp.le.s32.totalorder 2, %s17
      // Predicated region
      $region151: #{ddpg_critic_forward.1} parent=5 // pred_check
        %p4403 = pneg %p4402
      $region152: #{ddpg_critic_forward.1} parent=5 // pred_check_branch
        %4405 = sbr.rel (%p4403) target = $region154
      $region153: #{ddpg_critic_forward.1} parent=5 // pred_region
        %s4406 = ssub.s32 %s17, 2
        // Predicated region
        $region155: #{ddpg_critic_forward.1} parent=153 // pred_check
          %p4407 = pneg %p287
        $region156: #{ddpg_critic_forward.1} parent=153 // pred_check_branch
          %4409 = sbr.rel (%p4407) target = $region158
        $region157: #{ddpg_critic_forward.1} parent=153 // pred_region
          %p4410 = scmp.lt.s32.totalorder %s23, 1
          %s4411 = scalar_select %p4410, %s23, 1
          %s4412 = smul.addr %s4411, 8
          %s4413 = scalar_lea.vmem %s11, %s4412
        $region158: #{ddpg_critic_forward.1} parent=153 // pred_fallthru
          _
      $region154: #{ddpg_critic_forward.1} parent=5 // pred_fallthru
        _
    $region6: #{ddpg_critic_forward.1} parent=1 // loop_footer
      %s21 = sadd.s32 1, %s17
    $region7: #{ddpg_critic_forward.1} parent=1 // loop_footer_branch
      %16 = sbr.rel target = $region3
    $region8: #{ddpg_critic_forward.1} parent=1 // loop_exit
      _

</llo_original>
